<compile_context>
chip_gen: v7x
topology: tpu7x:2x2x1
jax: 0.10.0
libtpu: 0.0.40
codegen_flags: <defaults>
</compile_context>

<pallas_src>
import functools

import jax
import jax.numpy as jnp
from jax import lax
from jax.experimental import pallas as pl
from jax.experimental.pallas import tpu as pltpu

LANE = 128
EPS = 1e-5


def _pad_to_lane(c):
    return ((c + LANE - 1) // LANE) * LANE


# ----------------------------------------------------------------------------
# Pallas kernels
# ----------------------------------------------------------------------------

def _conv3x3_kernel(xp_ref, w_ref, y_ref, stat_ref, *, th, wo, cout):
    """Direct 3x3 / stride-1 convolution on one (batch, H-tile) block.

    xp_ref  : (1, H+2, W+2, Cin_p)  zero-padded activation (resident across H-tiles)
    w_ref   : (9, Cin_p, Cout_p)    bf16 weights, tap-major
    y_ref   : (1, th, W, Cout_p)    f32 conv output tile
    stat_ref: (1, 1, 2, Cout_p)     per-tile per-channel [sum, sum_of_squares]
    """
    j = pl.program_id(1)
    r0 = pl.multiple_of(j * th, th)

    acc = jnp.zeros((th * wo, cout), jnp.float32)
    for dh in range(3):
        for dw in range(3):
            tap = xp_ref[0, pl.ds(r0 + dh, th), pl.ds(dw, wo), :]   # (th, wo, Cin_p)
            tap = tap.reshape(th * wo, tap.shape[-1]).astype(jnp.bfloat16)
            acc = acc + jnp.dot(tap, w_ref[dh * 3 + dw],
                                preferred_element_type=jnp.float32)

    y_ref[0] = acc.reshape(th, wo, cout).astype(y_ref.dtype)
    s = jnp.sum(acc, axis=0, keepdims=True)          # (1, Cout_p)
    ss = jnp.sum(acc * acc, axis=0, keepdims=True)   # (1, Cout_p)
    stat_ref[0, 0] = jnp.concatenate([s, ss], axis=0)


def _bn_stats(stat_ref, g_ref, b_ref, count):
    """Training-mode BN scale/shift from accumulated [sum, sumsq]."""
    mean = stat_ref[0:1, :] * (1.0 / count)                      # (1, C)
    var = jnp.maximum(stat_ref[1:2, :] * (1.0 / count) - mean * mean, 0.0)
    scale = g_ref[...] * lax.rsqrt(var + EPS)
    shift = b_ref[...] - mean * scale
    return scale, shift


def _bn_relu_kernel(y_ref, stat_ref, g_ref, b_ref, o_ref, *, count):
    scale, shift = _bn_stats(stat_ref, g_ref, b_ref, count)
    out = y_ref[...] * scale + shift
    o_ref[...] = jnp.maximum(out, 0.0).astype(o_ref.dtype)


def _bn_add_relu_kernel(y_ref, stat_ref, g_ref, b_ref, id_ref, o_ref, *, count):
    scale, shift = _bn_stats(stat_ref, g_ref, b_ref, count)
    out = y_ref[...] * scale + shift + id_ref[...]
    o_ref[...] = jnp.maximum(out, 0.0).astype(o_ref.dtype)


def _bn_add_ds_relu_kernel(y_ref, stat_ref, g_ref, b_ref, id_ref, dw_ref, db_ref,
                           o_ref, *, count):
    # Fused 1x1-conv downsample (+bias) on the identity path.
    res = jnp.dot(id_ref[...].astype(jnp.bfloat16), dw_ref[...],
                  preferred_element_type=jnp.float32) + db_ref[...]
    scale, shift = _bn_stats(stat_ref, g_ref, b_ref, count)
    out = y_ref[...] * scale + shift + res
    o_ref[...] = jnp.maximum(out, 0.0).astype(o_ref.dtype)


# ----------------------------------------------------------------------------
# Wrappers
# ----------------------------------------------------------------------------

def conv3x3(x, w):
    """x: (N, H, W, Cin_p) f32 (channels already lane-padded).
    w: (9, Cin_p, Cout_p) bf16.  Returns conv output (N, H, W, Cout_p) f32 and
    per-channel [sum, sum_of_squares] of shape (2, Cout_p)."""
    n, h, wd, cp = x.shape
    _, _, cop = w.shape
    xp = jnp.pad(x, ((0, 0), (1, 1), (1, 1), (0, 0)))

    th = 8 if h % 8 == 0 else h           # H-tile (M = th * W rows per matmul)
    nht = h // th
    kernel = functools.partial(_conv3x3_kernel, th=th, wo=wd, cout=cop)

    y, part = pl.pallas_call(
        kernel,
        out_shape=(jax.ShapeDtypeStruct((n, h, wd, cop), jnp.float32),
                   jax.ShapeDtypeStruct((n, nht, 2, cop), jnp.float32)),
        grid=(n, nht),
        in_specs=[
            pl.BlockSpec((1, h + 2, wd + 2, cp), lambda i, j: (i, 0, 0, 0)),
            pl.BlockSpec((9, cp, cop), lambda i, j: (0, 0, 0)),
        ],
        out_specs=(
            pl.BlockSpec((1, th, wd, cop), lambda i, j: (i, j, 0, 0)),
            pl.BlockSpec((1, 1, 2, cop), lambda i, j: (i, j, 0, 0)),
        ),
        compiler_params=pltpu.CompilerParams(
            dimension_semantics=("parallel", "parallel")),
    )(xp, w)

    stats = jnp.sum(part, axis=(0, 1))    # (2, Cout_p) — tiny glue reduction
    return y, stats


def batchnorm_act(y, stats, gamma, beta, *, residual=None, ds_w=None, ds_b=None):
    """Training-mode BN -> (+residual [optionally 1x1-downsampled]) -> ReLU.

    y: (N, H, W, Cout_p) f32, stats: (2, Cout_p), gamma/beta: (1, Cout_p).
    residual: (N, H, W, Cin_p) or None.  ds_w: (Cin_p, Cout_p) bf16 or None.
    """
    n, h, w, cop = y.shape
    m = n * h * w
    count = float(m)
    tm = 128 if m % 128 == 0 else m
    y2 = y.reshape(m, cop)

    in_specs = [
        pl.BlockSpec((tm, cop), lambda i: (i, 0)),
        pl.BlockSpec((2, cop), lambda i: (0, 0)),
        pl.BlockSpec((1, cop), lambda i: (0, 0)),
        pl.BlockSpec((1, cop), lambda i: (0, 0)),
    ]
    args = [y2, stats, gamma, beta]

    if residual is None:
        kernel = functools.partial(_bn_relu_kernel, count=count)
    else:
        cin_p = residual.shape[-1]
        r2 = residual.reshape(m, cin_p)
        in_specs.append(pl.BlockSpec((tm, cin_p), lambda i: (i, 0)))
        args.append(r2)
        if ds_w is None:
            assert cin_p == cop
            kernel = functools.partial(_bn_add_relu_kernel, count=count)
        else:
            in_specs.append(pl.BlockSpec((cin_p, cop), lambda i: (0, 0)))
            in_specs.append(pl.BlockSpec((1, cop), lambda i: (0, 0)))
            args += [ds_w, ds_b]
            kernel = functools.partial(_bn_add_ds_relu_kernel, count=count)

    out = pl.pallas_call(
        kernel,
        out_shape=jax.ShapeDtypeStruct((m, cop), jnp.float32),
        grid=(m // tm,),
        in_specs=in_specs,
        out_specs=pl.BlockSpec((tm, cop), lambda i: (i, 0)),
        compiler_params=pltpu.CompilerParams(dimension_semantics=("parallel",)),
    )(*args)
    return out.reshape(n, h, w, cop)


# ----------------------------------------------------------------------------
# BasicBlock: params + forward
# ----------------------------------------------------------------------------

def init_block_params(key, cin, cout, downsample):
    cin_p, cout_p = _pad_to_lane(cin), _pad_to_lane(cout)
    k1, k2, k3, k4 = jax.random.split(key, 4)

    def conv_w(k, kh, kw, ci, co, ci_p, co_p):
        fan_in = kh * kw * ci
        w = jax.random.normal(k, (kh, kw, ci, co), jnp.float32) * (1.0 / fan_in) ** 0.5
        return jnp.pad(w, ((0, 0), (0, 0), (0, ci_p - ci), (0, co_p - co)))

    # conv1/conv2 biases intentionally omitted (exactly cancelled by training BN).
    w1 = conv_w(k1, 3, 3, cin, cout, cin_p, cout_p).reshape(9, cin_p, cout_p).astype(jnp.bfloat16)
    w2 = conv_w(k2, 3, 3, cout, cout, cout_p, cout_p).reshape(9, cout_p, cout_p).astype(jnp.bfloat16)
    p = dict(
        w1=w1, w2=w2,
        gamma=jnp.ones((1, cout_p), jnp.float32),      # BN default init; pad value irrelevant
        beta=jnp.zeros((1, cout_p), jnp.float32),
        dw=None, db=None,
    )
    if downsample:   # downsample = Conv2d(cin, cout, kernel_size=1)  (with bias)
        dw = conv_w(k3, 1, 1, cin, cout, cin_p, cout_p).reshape(cin_p, cout_p)
        db = jax.random.normal(k4, (1, cout), jnp.float32) * 0.05
        p["dw"] = dw.astype(jnp.bfloat16)
        p["db"] = jnp.pad(db, ((0, 0), (0, cout_p - cout)))
    return p


def basic_block(x, p):
    """x: (N, H, W, Cin_p) f32 (lane-padded).  Returns (N, H, W, Cout_p) f32."""
    identity = x
    y1, s1 = conv3x3(x, p["w1"])
    h1 = batchnorm_act(y1, s1, p["gamma"], p["beta"])                      # bn -> relu
    y2, s2 = conv3x3(h1, p["w2"])
    return batchnorm_act(y2, s2, p["gamma"], p["beta"],                    # bn -> +id -> relu
                         residual=identity, ds_w=p["dw"], ds_b=p["db"])


def basic_block_forward(x_nchw, params, cout):
    n, cin, h, w = x_nchw.shape
    cin_p = _pad_to_lane(cin)
    x = jnp.transpose(x_nchw, (0, 2, 3, 1))                                # NCHW -> NHWC
    x = jnp.pad(x, ((0, 0), (0, 0), (0, 0), (0, cin_p - cin)))
    out = basic_block(x, params)[..., :cout]
    return jnp.transpose(out, (0, 3, 1, 2))                                # NHWC -> NCHW


# ----------------------------------------------------------------------------
# Pure-JAX reference (f32) for a correctness check
# ----------------------------------------------------------------------------

def reference_block(x_nchw, p, cin, cout):
    cin_p, cout_p = _pad_to_lane(cin), _pad_to_lane(cout)
    x = jnp.transpose(x_nchw, (0, 2, 3, 1))
    w1 = p["w1"].astype(jnp.float32).reshape(3, 3, cin_p, cout_p)[:, :, :cin, :cout]
    w2 = p["w2"].astype(jnp.float32).reshape(3, 3, cout_p, cout_p)[:, :, :cout, :cout]
    gamma = p["gamma"][:, :cout]
    beta = p["beta"][:, :cout]

    def conv(a, w, pad):
        return lax.conv_general_dilated(a, w, (1, 1), [(pad, pad), (pad, pad)],
                                        dimension_numbers=("NHWC", "HWIO", "NHWC"))

    def bn(a):
        mean = jnp.mean(a, axis=(0, 1, 2), keepdims=True)
        var = jnp.mean(jnp.square(a - mean), axis=(0, 1, 2), keepdims=True)
        return (a - mean) * lax.rsqrt(var + EPS) * gamma + beta

    identity = x
    h = jax.nn.relu(bn(conv(x, w1, 1)))
    h = bn(conv(h, w2, 1))
    if p["dw"] is not None:
        dw = p["dw"].astype(jnp.float32)[:cin, :cout].reshape(1, 1, cin, cout)
        identity = conv(identity, dw, 0) + p["db"][:, :cout]
    out = jax.nn.relu(h + identity)
    return jnp.transpose(out, (0, 3, 1, 2))


# ----------------------------------------------------------------------------

if __name__ == "__main__":
    key = jax.random.PRNGKey(0)
    kx, kp1, kp2 = jax.random.split(key, 3)

    n, cin, h, w = 2, 64, 16, 16
    x = jax.random.normal(kx, (n, cin, h, w), jnp.float32)

    # BasicBlock(64 -> 64), downsample=None  (x += identity)
    p1 = init_block_params(kp1, 64, 64, downsample=False)
    # BasicBlock(64 -> 128), downsample=Conv2d(64, 128, kernel_size=1)
    p2 = init_block_params(kp2, 64, 128, downsample=True)

    fwd1 = jax.jit(lambda a: basic_block_forward(a, p1, 64))
    fwd2 = jax.jit(lambda a: basic_block_forward(a, p2, 128))

    out1 = fwd1(x)
    out2 = fwd2(x)
    jax.block_until_ready((out1, out2))

    assert out1.shape == (2, 64, 16, 16), out1.shape
    assert out2.shape == (2, 128, 16, 16), out2.shape
    assert bool(jnp.all(jnp.isfinite(out1))) and bool(jnp.all(jnp.isfinite(out2)))

    ref1 = reference_block(x, p1, 64, 64)
    ref2 = reference_block(x, p2, 64, 128)
    err1 = float(jnp.max(jnp.abs(out1 - ref1)))
    err2 = float(jnp.max(jnp.abs(out2 - ref2)))
    assert err1 < 0.1 and err2 < 0.1, (err1, err2)   # bf16-MXU vs f32 reference

    print("KERNEL_OK")
</pallas_src>

<mosaic_0001>
module attributes {stable_mosaic.version = 11 : i64} {
  func.func @_conv3x3_kernel(%arg0: i32, %arg1: i32, %arg2: memref<1x18x18x128xf32, #tpu.memory_space<vmem>>, %arg3: memref<9x128x128xbf16, #tpu.memory_space<vmem>>, %arg4: memref<1x8x16x128xf32, #tpu.memory_space<vmem>>, %arg5: memref<1x1x2x128xf32, #tpu.memory_space<vmem>>) attributes {dimension_semantics = [#tpu.dimension_semantics<parallel>, #tpu.dimension_semantics<parallel>], iteration_bounds = array<i64: 2, 2>, scalar_prefetch = 0 : i64, scratch_operands = 0 : i64, tpu.core_type = #tpu.core_type<tc>, window_params = [{transform_indices = @transform_0, window_bounds = array<i64: 1, 18, 18, 128>}, {pipeline_mode = #tpu.pipeline_mode<synchronous>, transform_indices = @transform_1, window_bounds = array<i64: 9, 128, 128>}, {transform_indices = @transform_2, window_bounds = array<i64: 1, 8, 16, 128>}, {transform_indices = @transform_3, window_bounds = array<i64: 1, 1, 2, 128>}]} {
    %c8_i32 = arith.constant 8 : i32
    %0 = arith.muli %arg1, %c8_i32 : i32
    %1 = tpu.assume_multiple %0, 8 : i32
    %cst = arith.constant 0.000000e+00 : f32
    %2 = vector.broadcast %cst : f32 to vector<128x128xf32>
    %c0_i32 = arith.constant 0 : i32
    %3 = arith.addi %1, %c0_i32 : i32
    %c0 = arith.constant 0 : index
    %4 = arith.index_cast %3 : i32 to index
    %c0_0 = arith.constant 0 : index
    %c0_1 = arith.constant 0 : index
    %5 = vector.load %arg2[%c0, %4, %c0_0, %c0_1] : memref<1x18x18x128xf32, #tpu.memory_space<vmem>>, vector<1x8x16x128xf32>
    %6 = vector.shape_cast %5 : vector<1x8x16x128xf32> to vector<8x16x128xf32>
    %7 = vector.shape_cast %6 : vector<8x16x128xf32> to vector<128x128xf32>
    %8 = arith.truncf %7 : vector<128x128xf32> to vector<128x128xbf16>
    %c0_2 = arith.constant 0 : index
    %c0_3 = arith.constant 0 : index
    %c0_4 = arith.constant 0 : index
    %9 = vector.load %arg3[%c0_2, %c0_3, %c0_4] : memref<9x128x128xbf16, #tpu.memory_space<vmem>>, vector<1x128x128xbf16>
    %10 = vector.shape_cast %9 : vector<1x128x128xbf16> to vector<128x128xbf16>
    %cst_5 = arith.constant dense<0.000000e+00> : vector<128x128xf32>
    %11 = tpu.matmul %8, %10, %cst_5 {dimension_numbers = #tpu.dot_dimension_numbers<[1], [0], [0], [1], [0, 0, 1, 1], [], []>} : vector<128x128xbf16>, vector<128x128xbf16>, vector<128x128xf32> -> vector<128x128xf32>
    %12 = arith.addf %2, %11 : vector<128x128xf32>
    %c0_i32_6 = arith.constant 0 : i32
    %13 = arith.addi %1, %c0_i32_6 : i32
    %c0_7 = arith.constant 0 : index
    %14 = arith.index_cast %13 : i32 to index
    %c1 = arith.constant 1 : index
    %c0_8 = arith.constant 0 : index
    %15 = vector.load %arg2[%c0_7, %14, %c1, %c0_8] : memref<1x18x18x128xf32, #tpu.memory_space<vmem>>, vector<1x8x16x128xf32>
    %16 = vector.shape_cast %15 : vector<1x8x16x128xf32> to vector<8x16x128xf32>
    %17 = vector.shape_cast %16 : vector<8x16x128xf32> to vector<128x128xf32>
    %18 = arith.truncf %17 : vector<128x128xf32> to vector<128x128xbf16>
    %c1_9 = arith.constant 1 : index
    %c0_10 = arith.constant 0 : index
    %c0_11 = arith.constant 0 : index
    %19 = vector.load %arg3[%c1_9, %c0_10, %c0_11] : memref<9x128x128xbf16, #tpu.memory_space<vmem>>, vector<1x128x128xbf16>
    %20 = vector.shape_cast %19 : vector<1x128x128xbf16> to vector<128x128xbf16>
    %cst_12 = arith.constant dense<0.000000e+00> : vector<128x128xf32>
    %21 = tpu.matmul %18, %20, %cst_12 {dimension_numbers = #tpu.dot_dimension_numbers<[1], [0], [0], [1], [0, 0, 1, 1], [], []>} : vector<128x128xbf16>, vector<128x128xbf16>, vector<128x128xf32> -> vector<128x128xf32>
    %22 = arith.addf %12, %21 : vector<128x128xf32>
    %c0_i32_13 = arith.constant 0 : i32
    %23 = arith.addi %1, %c0_i32_13 : i32
    %c0_14 = arith.constant 0 : index
    %24 = arith.index_cast %23 : i32 to index
    %c2 = arith.constant 2 : index
    %c0_15 = arith.constant 0 : index
    %25 = vector.load %arg2[%c0_14, %24, %c2, %c0_15] : memref<1x18x18x128xf32, #tpu.memory_space<vmem>>, vector<1x8x16x128xf32>
    %26 = vector.shape_cast %25 : vector<1x8x16x128xf32> to vector<8x16x128xf32>
    %27 = vector.shape_cast %26 : vector<8x16x128xf32> to vector<128x128xf32>
    %28 = arith.truncf %27 : vector<128x128xf32> to vector<128x128xbf16>
    %c2_16 = arith.constant 2 : index
    %c0_17 = arith.constant 0 : index
    %c0_18 = arith.constant 0 : index
    %29 = vector.load %arg3[%c2_16, %c0_17, %c0_18] : memref<9x128x128xbf16, #tpu.memory_space<vmem>>, vector<1x128x128xbf16>
    %30 = vector.shape_cast %29 : vector<1x128x128xbf16> to vector<128x128xbf16>
    %cst_19 = arith.constant dense<0.000000e+00> : vector<128x128xf32>
    %31 = tpu.matmul %28, %30, %cst_19 {dimension_numbers = #tpu.dot_dimension_numbers<[1], [0], [0], [1], [0, 0, 1, 1], [], []>} : vector<128x128xbf16>, vector<128x128xbf16>, vector<128x128xf32> -> vector<128x128xf32>
    %32 = arith.addf %22, %31 : vector<128x128xf32>
    %c1_i32 = arith.constant 1 : i32
    %33 = arith.addi %1, %c1_i32 : i32
    %c0_20 = arith.constant 0 : index
    %34 = arith.index_cast %33 : i32 to index
    %c0_21 = arith.constant 0 : index
    %c0_22 = arith.constant 0 : index
    %35 = vector.load %arg2[%c0_20, %34, %c0_21, %c0_22] : memref<1x18x18x128xf32, #tpu.memory_space<vmem>>, vector<1x8x16x128xf32>
    %36 = vector.shape_cast %35 : vector<1x8x16x128xf32> to vector<8x16x128xf32>
    %37 = vector.shape_cast %36 : vector<8x16x128xf32> to vector<128x128xf32>
    %38 = arith.truncf %37 : vector<128x128xf32> to vector<128x128xbf16>
    %c3 = arith.constant 3 : index
    %c0_23 = arith.constant 0 : index
    %c0_24 = arith.constant 0 : index
    %39 = vector.load %arg3[%c3, %c0_23, %c0_24] : memref<9x128x128xbf16, #tpu.memory_space<vmem>>, vector<1x128x128xbf16>
    %40 = vector.shape_cast %39 : vector<1x128x128xbf16> to vector<128x128xbf16>
    %cst_25 = arith.constant dense<0.000000e+00> : vector<128x128xf32>
    %41 = tpu.matmul %38, %40, %cst_25 {dimension_numbers = #tpu.dot_dimension_numbers<[1], [0], [0], [1], [0, 0, 1, 1], [], []>} : vector<128x128xbf16>, vector<128x128xbf16>, vector<128x128xf32> -> vector<128x128xf32>
    %42 = arith.addf %32, %41 : vector<128x128xf32>
    %c1_i32_26 = arith.constant 1 : i32
    %43 = arith.addi %1, %c1_i32_26 : i32
    %c0_27 = arith.constant 0 : index
    %44 = arith.index_cast %43 : i32 to index
    %c1_28 = arith.constant 1 : index
    %c0_29 = arith.constant 0 : index
    %45 = vector.load %arg2[%c0_27, %44, %c1_28, %c0_29] : memref<1x18x18x128xf32, #tpu.memory_space<vmem>>, vector<1x8x16x128xf32>
    %46 = vector.shape_cast %45 : vector<1x8x16x128xf32> to vector<8x16x128xf32>
    %47 = vector.shape_cast %46 : vector<8x16x128xf32> to vector<128x128xf32>
    %48 = arith.truncf %47 : vector<128x128xf32> to vector<128x128xbf16>
    %c4 = arith.constant 4 : index
    %c0_30 = arith.constant 0 : index
    %c0_31 = arith.constant 0 : index
    %49 = vector.load %arg3[%c4, %c0_30, %c0_31] : memref<9x128x128xbf16, #tpu.memory_space<vmem>>, vector<1x128x128xbf16>
    %50 = vector.shape_cast %49 : vector<1x128x128xbf16> to vector<128x128xbf16>
    %cst_32 = arith.constant dense<0.000000e+00> : vector<128x128xf32>
    %51 = tpu.matmul %48, %50, %cst_32 {dimension_numbers = #tpu.dot_dimension_numbers<[1], [0], [0], [1], [0, 0, 1, 1], [], []>} : vector<128x128xbf16>, vector<128x128xbf16>, vector<128x128xf32> -> vector<128x128xf32>
    %52 = arith.addf %42, %51 : vector<128x128xf32>
    %c1_i32_33 = arith.constant 1 : i32
    %53 = arith.addi %1, %c1_i32_33 : i32
    %c0_34 = arith.constant 0 : index
    %54 = arith.index_cast %53 : i32 to index
    %c2_35 = arith.constant 2 : index
    %c0_36 = arith.constant 0 : index
    %55 = vector.load %arg2[%c0_34, %54, %c2_35, %c0_36] : memref<1x18x18x128xf32, #tpu.memory_space<vmem>>, vector<1x8x16x128xf32>
    %56 = vector.shape_cast %55 : vector<1x8x16x128xf32> to vector<8x16x128xf32>
    %57 = vector.shape_cast %56 : vector<8x16x128xf32> to vector<128x128xf32>
    %58 = arith.truncf %57 : vector<128x128xf32> to vector<128x128xbf16>
    %c5 = arith.constant 5 : index
    %c0_37 = arith.constant 0 : index
    %c0_38 = arith.constant 0 : index
    %59 = vector.load %arg3[%c5, %c0_37, %c0_38] : memref<9x128x128xbf16, #tpu.memory_space<vmem>>, vector<1x128x128xbf16>
    %60 = vector.shape_cast %59 : vector<1x128x128xbf16> to vector<128x128xbf16>
    %cst_39 = arith.constant dense<0.000000e+00> : vector<128x128xf32>
    %61 = tpu.matmul %58, %60, %cst_39 {dimension_numbers = #tpu.dot_dimension_numbers<[1], [0], [0], [1], [0, 0, 1, 1], [], []>} : vector<128x128xbf16>, vector<128x128xbf16>, vector<128x128xf32> -> vector<128x128xf32>
    %62 = arith.addf %52, %61 : vector<128x128xf32>
    %c2_i32 = arith.constant 2 : i32
    %63 = arith.addi %1, %c2_i32 : i32
    %c0_40 = arith.constant 0 : index
    %64 = arith.index_cast %63 : i32 to index
    %c0_41 = arith.constant 0 : index
    %c0_42 = arith.constant 0 : index
    %65 = vector.load %arg2[%c0_40, %64, %c0_41, %c0_42] : memref<1x18x18x128xf32, #tpu.memory_space<vmem>>, vector<1x8x16x128xf32>
    %66 = vector.shape_cast %65 : vector<1x8x16x128xf32> to vector<8x16x128xf32>
    %67 = vector.shape_cast %66 : vector<8x16x128xf32> to vector<128x128xf32>
    %68 = arith.truncf %67 : vector<128x128xf32> to vector<128x128xbf16>
    %c6 = arith.constant 6 : index
    %c0_43 = arith.constant 0 : index
    %c0_44 = arith.constant 0 : index
    %69 = vector.load %arg3[%c6, %c0_43, %c0_44] : memref<9x128x128xbf16, #tpu.memory_space<vmem>>, vector<1x128x128xbf16>
    %70 = vector.shape_cast %69 : vector<1x128x128xbf16> to vector<128x128xbf16>
    %cst_45 = arith.constant dense<0.000000e+00> : vector<128x128xf32>
    %71 = tpu.matmul %68, %70, %cst_45 {dimension_numbers = #tpu.dot_dimension_numbers<[1], [0], [0], [1], [0, 0, 1, 1], [], []>} : vector<128x128xbf16>, vector<128x128xbf16>, vector<128x128xf32> -> vector<128x128xf32>
    %72 = arith.addf %62, %71 : vector<128x128xf32>
    %c2_i32_46 = arith.constant 2 : i32
    %73 = arith.addi %1, %c2_i32_46 : i32
    %c0_47 = arith.constant 0 : index
    %74 = arith.index_cast %73 : i32 to index
    %c1_48 = arith.constant 1 : index
    %c0_49 = arith.constant 0 : index
    %75 = vector.load %arg2[%c0_47, %74, %c1_48, %c0_49] : memref<1x18x18x128xf32, #tpu.memory_space<vmem>>, vector<1x8x16x128xf32>
    %76 = vector.shape_cast %75 : vector<1x8x16x128xf32> to vector<8x16x128xf32>
    %77 = vector.shape_cast %76 : vector<8x16x128xf32> to vector<128x128xf32>
    %78 = arith.truncf %77 : vector<128x128xf32> to vector<128x128xbf16>
    %c7 = arith.constant 7 : index
    %c0_50 = arith.constant 0 : index
    %c0_51 = arith.constant 0 : index
    %79 = vector.load %arg3[%c7, %c0_50, %c0_51] : memref<9x128x128xbf16, #tpu.memory_space<vmem>>, vector<1x128x128xbf16>
    %80 = vector.shape_cast %79 : vector<1x128x128xbf16> to vector<128x128xbf16>
    %cst_52 = arith.constant dense<0.000000e+00> : vector<128x128xf32>
    %81 = tpu.matmul %78, %80, %cst_52 {dimension_numbers = #tpu.dot_dimension_numbers<[1], [0], [0], [1], [0, 0, 1, 1], [], []>} : vector<128x128xbf16>, vector<128x128xbf16>, vector<128x128xf32> -> vector<128x128xf32>
    %82 = arith.addf %72, %81 : vector<128x128xf32>
    %c2_i32_53 = arith.constant 2 : i32
    %83 = arith.addi %1, %c2_i32_53 : i32
    %c0_54 = arith.constant 0 : index
    %84 = arith.index_cast %83 : i32 to index
    %c2_55 = arith.constant 2 : index
    %c0_56 = arith.constant 0 : index
    %85 = vector.load %arg2[%c0_54, %84, %c2_55, %c0_56] : memref<1x18x18x128xf32, #tpu.memory_space<vmem>>, vector<1x8x16x128xf32>
    %86 = vector.shape_cast %85 : vector<1x8x16x128xf32> to vector<8x16x128xf32>
    %87 = vector.shape_cast %86 : vector<8x16x128xf32> to vector<128x128xf32>
    %88 = arith.truncf %87 : vector<128x128xf32> to vector<128x128xbf16>
    %c8 = arith.constant 8 : index
    %c0_57 = arith.constant 0 : index
    %c0_58 = arith.constant 0 : index
    %89 = vector.load %arg3[%c8, %c0_57, %c0_58] : memref<9x128x128xbf16, #tpu.memory_space<vmem>>, vector<1x128x128xbf16>
    %90 = vector.shape_cast %89 : vector<1x128x128xbf16> to vector<128x128xbf16>
    %cst_59 = arith.constant dense<0.000000e+00> : vector<128x128xf32>
    %91 = tpu.matmul %88, %90, %cst_59 {dimension_numbers = #tpu.dot_dimension_numbers<[1], [0], [0], [1], [0, 0, 1, 1], [], []>} : vector<128x128xbf16>, vector<128x128xbf16>, vector<128x128xf32> -> vector<128x128xf32>
    %92 = arith.addf %82, %91 : vector<128x128xf32>
    %93 = vector.shape_cast %92 : vector<128x128xf32> to vector<8x16x128xf32>
    %c0_60 = arith.constant 0 : index
    %c0_61 = arith.constant 0 : index
    %c0_62 = arith.constant 0 : index
    %c0_63 = arith.constant 0 : index
    %94 = vector.load %arg4[%c0_60, %c0_61, %c0_62, %c0_63] : memref<1x8x16x128xf32, #tpu.memory_space<vmem>>, vector<1x8x16x128xf32>
    %95 = vector.shape_cast %94 : vector<1x8x16x128xf32> to vector<8x16x128xf32>
    %96 = vector.shape_cast %93 : vector<8x16x128xf32> to vector<1x8x16x128xf32>
    tpu.vector_store %arg4[%c0_60, %c0_61, %c0_62, %c0_63], %96 {strides = array<i32>} : memref<1x8x16x128xf32, #tpu.memory_space<vmem>>, vector<1x8x16x128xf32>,
    %cst_64 = arith.constant dense<0.000000e+00> : vector<128xf32>
    %97 = vector.multi_reduction <add>, %92, %cst_64 [0] : vector<128x128xf32> to vector<128xf32>
    %98 = vector.shape_cast %97 : vector<128xf32> to vector<1x128xf32>
    %99 = arith.mulf %92, %92 : vector<128x128xf32>
    %cst_65 = arith.constant dense<0.000000e+00> : vector<128xf32>
    %100 = vector.multi_reduction <add>, %99, %cst_65 [0] : vector<128x128xf32> to vector<128xf32>
    %101 = vector.shape_cast %100 : vector<128xf32> to vector<1x128xf32>
    %102 = tpu.concatenate %98, %101 in 0 : vector<1x128xf32>, vector<1x128xf32> -> vector<2x128xf32>
    %c0_66 = arith.constant 0 : index
    %c0_67 = arith.constant 0 : index
    %c0_68 = arith.constant 0 : index
    %c0_69 = arith.constant 0 : index
    %103 = vector.load %arg5[%c0_66, %c0_67, %c0_68, %c0_69] : memref<1x1x2x128xf32, #tpu.memory_space<vmem>>, vector<1x1x2x128xf32>
    %104 = vector.shape_cast %103 : vector<1x1x2x128xf32> to vector<2x128xf32>
    %105 = vector.shape_cast %102 : vector<2x128xf32> to vector<1x1x2x128xf32>
    tpu.vector_store %arg5[%c0_66, %c0_67, %c0_68, %c0_69], %105 {strides = array<i32>} : memref<1x1x2x128xf32, #tpu.memory_space<vmem>>, vector<1x1x2x128xf32>,
    return
  }
  func.func @transform_0(%arg0: i32, %arg1: i32) -> (i32, i32, i32, i32) {
    %c0_i32 = arith.constant 0 : i32
    %c0_i32_0 = arith.constant 0 : i32
    %c0_i32_1 = arith.constant 0 : i32
    %c0_i32_2 = arith.constant 0 : i32
    return %arg0, %c0_i32, %c0_i32_0, %c0_i32_1 : i32, i32, i32, i32
  }
  func.func @transform_1(%arg0: i32, %arg1: i32) -> (i32, i32, i32) {
    %c0_i32 = arith.constant 0 : i32
    %c0_i32_0 = arith.constant 0 : i32
    %c0_i32_1 = arith.constant 0 : i32
    %c0_i32_2 = arith.constant 0 : i32
    return %c0_i32, %c0_i32_0, %c0_i32_1 : i32, i32, i32
  }
  func.func @transform_2(%arg0: i32, %arg1: i32) -> (i32, i32, i32, i32) {
    %c0_i32 = arith.constant 0 : i32
    %c0_i32_0 = arith.constant 0 : i32
    %c0_i32_1 = arith.constant 0 : i32
    return %arg0, %arg1, %c0_i32, %c0_i32_0 : i32, i32, i32, i32
  }
  func.func @transform_3(%arg0: i32, %arg1: i32) -> (i32, i32, i32, i32) {
    %c0_i32 = arith.constant 0 : i32
    %c0_i32_0 = arith.constant 0 : i32
    %c0_i32_1 = arith.constant 0 : i32
    return %arg0, %arg1, %c0_i32, %c0_i32_0 : i32, i32, i32, i32
  }
}

module attributes {stable_mosaic.version = 11 : i64} {
  func.func @_bn_relu_kernel(%arg0: i32, %arg1: memref<128x128xf32, #tpu.memory_space<vmem>>, %arg2: memref<2x128xf32, #tpu.memory_space<vmem>>, %arg3: memref<1x128xf32, #tpu.memory_space<vmem>>, %arg4: memref<1x128xf32, #tpu.memory_space<vmem>>, %arg5: memref<128x128xf32, #tpu.memory_space<vmem>>) attributes {dimension_semantics = [#tpu.dimension_semantics<parallel>], iteration_bounds = array<i64: 4>, scalar_prefetch = 0 : i64, scratch_operands = 0 : i64, tpu.core_type = #tpu.core_type<tc>, window_params = [{transform_indices = @transform_0, window_bounds = array<i64: 128, 128>}, {pipeline_mode = #tpu.pipeline_mode<synchronous>, transform_indices = @transform_1, window_bounds = array<i64: 2, 128>}, {pipeline_mode = #tpu.pipeline_mode<synchronous>, transform_indices = @transform_2, window_bounds = array<i64: 1, 128>}, {pipeline_mode = #tpu.pipeline_mode<synchronous>, transform_indices = @transform_3, window_bounds = array<i64: 1, 128>}, {transform_indices = @transform_4, window_bounds = array<i64: 128, 128>}]} {
    %c0 = arith.constant 0 : index
    %c0_0 = arith.constant 0 : index
    %0 = vector.load %arg2[%c0, %c0_0] : memref<2x128xf32, #tpu.memory_space<vmem>>, vector<1x128xf32>
    %cst = arith.constant 0.001953125 : f32
    %1 = vector.broadcast %cst : f32 to vector<1x128xf32>
    %2 = arith.mulf %0, %1 : vector<1x128xf32>
    %c1 = arith.constant 1 : index
    %c0_1 = arith.constant 0 : index
    %3 = vector.load %arg2[%c1, %c0_1] : memref<2x128xf32, #tpu.memory_space<vmem>>, vector<1x128xf32>
    %cst_2 = arith.constant 0.001953125 : f32
    %4 = vector.broadcast %cst_2 : f32 to vector<1x128xf32>
    %5 = arith.mulf %3, %4 : vector<1x128xf32>
    %6 = arith.mulf %2, %2 : vector<1x128xf32>
    %7 = arith.subf %5, %6 : vector<1x128xf32>
    %cst_3 = arith.constant 0.000000e+00 : f32
    %8 = vector.broadcast %cst_3 : f32 to vector<1x128xf32>
    %9 = arith.maximumf %7, %8 : vector<1x128xf32>
    %c0_4 = arith.constant 0 : index
    %c0_5 = arith.constant 0 : index
    %10 = vector.load %arg3[%c0_4, %c0_5] : memref<1x128xf32, #tpu.memory_space<vmem>>, vector<1x128xf32>
    %cst_6 = arith.constant 9.99999974E-6 : f32
    %11 = vector.broadcast %cst_6 : f32 to vector<1x128xf32>
    %12 = arith.addf %9, %11 : vector<1x128xf32>
    %13 = math.rsqrt %12 : vector<1x128xf32>
    %14 = arith.mulf %10, %13 : vector<1x128xf32>
    %c0_7 = arith.constant 0 : index
    %c0_8 = arith.constant 0 : index
    %15 = vector.load %arg4[%c0_7, %c0_8] : memref<1x128xf32, #tpu.memory_space<vmem>>, vector<1x128xf32>
    %16 = arith.mulf %2, %14 : vector<1x128xf32>
    %17 = arith.subf %15, %16 : vector<1x128xf32>
    %c0_9 = arith.constant 0 : index
    %c0_10 = arith.constant 0 : index
    %18 = vector.load %arg1[%c0_9, %c0_10] : memref<128x128xf32, #tpu.memory_space<vmem>>, vector<128x128xf32>
    %19 = vector.broadcast %14 : vector<1x128xf32> to vector<128x128xf32>
    %20 = arith.mulf %18, %19 : vector<128x128xf32>
    %21 = vector.broadcast %17 : vector<1x128xf32> to vector<128x128xf32>
    %22 = arith.addf %20, %21 : vector<128x128xf32>
    %cst_11 = arith.constant 0.000000e+00 : f32
    %23 = vector.broadcast %cst_11 : f32 to vector<128x128xf32>
    %24 = arith.maximumf %22, %23 : vector<128x128xf32>
    %c0_12 = arith.constant 0 : index
    %c0_13 = arith.constant 0 : index
    %25 = vector.load %arg5[%c0_12, %c0_13] : memref<128x128xf32, #tpu.memory_space<vmem>>, vector<128x128xf32>
    tpu.vector_store %arg5[%c0_12, %c0_13], %24 {strides = array<i32>} : memref<128x128xf32, #tpu.memory_space<vmem>>, vector<128x128xf32>,
    return
  }
  func.func @transform_0(%arg0: i32) -> (i32, i32) {
    %c0_i32 = arith.constant 0 : i32
    %c0_i32_0 = arith.constant 0 : i32
    return %arg0, %c0_i32 : i32, i32
  }
  func.func @transform_1(%arg0: i32) -> (i32, i32) {
    %c0_i32 = arith.constant 0 : i32
    %c0_i32_0 = arith.constant 0 : i32
    %c0_i32_1 = arith.constant 0 : i32
    return %c0_i32, %c0_i32_0 : i32, i32
  }
  func.func @transform_2(%arg0: i32) -> (i32, i32) {
    %c0_i32 = arith.constant 0 : i32
    %c0_i32_0 = arith.constant 0 : i32
    %c0_i32_1 = arith.constant 0 : i32
    return %c0_i32, %c0_i32_0 : i32, i32
  }
  func.func @transform_3(%arg0: i32) -> (i32, i32) {
    %c0_i32 = arith.constant 0 : i32
    %c0_i32_0 = arith.constant 0 : i32
    %c0_i32_1 = arith.constant 0 : i32
    return %c0_i32, %c0_i32_0 : i32, i32
  }
  func.func @transform_4(%arg0: i32) -> (i32, i32) {
    %c0_i32 = arith.constant 0 : i32
    %c0_i32_0 = arith.constant 0 : i32
    return %arg0, %c0_i32 : i32, i32
  }
}

module attributes {stable_mosaic.version = 11 : i64} {
  func.func @_bn_add_relu_kernel(%arg0: i32, %arg1: memref<128x128xf32, #tpu.memory_space<vmem>>, %arg2: memref<2x128xf32, #tpu.memory_space<vmem>>, %arg3: memref<1x128xf32, #tpu.memory_space<vmem>>, %arg4: memref<1x128xf32, #tpu.memory_space<vmem>>, %arg5: memref<128x128xf32, #tpu.memory_space<vmem>>, %arg6: memref<128x128xf32, #tpu.memory_space<vmem>>) attributes {dimension_semantics = [#tpu.dimension_semantics<parallel>], iteration_bounds = array<i64: 4>, scalar_prefetch = 0 : i64, scratch_operands = 0 : i64, tpu.core_type = #tpu.core_type<tc>, window_params = [{transform_indices = @transform_0, window_bounds = array<i64: 128, 128>}, {pipeline_mode = #tpu.pipeline_mode<synchronous>, transform_indices = @transform_1, window_bounds = array<i64: 2, 128>}, {pipeline_mode = #tpu.pipeline_mode<synchronous>, transform_indices = @transform_2, window_bounds = array<i64: 1, 128>}, {pipeline_mode = #tpu.pipeline_mode<synchronous>, transform_indices = @transform_3, window_bounds = array<i64: 1, 128>}, {transform_indices = @transform_4, window_bounds = array<i64: 128, 128>}, {transform_indices = @transform_5, window_bounds = array<i64: 128, 128>}]} {
    %c0 = arith.constant 0 : index
    %c0_0 = arith.constant 0 : index
    %0 = vector.load %arg2[%c0, %c0_0] : memref<2x128xf32, #tpu.memory_space<vmem>>, vector<1x128xf32>
    %cst = arith.constant 0.001953125 : f32
    %1 = vector.broadcast %cst : f32 to vector<1x128xf32>
    %2 = arith.mulf %0, %1 : vector<1x128xf32>
    %c1 = arith.constant 1 : index
    %c0_1 = arith.constant 0 : index
    %3 = vector.load %arg2[%c1, %c0_1] : memref<2x128xf32, #tpu.memory_space<vmem>>, vector<1x128xf32>
    %cst_2 = arith.constant 0.001953125 : f32
    %4 = vector.broadcast %cst_2 : f32 to vector<1x128xf32>
    %5 = arith.mulf %3, %4 : vector<1x128xf32>
    %6 = arith.mulf %2, %2 : vector<1x128xf32>
    %7 = arith.subf %5, %6 : vector<1x128xf32>
    %cst_3 = arith.constant 0.000000e+00 : f32
    %8 = vector.broadcast %cst_3 : f32 to vector<1x128xf32>
    %9 = arith.maximumf %7, %8 : vector<1x128xf32>
    %c0_4 = arith.constant 0 : index
    %c0_5 = arith.constant 0 : index
    %10 = vector.load %arg3[%c0_4, %c0_5] : memref<1x128xf32, #tpu.memory_space<vmem>>, vector<1x128xf32>
    %cst_6 = arith.constant 9.99999974E-6 : f32
    %11 = vector.broadcast %cst_6 : f32 to vector<1x128xf32>
    %12 = arith.addf %9, %11 : vector<1x128xf32>
    %13 = math.rsqrt %12 : vector<1x128xf32>
    %14 = arith.mulf %10, %13 : vector<1x128xf32>
    %c0_7 = arith.constant 0 : index
    %c0_8 = arith.constant 0 : index
    %15 = vector.load %arg4[%c0_7, %c0_8] : memref<1x128xf32, #tpu.memory_space<vmem>>, vector<1x128xf32>
    %16 = arith.mulf %2, %14 : vector<1x128xf32>
    %17 = arith.subf %15, %16 : vector<1x128xf32>
    %c0_9 = arith.constant 0 : index
    %c0_10 = arith.constant 0 : index
    %18 = vector.load %arg1[%c0_9, %c0_10] : memref<128x128xf32, #tpu.memory_space<vmem>>, vector<128x128xf32>
    %19 = vector.broadcast %14 : vector<1x128xf32> to vector<128x128xf32>
    %20 = arith.mulf %18, %19 : vector<128x128xf32>
    %21 = vector.broadcast %17 : vector<1x128xf32> to vector<128x128xf32>
    %22 = arith.addf %20, %21 : vector<128x128xf32>
    %c0_11 = arith.constant 0 : index
    %c0_12 = arith.constant 0 : index
    %23 = vector.load %arg5[%c0_11, %c0_12] : memref<128x128xf32, #tpu.memory_space<vmem>>, vector<128x128xf32>
    %24 = arith.addf %22, %23 : vector<128x128xf32>
    %cst_13 = arith.constant 0.000000e+00 : f32
    %25 = vector.broadcast %cst_13 : f32 to vector<128x128xf32>
    %26 = arith.maximumf %24, %25 : vector<128x128xf32>
    %c0_14 = arith.constant 0 : index
    %c0_15 = arith.constant 0 : index
    %27 = vector.load %arg6[%c0_14, %c0_15] : memref<128x128xf32, #tpu.memory_space<vmem>>, vector<128x128xf32>
    tpu.vector_store %arg6[%c0_14, %c0_15], %26 {strides = array<i32>} : memref<128x128xf32, #tpu.memory_space<vmem>>, vector<128x128xf32>,
    return
  }
  func.func @transform_0(%arg0: i32) -> (i32, i32) {
    %c0_i32 = arith.constant 0 : i32
    %c0_i32_0 = arith.constant 0 : i32
    return %arg0, %c0_i32 : i32, i32
  }
  func.func @transform_1(%arg0: i32) -> (i32, i32) {
    %c0_i32 = arith.constant 0 : i32
    %c0_i32_0 = arith.constant 0 : i32
    %c0_i32_1 = arith.constant 0 : i32
    return %c0_i32, %c0_i32_0 : i32, i32
  }
  func.func @transform_2(%arg0: i32) -> (i32, i32) {
    %c0_i32 = arith.constant 0 : i32
    %c0_i32_0 = arith.constant 0 : i32
    %c0_i32_1 = arith.constant 0 : i32
    return %c0_i32, %c0_i32_0 : i32, i32
  }
  func.func @transform_3(%arg0: i32) -> (i32, i32) {
    %c0_i32 = arith.constant 0 : i32
    %c0_i32_0 = arith.constant 0 : i32
    %c0_i32_1 = arith.constant 0 : i32
    return %c0_i32, %c0_i32_0 : i32, i32
  }
  func.func @transform_4(%arg0: i32) -> (i32, i32) {
    %c0_i32 = arith.constant 0 : i32
    %c0_i32_0 = arith.constant 0 : i32
    return %arg0, %c0_i32 : i32, i32
  }
  func.func @transform_5(%arg0: i32) -> (i32, i32) {
    %c0_i32 = arith.constant 0 : i32
    %c0_i32_0 = arith.constant 0 : i32
    return %arg0, %c0_i32 : i32, i32
  }
}

</mosaic_0001>

<llo_original>
// kernel: _lambda_.5
$region0: #{_lambda_.5}
  #allocation0 [shape = 'u32[]', space=smem, size = 0x4, offset = 0x4, fixed_abs, tag = 'smem constant byte address 0x4 - core index']
  #allocation1 [shape = 'u32[144,128]{1,0:T(1,128)}', space=vmem, size = 0x12000, scoped, tag = 'internal scratch']
  %s0 = inlined_call_operand.vmem [shape: f32[512,128], index: 0, kind: input, shape index: {}]
  %s1 = inlined_call_operand.vmem [shape: f32[2,128], index: 1, kind: input, shape index: {}]
  %s2 = inlined_call_operand.vmem [shape: f32[1,128], index: 2, kind: input, shape index: {}]
  %s3 = inlined_call_operand.vmem [shape: f32[1,128], index: 3, kind: input, shape index: {}]
  %s4 = inlined_call_operand.vmem [shape: f32[512,128], index: 4, kind: output, shape index: {}]
  %s5 = sld [smem:[#allocation0]]
  $region49: #{_lambda_.5} parent=0
    _
  %s7 = ssub.s32 1, %s5
  %s8 = scalar_select 0, %s7, %s5
  loop: start=0, step=1, limit=6
  $region2: #{_lambda_.5} parent=0 // loop_pre_header
    _
  $region3: #{_lambda_.5} parent=0 // loop_header
    %s10 = sphi 0, %s14
    %p11 = scmp.ge.s32.totalorder %s10, 6
    %s20 = sphi 0, %s22
    %s23 = sphi 0, %s20
    %s24 = sphi 0, %s23
    %s40 = sphi 0, %s24
    %s44 = sphi 0, %s44
    %s46 = sphi 0, %s44
    %s47 = sphi 0, %s46
    %s61 = sphi 0, %s47
    %s65 = sphi 0, %s65
    %s67 = sphi 0, %s65
    %s68 = sphi 0, %s67
    %s82 = sphi 0, %s68
    %s86 = sphi 0, %s86
    %s88 = sphi 0, %s86
    %s89 = sphi 0, %s88
    %s103 = sphi 0, %s89
    %s109 = sphi 0, %s111
    %s112 = sphi 0, %s109
    %s113 = sphi 0, %s112
    %s129 = sphi 0, %s113
  $region4: #{_lambda_.5} parent=0 // loop_header_branch
    %13 = sbr.rel (%p11) target = $region8
  $region5: #{_lambda_.5} parent=0 // loop_body
    %s15 = ssub.s32 %s10, 1
    %s16 = ssub.s32 %s10, 2
    %s17 = sadd.s32 %s10, 1
    %s18 = ssub.s32 %s10, %s17
    %p19 = scmp.eq.s32.totalorder %s18, 0
    %s21 = sadd.s32 %s20, 1
    %s22 = scalar_select %p19, %s20, %s21
    %p25 = pneg %p19
    %p26 = scmp.eq.s32.totalorder %s10, 3
    %p27 = por %p25, %p26
    %p28 = scmp.ne.s32.totalorder %s20, %s23
    %p29 = scmp.eq.s32.totalorder %s10, 0
    %p30 = por %p28, %p29
    %p31 = scmp.ne.s32.totalorder %s20, %s23
    %p32 = scmp.eq.s32.totalorder %s15, 3
    %p33 = por %p31, %p32
    %p34 = scmp.ne.s32.totalorder %s23, %s24
    %p35 = scmp.eq.s32.totalorder %s15, 0
    %p36 = por %p34, %p35
    %p37 = scmp.ne.s32.totalorder %s23, %s24
    %p38 = scmp.eq.s32.totalorder %s16, 3
    %p39 = por %p37, %p38
    %p41 = scmp.ne.s32.totalorder %s24, %s40
    %p42 = scmp.eq.s32.totalorder %s16, 0
    %p43 = por %p41, %p42
    %s45 = sadd.s32 %s44, 1
    %p48 = scmp.eq.s32.totalorder %s10, 3
    %p49 = scmp.ne.s32.totalorder %s44, %s46
    %p50 = scmp.eq.s32.totalorder %s10, 0
    %p51 = por %p49, %p50
    %p52 = scmp.ne.s32.totalorder %s44, %s46
    %p53 = scmp.eq.s32.totalorder %s15, 3
    %p54 = por %p52, %p53
    %p55 = scmp.ne.s32.totalorder %s46, %s47
    %p56 = scmp.eq.s32.totalorder %s15, 0
    %p57 = por %p55, %p56
    %p58 = scmp.ne.s32.totalorder %s46, %s47
    %p59 = scmp.eq.s32.totalorder %s16, 3
    %p60 = por %p58, %p59
    %p62 = scmp.ne.s32.totalorder %s47, %s61
    %p63 = scmp.eq.s32.totalorder %s16, 0
    %p64 = por %p62, %p63
    %s66 = sadd.s32 %s65, 1
    %p69 = scmp.eq.s32.totalorder %s10, 3
    %p70 = scmp.ne.s32.totalorder %s65, %s67
    %p71 = scmp.eq.s32.totalorder %s10, 0
    %p72 = por %p70, %p71
    %p73 = scmp.ne.s32.totalorder %s65, %s67
    %p74 = scmp.eq.s32.totalorder %s15, 3
    %p75 = por %p73, %p74
    %p76 = scmp.ne.s32.totalorder %s67, %s68
    %p77 = scmp.eq.s32.totalorder %s15, 0
    %p78 = por %p76, %p77
    %p79 = scmp.ne.s32.totalorder %s67, %s68
    %p80 = scmp.eq.s32.totalorder %s16, 3
    %p81 = por %p79, %p80
    %p83 = scmp.ne.s32.totalorder %s68, %s82
    %p84 = scmp.eq.s32.totalorder %s16, 0
    %p85 = por %p83, %p84
    %s87 = sadd.s32 %s86, 1
    %p90 = scmp.eq.s32.totalorder %s10, 3
    %p91 = scmp.ne.s32.totalorder %s86, %s88
    %p92 = scmp.eq.s32.totalorder %s10, 0
    %p93 = por %p91, %p92
    %p94 = scmp.ne.s32.totalorder %s86, %s88
    %p95 = scmp.eq.s32.totalorder %s15, 3
    %p96 = por %p94, %p95
    %p97 = scmp.ne.s32.totalorder %s88, %s89
    %p98 = scmp.eq.s32.totalorder %s15, 0
    %p99 = por %p97, %p98
    %p100 = scmp.ne.s32.totalorder %s88, %s89
    %p101 = scmp.eq.s32.totalorder %s16, 3
    %p102 = por %p100, %p101
    %p104 = scmp.ne.s32.totalorder %s89, %s103
    %p105 = scmp.eq.s32.totalorder %s16, 0
    %p106 = por %p104, %p105
    %s107 = ssub.s32 %s10, %s17
    %p108 = scmp.eq.s32.totalorder %s107, 0
    %s110 = sadd.s32 %s109, 1
    %s111 = scalar_select %p108, %s109, %s110
    %p114 = pneg %p108
    %p115 = scmp.eq.s32.totalorder %s10, 3
    %p116 = por %p114, %p115
    %p117 = scmp.ne.s32.totalorder %s109, %s112
    %p118 = scmp.eq.s32.totalorder %s10, 0
    %p119 = por %p117, %p118
    %p120 = scmp.ne.s32.totalorder %s109, %s112
    %p121 = scmp.eq.s32.totalorder %s15, 3
    %p122 = por %p120, %p121
    %p123 = scmp.ne.s32.totalorder %s112, %s113
    %p124 = scmp.eq.s32.totalorder %s15, 0
    %p125 = por %p123, %p124
    %p126 = scmp.ne.s32.totalorder %s112, %s113
    %p127 = scmp.eq.s32.totalorder %s16, 3
    %p128 = por %p126, %p127
    %p130 = scmp.ne.s32.totalorder %s113, %s129
    %p131 = scmp.eq.s32.totalorder %s16, 0
    %p132 = por %p130, %p131
    %p133 = scmp.le.s32.totalorder 1, %s10
    %p134 = scmp.lt.s32.totalorder %s10, 5
    %p135 = pnand %p133, %p134
    %p136 = pneg %p135
    // Predicated region
    $region9: #{_lambda_.5} parent=5 // pred_check
      _
    $region10: #{_lambda_.5} parent=5 // pred_check_branch
      %138 = sbr.rel (%p135) target = $region12
    $region11: #{_lambda_.5} parent=5 // pred_region
      %s139 = ssub.s32 %s10, 1
      // Predicated region
      $region13: #{_lambda_.5} parent=11 // pred_check
        %p140 = pneg %p57
      $region14: #{_lambda_.5} parent=11 // pred_check_branch
        %142 = sbr.rel (%p140) target = $region16
      $region15: #{_lambda_.5} parent=11 // pred_region
        _
      $region16: #{_lambda_.5} parent=11 // pred_fallthru
        _
      // Predicated region
      $region17: #{_lambda_.5} parent=11 // pred_check
        %p143 = pneg %p78
      $region18: #{_lambda_.5} parent=11 // pred_check_branch
        %145 = sbr.rel (%p143) target = $region20
      $region19: #{_lambda_.5} parent=11 // pred_region
        _
      $region20: #{_lambda_.5} parent=11 // pred_fallthru
        _
      // Predicated region
      $region21: #{_lambda_.5} parent=11 // pred_check
        %p146 = pneg %p99
      $region22: #{_lambda_.5} parent=11 // pred_check_branch
        %148 = sbr.rel (%p146) target = $region24
      $region23: #{_lambda_.5} parent=11 // pred_region
        _
      $region24: #{_lambda_.5} parent=11 // pred_fallthru
        _
    $region12: #{_lambda_.5} parent=5 // pred_fallthru
      _
    %p149 = scmp.lt.s32.totalorder %s10, 4
    // Predicated region
    $region25: #{_lambda_.5} parent=5 // pred_check
      %p150 = pneg %p149
    $region26: #{_lambda_.5} parent=5 // pred_check_branch
      %152 = sbr.rel (%p150) target = $region28
    $region27: #{_lambda_.5} parent=5 // pred_region
      // Predicated region
      $region29: #{_lambda_.5} parent=27 // pred_check
        %p153 = pneg %p30
      $region30: #{_lambda_.5} parent=27 // pred_check_branch
        %155 = sbr.rel (%p153) target = $region32
      $region31: #{_lambda_.5} parent=27 // pred_region
        %s156 = smul.u32 16, %s10
        %p157 = scmp.lt.s32.totalorder %s156, 63
        %s158 = scalar_select %p157, %s156, 63
        %s159 = smul.addr %s158, 8
        %s160 = scalar_lea.vmem %s0, %s159
        %s161 = smul.u32 16, %s10
      $region32: #{_lambda_.5} parent=27 // pred_fallthru
        _
    $region28: #{_lambda_.5} parent=5 // pred_fallthru
      _
    %p162 = scmp.le.s32.totalorder 1, %s10
    %p163 = scmp.lt.s32.totalorder %s10, 5
    %p164 = pnand %p162, %p163
    %p165 = pneg %p164
    // Predicated region
    $region33: #{_lambda_.5} parent=5 // pred_check
      _
    $region34: #{_lambda_.5} parent=5 // pred_check_branch
      %167 = sbr.rel (%p164) target = $region36
    $region35: #{_lambda_.5} parent=5 // pred_region
      %s168 = ssub.s32 %s10, 1
      %s169 = smul.u32 16, %s15
      %p170 = scmp.lt.s32.totalorder %s169, 63
      %s171 = scalar_select %p170, %s169, 63
      %s172 = smul.addr %s171, 8
      %s173 = scalar_lea.vmem %s0, %s172
      %p174 = pneg %p36
      %p175 = pneg %p33
      %p176 = pneg %p57
      %p177 = pneg %p54
      %p178 = pneg %p78
      %p179 = pneg %p75
      %p180 = pneg %p99
      %p181 = pneg %p96
      %p182 = pneg %p125
      %p183 = pneg %p122
      %s184 = smul.u32 16, %s15
      %p185 = scmp.lt.s32.totalorder %s184, 63
      %s186 = scalar_select %p185, %s184, 63
      %s187 = smul.addr %s186, 8
      %s188 = scalar_lea.vmem %s4, %s187
      %s189 = smul.u32 16, %s15
      %p190 = scmp.lt.s32.totalorder %s189, 63
      %s191 = scalar_select %p190, %s189, 63
      %s192 = smul.addr %s191, 8
      %s193 = scalar_lea.vmem %s0, %s192
      %s194 = smul.u32 16, %s15
      %s195 = smul.u32 16, %s15
      %p196 = scmp.lt.s32.totalorder %s195, 63
      %s197 = scalar_select %p196, %s195, 63
      %s198 = smul.addr %s197, 8
      %s199 = scalar_lea.vmem %s4, %s198
      %s200 = smul.u32 16, %s15
      %v201 = vld [vmem:[%s1] sm:$0x1]
      %v202 = vmul.f32 %v201, 0.001953125
      %v203 = vld [vmem:[%s1 + $0x1] sm:$0x1]
      %v204 = vmul.f32 %v203, 0.001953125
      %v205 = vmul.f32 %v202, %v202
      %v206 = vsub.f32 %v204, %v205
      %v207 = vmax.f32 %v206, 0.0
      %v208 = vld [vmem:[%s2] sm:$0x1]
      %v209 = vadd.f32 %v207, 1e-05
      %v210 = vrsqrt.pop %v209
      %v211 = vmul.f32 %v208, %v210
      %v212 = vld [vmem:[%s3] sm:$0x1]
      %v213 = vmul.f32 %v202, %v211
      %v214 = vsub.f32 %v212, %v213
      %v215 = vld [vmem:[%s193] sm:$0xff]
      %v216 = vld [vmem:[%s193 + $0x8] sm:$0xff]
      %v217 = vld [vmem:[%s193 + $0x10] sm:$0xff]
      %v218 = vld [vmem:[%s193 + $0x18] sm:$0xff]
      %v219 = vld [vmem:[%s193 + $0x20] sm:$0xff]
      %v220 = vld [vmem:[%s193 + $0x28] sm:$0xff]
      %v221 = vld [vmem:[%s193 + $0x30] sm:$0xff]
      %v222 = vld [vmem:[%s193 + $0x38] sm:$0xff]
      %v223 = vld [vmem:[%s193 + $0x40] sm:$0xff]
      %v224 = vld [vmem:[%s193 + $0x48] sm:$0xff]
      %v225 = vld [vmem:[%s193 + $0x50] sm:$0xff]
      %v226 = vld [vmem:[%s193 + $0x58] sm:$0xff]
      %v227 = vld [vmem:[%s193 + $0x60] sm:$0xff]
      %v228 = vld [vmem:[%s193 + $0x68] sm:$0xff]
      %v229 = vld [vmem:[%s193 + $0x70] sm:$0xff]
      %v230 = vld [vmem:[%s193 + $0x78] sm:$0xff]
      %v232 = vlaneseq
      %v233 = vshrl.u32 %v232, 7
      %v234 = vsub.s32 0, %v233
      %v235 = vrot.slane %v211, %v234
      %v237 = vmul.f32 %v215, %v235
      %v238 = vmul.f32 %v216, %v235
      %v239 = vmul.f32 %v217, %v235
      %v240 = vmul.f32 %v218, %v235
      %v241 = vmul.f32 %v219, %v235
      %v242 = vmul.f32 %v220, %v235
      %v243 = vmul.f32 %v221, %v235
      %v244 = vmul.f32 %v222, %v235
      %v245 = vmul.f32 %v223, %v235
      %v246 = vmul.f32 %v224, %v235
      %v247 = vmul.f32 %v225, %v235
      %v248 = vmul.f32 %v226, %v235
      %v249 = vmul.f32 %v227, %v235
      %v250 = vmul.f32 %v228, %v235
      %v251 = vmul.f32 %v229, %v235
      %v252 = vmul.f32 %v230, %v235
      %v254 = vlaneseq
      %v255 = vshrl.u32 %v254, 7
      %v256 = vsub.s32 0, %v255
      %v257 = vrot.slane %v214, %v256
      %v259 = vadd.f32 %v237, %v257
      %v260 = vadd.f32 %v238, %v257
      %v261 = vadd.f32 %v239, %v257
      %v262 = vadd.f32 %v240, %v257
      %v263 = vadd.f32 %v241, %v257
      %v264 = vadd.f32 %v242, %v257
      %v265 = vadd.f32 %v243, %v257
      %v266 = vadd.f32 %v244, %v257
      %v267 = vadd.f32 %v245, %v257
      %v268 = vadd.f32 %v246, %v257
      %v269 = vadd.f32 %v247, %v257
      %v270 = vadd.f32 %v248, %v257
      %v271 = vadd.f32 %v249, %v257
      %v272 = vadd.f32 %v250, %v257
      %v273 = vadd.f32 %v251, %v257
      %v274 = vadd.f32 %v252, %v257
      %v275 = vmax.f32 %v259, 0.0
      %v276 = vmax.f32 %v260, 0.0
      %v277 = vmax.f32 %v261, 0.0
      %v278 = vmax.f32 %v262, 0.0
      %v279 = vmax.f32 %v263, 0.0
      %v280 = vmax.f32 %v264, 0.0
      %v281 = vmax.f32 %v265, 0.0
      %v282 = vmax.f32 %v266, 0.0
      %v283 = vmax.f32 %v267, 0.0
      %v284 = vmax.f32 %v268, 0.0
      %v285 = vmax.f32 %v269, 0.0
      %v286 = vmax.f32 %v270, 0.0
      %v287 = vmax.f32 %v271, 0.0
      %v288 = vmax.f32 %v272, 0.0
      %v289 = vmax.f32 %v273, 0.0
      %v290 = vmax.f32 %v274, 0.0
      %291 = vst [vmem:[%s199] sm:$0xff] %v275
      %292 = vst [vmem:[%s199 + $0x8] sm:$0xff] %v276
      %293 = vst [vmem:[%s199 + $0x10] sm:$0xff] %v277
      %294 = vst [vmem:[%s199 + $0x18] sm:$0xff] %v278
      %295 = vst [vmem:[%s199 + $0x20] sm:$0xff] %v279
      %296 = vst [vmem:[%s199 + $0x28] sm:$0xff] %v280
      %297 = vst [vmem:[%s199 + $0x30] sm:$0xff] %v281
      %298 = vst [vmem:[%s199 + $0x38] sm:$0xff] %v282
      %299 = vst [vmem:[%s199 + $0x40] sm:$0xff] %v283
      %300 = vst [vmem:[%s199 + $0x48] sm:$0xff] %v284
      %301 = vst [vmem:[%s199 + $0x50] sm:$0xff] %v285
      %302 = vst [vmem:[%s199 + $0x58] sm:$0xff] %v286
      %303 = vst [vmem:[%s199 + $0x60] sm:$0xff] %v287
      %304 = vst [vmem:[%s199 + $0x68] sm:$0xff] %v288
      %305 = vst [vmem:[%s199 + $0x70] sm:$0xff] %v289
      %306 = vst [vmem:[%s199 + $0x78] sm:$0xff] %v290
      %s307 = smul.u32 16, %s15
      %p308 = scmp.lt.s32.totalorder %s307, 63
      %s309 = scalar_select %p308, %s307, 63
      %s310 = smul.addr %s309, 8
      %s311 = scalar_lea.vmem %s4, %s310
      // Predicated region
      $region37: #{_lambda_.5} parent=35 // pred_check
        %p312 = pneg %p122
      $region38: #{_lambda_.5} parent=35 // pred_check_branch
        %314 = sbr.rel (%p312) target = $region40
      $region39: #{_lambda_.5} parent=35 // pred_region
        %s315 = smul.u32 16, %s15
      $region40: #{_lambda_.5} parent=35 // pred_fallthru
        _
    $region36: #{_lambda_.5} parent=5 // pred_fallthru
      _
    %p316 = scmp.le.s32.totalorder 2, %s10
    // Predicated region
    $region41: #{_lambda_.5} parent=5 // pred_check
      %p317 = pneg %p316
    $region42: #{_lambda_.5} parent=5 // pred_check_branch
      %319 = sbr.rel (%p317) target = $region44
    $region43: #{_lambda_.5} parent=5 // pred_region
      %s320 = ssub.s32 %s10, 2
      // Predicated region
      $region45: #{_lambda_.5} parent=43 // pred_check
        %p321 = pneg %p128
      $region46: #{_lambda_.5} parent=43 // pred_check_branch
        %323 = sbr.rel (%p321) target = $region48
      $region47: #{_lambda_.5} parent=43 // pred_region
        %s324 = smul.u32 16, %s16
        %p325 = scmp.lt.s32.totalorder %s324, 63
        %s326 = scalar_select %p325, %s324, 63
        %s327 = smul.addr %s326, 8
        %s328 = scalar_lea.vmem %s4, %s327
      $region48: #{_lambda_.5} parent=43 // pred_fallthru
        _
    $region44: #{_lambda_.5} parent=5 // pred_fallthru
      _
  $region6: #{_lambda_.5} parent=0 // loop_footer
    %s14 = sadd.s32 1, %s10
  $region7: #{_lambda_.5} parent=0 // loop_footer_branch
    %9 = sbr.rel target = $region3
  $region8: #{_lambda_.5} parent=0 // loop_exit
    _

// kernel: _lambda_.7
$region0: #{_lambda_.7}
  #allocation0 [shape = 'u32[]', space=smem, size = 0x4, offset = 0x4, fixed_abs, tag = 'smem constant byte address 0x4 - core index']
  #allocation1 [shape = 'u32[144,128]{1,0:T(1,128)}', space=vmem, size = 0x12000, scoped, tag = 'internal scratch']
  %s0 = inlined_call_operand.vmem [shape: f32[512,128], index: 0, kind: input, shape index: {}]
  %s1 = inlined_call_operand.vmem [shape: f32[2,128], index: 1, kind: input, shape index: {}]
  %s2 = inlined_call_operand.vmem [shape: f32[1,128], index: 2, kind: input, shape index: {}]
  %s3 = inlined_call_operand.vmem [shape: f32[1,128], index: 3, kind: input, shape index: {}]
  %s4 = inlined_call_operand.vmem [shape: f32[512,128], index: 4, kind: input, shape index: {}]
  %s5 = inlined_call_operand.vmem [shape: f32[512,128], index: 5, kind: output, shape index: {}]
  %s6 = sld [smem:[#allocation0]]
  $region53: #{_lambda_.7} parent=0
    _
  %s8 = ssub.s32 1, %s6
  %s9 = scalar_select 0, %s8, %s6
  loop: start=0, step=1, limit=6
  $region2: #{_lambda_.7} parent=0 // loop_pre_header
    _
  $region3: #{_lambda_.7} parent=0 // loop_header
    %s11 = sphi 0, %s15
    %p12 = scmp.ge.s32.totalorder %s11, 6
    %s21 = sphi 0, %s23
    %s24 = sphi 0, %s21
    %s25 = sphi 0, %s24
    %s41 = sphi 0, %s25
    %s45 = sphi 0, %s45
    %s47 = sphi 0, %s45
    %s48 = sphi 0, %s47
    %s62 = sphi 0, %s48
    %s66 = sphi 0, %s66
    %s68 = sphi 0, %s66
    %s69 = sphi 0, %s68
    %s83 = sphi 0, %s69
    %s87 = sphi 0, %s87
    %s89 = sphi 0, %s87
    %s90 = sphi 0, %s89
    %s104 = sphi 0, %s90
    %s110 = sphi 0, %s112
    %s113 = sphi 0, %s110
    %s114 = sphi 0, %s113
    %s130 = sphi 0, %s114
    %s136 = sphi 0, %s138
    %s139 = sphi 0, %s136
    %s140 = sphi 0, %s139
    %s156 = sphi 0, %s140
  $region4: #{_lambda_.7} parent=0 // loop_header_branch
    %14 = sbr.rel (%p12) target = $region8
  $region5: #{_lambda_.7} parent=0 // loop_body
    %s16 = ssub.s32 %s11, 1
    %s17 = ssub.s32 %s11, 2
    %s18 = sadd.s32 %s11, 1
    %s19 = ssub.s32 %s11, %s18
    %p20 = scmp.eq.s32.totalorder %s19, 0
    %s22 = sadd.s32 %s21, 1
    %s23 = scalar_select %p20, %s21, %s22
    %p26 = pneg %p20
    %p27 = scmp.eq.s32.totalorder %s11, 3
    %p28 = por %p26, %p27
    %p29 = scmp.ne.s32.totalorder %s21, %s24
    %p30 = scmp.eq.s32.totalorder %s11, 0
    %p31 = por %p29, %p30
    %p32 = scmp.ne.s32.totalorder %s21, %s24
    %p33 = scmp.eq.s32.totalorder %s16, 3
    %p34 = por %p32, %p33
    %p35 = scmp.ne.s32.totalorder %s24, %s25
    %p36 = scmp.eq.s32.totalorder %s16, 0
    %p37 = por %p35, %p36
    %p38 = scmp.ne.s32.totalorder %s24, %s25
    %p39 = scmp.eq.s32.totalorder %s17, 3
    %p40 = por %p38, %p39
    %p42 = scmp.ne.s32.totalorder %s25, %s41
    %p43 = scmp.eq.s32.totalorder %s17, 0
    %p44 = por %p42, %p43
    %s46 = sadd.s32 %s45, 1
    %p49 = scmp.eq.s32.totalorder %s11, 3
    %p50 = scmp.ne.s32.totalorder %s45, %s47
    %p51 = scmp.eq.s32.totalorder %s11, 0
    %p52 = por %p50, %p51
    %p53 = scmp.ne.s32.totalorder %s45, %s47
    %p54 = scmp.eq.s32.totalorder %s16, 3
    %p55 = por %p53, %p54
    %p56 = scmp.ne.s32.totalorder %s47, %s48
    %p57 = scmp.eq.s32.totalorder %s16, 0
    %p58 = por %p56, %p57
    %p59 = scmp.ne.s32.totalorder %s47, %s48
    %p60 = scmp.eq.s32.totalorder %s17, 3
    %p61 = por %p59, %p60
    %p63 = scmp.ne.s32.totalorder %s48, %s62
    %p64 = scmp.eq.s32.totalorder %s17, 0
    %p65 = por %p63, %p64
    %s67 = sadd.s32 %s66, 1
    %p70 = scmp.eq.s32.totalorder %s11, 3
    %p71 = scmp.ne.s32.totalorder %s66, %s68
    %p72 = scmp.eq.s32.totalorder %s11, 0
    %p73 = por %p71, %p72
    %p74 = scmp.ne.s32.totalorder %s66, %s68
    %p75 = scmp.eq.s32.totalorder %s16, 3
    %p76 = por %p74, %p75
    %p77 = scmp.ne.s32.totalorder %s68, %s69
    %p78 = scmp.eq.s32.totalorder %s16, 0
    %p79 = por %p77, %p78
    %p80 = scmp.ne.s32.totalorder %s68, %s69
    %p81 = scmp.eq.s32.totalorder %s17, 3
    %p82 = por %p80, %p81
    %p84 = scmp.ne.s32.totalorder %s69, %s83
    %p85 = scmp.eq.s32.totalorder %s17, 0
    %p86 = por %p84, %p85
    %s88 = sadd.s32 %s87, 1
    %p91 = scmp.eq.s32.totalorder %s11, 3
    %p92 = scmp.ne.s32.totalorder %s87, %s89
    %p93 = scmp.eq.s32.totalorder %s11, 0
    %p94 = por %p92, %p93
    %p95 = scmp.ne.s32.totalorder %s87, %s89
    %p96 = scmp.eq.s32.totalorder %s16, 3
    %p97 = por %p95, %p96
    %p98 = scmp.ne.s32.totalorder %s89, %s90
    %p99 = scmp.eq.s32.totalorder %s16, 0
    %p100 = por %p98, %p99
    %p101 = scmp.ne.s32.totalorder %s89, %s90
    %p102 = scmp.eq.s32.totalorder %s17, 3
    %p103 = por %p101, %p102
    %p105 = scmp.ne.s32.totalorder %s90, %s104
    %p106 = scmp.eq.s32.totalorder %s17, 0
    %p107 = por %p105, %p106
    %s108 = ssub.s32 %s11, %s18
    %p109 = scmp.eq.s32.totalorder %s108, 0
    %s111 = sadd.s32 %s110, 1
    %s112 = scalar_select %p109, %s110, %s111
    %p115 = pneg %p109
    %p116 = scmp.eq.s32.totalorder %s11, 3
    %p117 = por %p115, %p116
    %p118 = scmp.ne.s32.totalorder %s110, %s113
    %p119 = scmp.eq.s32.totalorder %s11, 0
    %p120 = por %p118, %p119
    %p121 = scmp.ne.s32.totalorder %s110, %s113
    %p122 = scmp.eq.s32.totalorder %s16, 3
    %p123 = por %p121, %p122
    %p124 = scmp.ne.s32.totalorder %s113, %s114
    %p125 = scmp.eq.s32.totalorder %s16, 0
    %p126 = por %p124, %p125
    %p127 = scmp.ne.s32.totalorder %s113, %s114
    %p128 = scmp.eq.s32.totalorder %s17, 3
    %p129 = por %p127, %p128
    %p131 = scmp.ne.s32.totalorder %s114, %s130
    %p132 = scmp.eq.s32.totalorder %s17, 0
    %p133 = por %p131, %p132
    %s134 = ssub.s32 %s11, %s18
    %p135 = scmp.eq.s32.totalorder %s134, 0
    %s137 = sadd.s32 %s136, 1
    %s138 = scalar_select %p135, %s136, %s137
    %p141 = pneg %p135
    %p142 = scmp.eq.s32.totalorder %s11, 3
    %p143 = por %p141, %p142
    %p144 = scmp.ne.s32.totalorder %s136, %s139
    %p145 = scmp.eq.s32.totalorder %s11, 0
    %p146 = por %p144, %p145
    %p147 = scmp.ne.s32.totalorder %s136, %s139
    %p148 = scmp.eq.s32.totalorder %s16, 3
    %p149 = por %p147, %p148
    %p150 = scmp.ne.s32.totalorder %s139, %s140
    %p151 = scmp.eq.s32.totalorder %s16, 0
    %p152 = por %p150, %p151
    %p153 = scmp.ne.s32.totalorder %s139, %s140
    %p154 = scmp.eq.s32.totalorder %s17, 3
    %p155 = por %p153, %p154
    %p157 = scmp.ne.s32.totalorder %s140, %s156
    %p158 = scmp.eq.s32.totalorder %s17, 0
    %p159 = por %p157, %p158
    %p160 = scmp.le.s32.totalorder 1, %s11
    %p161 = scmp.lt.s32.totalorder %s11, 5
    %p162 = pnand %p160, %p161
    %p163 = pneg %p162
    // Predicated region
    $region9: #{_lambda_.7} parent=5 // pred_check
      _
    $region10: #{_lambda_.7} parent=5 // pred_check_branch
      %165 = sbr.rel (%p162) target = $region12
    $region11: #{_lambda_.7} parent=5 // pred_region
      %s166 = ssub.s32 %s11, 1
      // Predicated region
      $region13: #{_lambda_.7} parent=11 // pred_check
        %p167 = pneg %p58
      $region14: #{_lambda_.7} parent=11 // pred_check_branch
        %169 = sbr.rel (%p167) target = $region16
      $region15: #{_lambda_.7} parent=11 // pred_region
        _
      $region16: #{_lambda_.7} parent=11 // pred_fallthru
        _
      // Predicated region
      $region17: #{_lambda_.7} parent=11 // pred_check
        %p170 = pneg %p79
      $region18: #{_lambda_.7} parent=11 // pred_check_branch
        %172 = sbr.rel (%p170) target = $region20
      $region19: #{_lambda_.7} parent=11 // pred_region
        _
      $region20: #{_lambda_.7} parent=11 // pred_fallthru
        _
      // Predicated region
      $region21: #{_lambda_.7} parent=11 // pred_check
        %p173 = pneg %p100
      $region22: #{_lambda_.7} parent=11 // pred_check_branch
        %175 = sbr.rel (%p173) target = $region24
      $region23: #{_lambda_.7} parent=11 // pred_region
        _
      $region24: #{_lambda_.7} parent=11 // pred_fallthru
        _
    $region12: #{_lambda_.7} parent=5 // pred_fallthru
      _
    %p176 = scmp.lt.s32.totalorder %s11, 4
    // Predicated region
    $region25: #{_lambda_.7} parent=5 // pred_check
      %p177 = pneg %p176
    $region26: #{_lambda_.7} parent=5 // pred_check_branch
      %179 = sbr.rel (%p177) target = $region28
    $region27: #{_lambda_.7} parent=5 // pred_region
      // Predicated region
      $region29: #{_lambda_.7} parent=27 // pred_check
        %p180 = pneg %p31
      $region30: #{_lambda_.7} parent=27 // pred_check_branch
        %182 = sbr.rel (%p180) target = $region32
      $region31: #{_lambda_.7} parent=27 // pred_region
        %s183 = smul.u32 16, %s11
        %p184 = scmp.lt.s32.totalorder %s183, 63
        %s185 = scalar_select %p184, %s183, 63
        %s186 = smul.addr %s185, 8
        %s187 = scalar_lea.vmem %s0, %s186
        %s188 = smul.u32 16, %s11
      $region32: #{_lambda_.7} parent=27 // pred_fallthru
        _
      // Predicated region
      $region33: #{_lambda_.7} parent=27 // pred_check
        %p189 = pneg %p120
      $region34: #{_lambda_.7} parent=27 // pred_check_branch
        %191 = sbr.rel (%p189) target = $region36
      $region35: #{_lambda_.7} parent=27 // pred_region
        %s192 = smul.u32 16, %s11
        %p193 = scmp.lt.s32.totalorder %s192, 63
        %s194 = scalar_select %p193, %s192, 63
        %s195 = smul.addr %s194, 8
        %s196 = scalar_lea.vmem %s4, %s195
        %s197 = smul.u32 16, %s11
      $region36: #{_lambda_.7} parent=27 // pred_fallthru
        _
    $region28: #{_lambda_.7} parent=5 // pred_fallthru
      _
    %p198 = scmp.le.s32.totalorder 1, %s11
    %p199 = scmp.lt.s32.totalorder %s11, 5
    %p200 = pnand %p198, %p199
    %p201 = pneg %p200
    // Predicated region
    $region37: #{_lambda_.7} parent=5 // pred_check
      _
    $region38: #{_lambda_.7} parent=5 // pred_check_branch
      %203 = sbr.rel (%p200) target = $region40
    $region39: #{_lambda_.7} parent=5 // pred_region
      %s204 = ssub.s32 %s11, 1
      %s205 = smul.u32 16, %s16
      %p206 = scmp.lt.s32.totalorder %s205, 63
      %s207 = scalar_select %p206, %s205, 63
      %s208 = smul.addr %s207, 8
      %s209 = scalar_lea.vmem %s0, %s208
      %p210 = pneg %p37
      %p211 = pneg %p34
      %p212 = pneg %p58
      %p213 = pneg %p55
      %p214 = pneg %p79
      %p215 = pneg %p76
      %p216 = pneg %p100
      %p217 = pneg %p97
      %s218 = smul.u32 16, %s16
      %p219 = scmp.lt.s32.totalorder %s218, 63
      %s220 = scalar_select %p219, %s218, 63
      %s221 = smul.addr %s220, 8
      %s222 = scalar_lea.vmem %s4, %s221
      %p223 = pneg %p126
      %p224 = pneg %p123
      %p225 = pneg %p152
      %p226 = pneg %p149
      %s227 = smul.u32 16, %s16
      %p228 = scmp.lt.s32.totalorder %s227, 63
      %s229 = scalar_select %p228, %s227, 63
      %s230 = smul.addr %s229, 8
      %s231 = scalar_lea.vmem %s5, %s230
      %s232 = smul.u32 16, %s16
      %p233 = scmp.lt.s32.totalorder %s232, 63
      %s234 = scalar_select %p233, %s232, 63
      %s235 = smul.addr %s234, 8
      %s236 = scalar_lea.vmem %s0, %s235
      %s237 = smul.u32 16, %s16
      %s238 = smul.u32 16, %s16
      %p239 = scmp.lt.s32.totalorder %s238, 63
      %s240 = scalar_select %p239, %s238, 63
      %s241 = smul.addr %s240, 8
      %s242 = scalar_lea.vmem %s4, %s241
      %s243 = smul.u32 16, %s16
      %s244 = smul.u32 16, %s16
      %p245 = scmp.lt.s32.totalorder %s244, 63
      %s246 = scalar_select %p245, %s244, 63
      %s247 = smul.addr %s246, 8
      %s248 = scalar_lea.vmem %s5, %s247
      %s249 = smul.u32 16, %s16
      %v250 = vld [vmem:[%s1] sm:$0x1]
      %v251 = vmul.f32 %v250, 0.001953125
      %v252 = vld [vmem:[%s1 + $0x1] sm:$0x1]
      %v253 = vmul.f32 %v252, 0.001953125
      %v254 = vmul.f32 %v251, %v251
      %v255 = vsub.f32 %v253, %v254
      %v256 = vmax.f32 %v255, 0.0
      %v257 = vld [vmem:[%s2] sm:$0x1]
      %v258 = vadd.f32 %v256, 1e-05
      %v259 = vrsqrt.pop %v258
      %v260 = vmul.f32 %v257, %v259
      %v261 = vld [vmem:[%s3] sm:$0x1]
      %v262 = vmul.f32 %v251, %v260
      %v263 = vsub.f32 %v261, %v262
      %v264 = vld [vmem:[%s236] sm:$0xff]
      %v265 = vld [vmem:[%s236 + $0x8] sm:$0xff]
      %v266 = vld [vmem:[%s236 + $0x10] sm:$0xff]
      %v267 = vld [vmem:[%s236 + $0x18] sm:$0xff]
      %v268 = vld [vmem:[%s236 + $0x20] sm:$0xff]
      %v269 = vld [vmem:[%s236 + $0x28] sm:$0xff]
      %v270 = vld [vmem:[%s236 + $0x30] sm:$0xff]
      %v271 = vld [vmem:[%s236 + $0x38] sm:$0xff]
      %v272 = vld [vmem:[%s236 + $0x40] sm:$0xff]
      %v273 = vld [vmem:[%s236 + $0x48] sm:$0xff]
      %v274 = vld [vmem:[%s236 + $0x50] sm:$0xff]
      %v275 = vld [vmem:[%s236 + $0x58] sm:$0xff]
      %v276 = vld [vmem:[%s236 + $0x60] sm:$0xff]
      %v277 = vld [vmem:[%s236 + $0x68] sm:$0xff]
      %v278 = vld [vmem:[%s236 + $0x70] sm:$0xff]
      %v279 = vld [vmem:[%s236 + $0x78] sm:$0xff]
      %v281 = vlaneseq
      %v282 = vshrl.u32 %v281, 7
      %v283 = vsub.s32 0, %v282
      %v284 = vrot.slane %v260, %v283
      %v286 = vmul.f32 %v264, %v284
      %v287 = vmul.f32 %v265, %v284
      %v288 = vmul.f32 %v266, %v284
      %v289 = vmul.f32 %v267, %v284
      %v290 = vmul.f32 %v268, %v284
      %v291 = vmul.f32 %v269, %v284
      %v292 = vmul.f32 %v270, %v284
      %v293 = vmul.f32 %v271, %v284
      %v294 = vmul.f32 %v272, %v284
      %v295 = vmul.f32 %v273, %v284
      %v296 = vmul.f32 %v274, %v284
      %v297 = vmul.f32 %v275, %v284
      %v298 = vmul.f32 %v276, %v284
      %v299 = vmul.f32 %v277, %v284
      %v300 = vmul.f32 %v278, %v284
      %v301 = vmul.f32 %v279, %v284
      %v303 = vlaneseq
      %v304 = vshrl.u32 %v303, 7
      %v305 = vsub.s32 0, %v304
      %v306 = vrot.slane %v263, %v305
      %v308 = vadd.f32 %v286, %v306
      %v309 = vadd.f32 %v287, %v306
      %v310 = vadd.f32 %v288, %v306
      %v311 = vadd.f32 %v289, %v306
      %v312 = vadd.f32 %v290, %v306
      %v313 = vadd.f32 %v291, %v306
      %v314 = vadd.f32 %v292, %v306
      %v315 = vadd.f32 %v293, %v306
      %v316 = vadd.f32 %v294, %v306
      %v317 = vadd.f32 %v295, %v306
      %v318 = vadd.f32 %v296, %v306
      %v319 = vadd.f32 %v297, %v306
      %v320 = vadd.f32 %v298, %v306
      %v321 = vadd.f32 %v299, %v306
      %v322 = vadd.f32 %v300, %v306
      %v323 = vadd.f32 %v301, %v306
      %v324 = vld [vmem:[%s242] sm:$0xff]
      %v325 = vld [vmem:[%s242 + $0x8] sm:$0xff]
      %v326 = vld [vmem:[%s242 + $0x10] sm:$0xff]
      %v327 = vld [vmem:[%s242 + $0x18] sm:$0xff]
      %v328 = vld [vmem:[%s242 + $0x20] sm:$0xff]
      %v329 = vld [vmem:[%s242 + $0x28] sm:$0xff]
      %v330 = vld [vmem:[%s242 + $0x30] sm:$0xff]
      %v331 = vld [vmem:[%s242 + $0x38] sm:$0xff]
      %v332 = vld [vmem:[%s242 + $0x40] sm:$0xff]
      %v333 = vld [vmem:[%s242 + $0x48] sm:$0xff]
      %v334 = vld [vmem:[%s242 + $0x50] sm:$0xff]
      %v335 = vld [vmem:[%s242 + $0x58] sm:$0xff]
      %v336 = vld [vmem:[%s242 + $0x60] sm:$0xff]
      %v337 = vld [vmem:[%s242 + $0x68] sm:$0xff]
      %v338 = vld [vmem:[%s242 + $0x70] sm:$0xff]
      %v339 = vld [vmem:[%s242 + $0x78] sm:$0xff]
      %v340 = vadd.f32 %v308, %v324
      %v341 = vadd.f32 %v309, %v325
      %v342 = vadd.f32 %v310, %v326
      %v343 = vadd.f32 %v311, %v327
      %v344 = vadd.f32 %v312, %v328
      %v345 = vadd.f32 %v313, %v329
      %v346 = vadd.f32 %v314, %v330
      %v347 = vadd.f32 %v315, %v331
      %v348 = vadd.f32 %v316, %v332
      %v349 = vadd.f32 %v317, %v333
      %v350 = vadd.f32 %v318, %v334
      %v351 = vadd.f32 %v319, %v335
      %v352 = vadd.f32 %v320, %v336
      %v353 = vadd.f32 %v321, %v337
      %v354 = vadd.f32 %v322, %v338
      %v355 = vadd.f32 %v323, %v339
      %v356 = vmax.f32 %v340, 0.0
      %v357 = vmax.f32 %v341, 0.0
      %v358 = vmax.f32 %v342, 0.0
      %v359 = vmax.f32 %v343, 0.0
      %v360 = vmax.f32 %v344, 0.0
      %v361 = vmax.f32 %v345, 0.0
      %v362 = vmax.f32 %v346, 0.0
      %v363 = vmax.f32 %v347, 0.0
      %v364 = vmax.f32 %v348, 0.0
      %v365 = vmax.f32 %v349, 0.0
      %v366 = vmax.f32 %v350, 0.0
      %v367 = vmax.f32 %v351, 0.0
      %v368 = vmax.f32 %v352, 0.0
      %v369 = vmax.f32 %v353, 0.0
      %v370 = vmax.f32 %v354, 0.0
      %v371 = vmax.f32 %v355, 0.0
      %372 = vst [vmem:[%s248] sm:$0xff] %v356
      %373 = vst [vmem:[%s248 + $0x8] sm:$0xff] %v357
      %374 = vst [vmem:[%s248 + $0x10] sm:$0xff] %v358
      %375 = vst [vmem:[%s248 + $0x18] sm:$0xff] %v359
      %376 = vst [vmem:[%s248 + $0x20] sm:$0xff] %v360
      %377 = vst [vmem:[%s248 + $0x28] sm:$0xff] %v361
      %378 = vst [vmem:[%s248 + $0x30] sm:$0xff] %v362
      %379 = vst [vmem:[%s248 + $0x38] sm:$0xff] %v363
      %380 = vst [vmem:[%s248 + $0x40] sm:$0xff] %v364
      %381 = vst [vmem:[%s248 + $0x48] sm:$0xff] %v365
      %382 = vst [vmem:[%s248 + $0x50] sm:$0xff] %v366
      %383 = vst [vmem:[%s248 + $0x58] sm:$0xff] %v367
      %384 = vst [vmem:[%s248 + $0x60] sm:$0xff] %v368
      %385 = vst [vmem:[%s248 + $0x68] sm:$0xff] %v369
      %386 = vst [vmem:[%s248 + $0x70] sm:$0xff] %v370
      %387 = vst [vmem:[%s248 + $0x78] sm:$0xff] %v371
      %s388 = smul.u32 16, %s16
      %p389 = scmp.lt.s32.totalorder %s388, 63
      %s390 = scalar_select %p389, %s388, 63
      %s391 = smul.addr %s390, 8
      %s392 = scalar_lea.vmem %s5, %s391
      // Predicated region
      $region41: #{_lambda_.7} parent=39 // pred_check
        %p393 = pneg %p149
      $region42: #{_lambda_.7} parent=39 // pred_check_branch
        %395 = sbr.rel (%p393) target = $region44
      $region43: #{_lambda_.7} parent=39 // pred_region
        %s396 = smul.u32 16, %s16
      $region44: #{_lambda_.7} parent=39 // pred_fallthru
        _
    $region40: #{_lambda_.7} parent=5 // pred_fallthru
      _
    %p397 = scmp.le.s32.totalorder 2, %s11
    // Predicated region
    $region45: #{_lambda_.7} parent=5 // pred_check
      %p398 = pneg %p397
    $region46: #{_lambda_.7} parent=5 // pred_check_branch
      %400 = sbr.rel (%p398) target = $region48
    $region47: #{_lambda_.7} parent=5 // pred_region
      %s401 = ssub.s32 %s11, 2
      // Predicated region
      $region49: #{_lambda_.7} parent=47 // pred_check
        %p402 = pneg %p155
      $region50: #{_lambda_.7} parent=47 // pred_check_branch
        %404 = sbr.rel (%p402) target = $region52
      $region51: #{_lambda_.7} parent=47 // pred_region
        %s405 = smul.u32 16, %s17
        %p406 = scmp.lt.s32.totalorder %s405, 63
        %s407 = scalar_select %p406, %s405, 63
        %s408 = smul.addr %s407, 8
        %s409 = scalar_lea.vmem %s5, %s408
      $region52: #{_lambda_.7} parent=47 // pred_fallthru
        _
    $region48: #{_lambda_.7} parent=5 // pred_fallthru
      _
  $region6: #{_lambda_.7} parent=0 // loop_footer
    %s15 = sadd.s32 1, %s11
  $region7: #{_lambda_.7} parent=0 // loop_footer_branch
    %10 = sbr.rel target = $region3
  $region8: #{_lambda_.7} parent=0 // loop_exit
    _

// kernel: _lambda_.4
$region0: #{_lambda_.4}
  #allocation0 [shape = 'u32[]', space=smem, size = 0x4, offset = 0x4, fixed_abs, tag = 'smem constant byte address 0x4 - core index']
  #allocation1 [shape = 'u32[144,128]{1,0:T(1,128)}', space=vmem, size = 0x12000, scoped, tag = 'internal scratch']
  %s0 = inlined_call_operand.vmem [shape: f32[2,18,18,128], index: 0, kind: input, shape index: {}]
  %s1 = inlined_call_operand.vmem [shape: bf16[9,128,128], index: 1, kind: input, shape index: {}]
  %s2 = inlined_call_operand.vmem [shape: f32[2,16,16,128], index: 2, kind: output, shape index: {0}]
  %s3 = inlined_call_operand.vmem [shape: f32[2,2,2,128], index: 3, kind: output, shape index: {1}]
  %4 = xla_tuple %s2, %s3
  %s5 = sld [smem:[#allocation0]]
  $region49: #{_lambda_.4} parent=0
    _
  %s7 = ssub.s32 1, %s5
  %s8 = scalar_select 0, %s7, %s5
  loop: start=0, step=1, limit=6
  $region2: #{_lambda_.4} parent=0 // loop_pre_header
    _
  $region3: #{_lambda_.4} parent=0 // loop_header
    %s10 = sphi 0, %s14
    %p11 = scmp.ge.s32.totalorder %s10, 6
    %s17 = sphi 0, %s29
    %s18 = sphi 0, %s25
    %s19 = sphi 0, %s17
    %s20 = sphi 0, %s18
    %s21 = sphi 0, %s19
    %s22 = sphi 0, %s20
    %s32 = sphi 0, %s34
    %s35 = sphi 0, %s32
    %s36 = sphi 0, %s35
    %s52 = sphi 0, %s36
    %s56 = sphi 0, %s56
    %s58 = sphi 0, %s56
    %s59 = sphi 0, %s58
    %s73 = sphi 0, %s59
    %s81 = sphi 0, %s83
    %s84 = sphi 0, %s81
    %s85 = sphi 0, %s84
    %s101 = sphi 0, %s85
    %s109 = sphi 0, %s111
    %s112 = sphi 0, %s109
    %s113 = sphi 0, %s112
    %s129 = sphi 0, %s113
  $region4: #{_lambda_.4} parent=0 // loop_header_branch
    %13 = sbr.rel (%p11) target = $region8
  $region5: #{_lambda_.4} parent=0 // loop_body
    %s15 = ssub.s32 %s10, 1
    %s16 = ssub.s32 %s10, 2
    %s23 = sadd.s32 1, %s18
    %p24 = scmp.ge.s32.totalorder %s23, 2
    %s25 = scalar_select %p24, 0, %s23
    %s26 = sadd.s32 1, %s17
    %s27 = scalar_select %p24, %s26, %s17
    %p28 = scmp.ge.s32.totalorder %s27, 2
    %s29 = scalar_select %p28, 0, %s27
    %s30 = ssub.s32 %s17, %s29
    %p31 = scmp.eq.s32.totalorder %s30, 0
    %s33 = sadd.s32 %s32, 1
    %s34 = scalar_select %p31, %s32, %s33
    %p37 = pneg %p31
    %p38 = scmp.eq.s32.totalorder %s10, 3
    %p39 = por %p37, %p38
    %p40 = scmp.ne.s32.totalorder %s32, %s35
    %p41 = scmp.eq.s32.totalorder %s10, 0
    %p42 = por %p40, %p41
    %p43 = scmp.ne.s32.totalorder %s32, %s35
    %p44 = scmp.eq.s32.totalorder %s15, 3
    %p45 = por %p43, %p44
    %p46 = scmp.ne.s32.totalorder %s35, %s36
    %p47 = scmp.eq.s32.totalorder %s15, 0
    %p48 = por %p46, %p47
    %p49 = scmp.ne.s32.totalorder %s35, %s36
    %p50 = scmp.eq.s32.totalorder %s16, 3
    %p51 = por %p49, %p50
    %p53 = scmp.ne.s32.totalorder %s36, %s52
    %p54 = scmp.eq.s32.totalorder %s16, 0
    %p55 = por %p53, %p54
    %s57 = sadd.s32 %s56, 1
    %p60 = scmp.eq.s32.totalorder %s10, 3
    %p61 = scmp.ne.s32.totalorder %s56, %s58
    %p62 = scmp.eq.s32.totalorder %s10, 0
    %p63 = por %p61, %p62
    %p64 = scmp.ne.s32.totalorder %s56, %s58
    %p65 = scmp.eq.s32.totalorder %s15, 3
    %p66 = por %p64, %p65
    %p67 = scmp.ne.s32.totalorder %s58, %s59
    %p68 = scmp.eq.s32.totalorder %s15, 0
    %p69 = por %p67, %p68
    %p70 = scmp.ne.s32.totalorder %s58, %s59
    %p71 = scmp.eq.s32.totalorder %s16, 3
    %p72 = por %p70, %p71
    %p74 = scmp.ne.s32.totalorder %s59, %s73
    %p75 = scmp.eq.s32.totalorder %s16, 0
    %p76 = por %p74, %p75
    %s77 = ssub.s32 %s17, %s29
    %s78 = ssub.s32 %s18, %s25
    %s79 = sor.u32 %s77, %s78
    %p80 = scmp.eq.s32.totalorder %s79, 0
    %s82 = sadd.s32 %s81, 1
    %s83 = scalar_select %p80, %s81, %s82
    %p86 = pneg %p80
    %p87 = scmp.eq.s32.totalorder %s10, 3
    %p88 = por %p86, %p87
    %p89 = scmp.ne.s32.totalorder %s81, %s84
    %p90 = scmp.eq.s32.totalorder %s10, 0
    %p91 = por %p89, %p90
    %p92 = scmp.ne.s32.totalorder %s81, %s84
    %p93 = scmp.eq.s32.totalorder %s15, 3
    %p94 = por %p92, %p93
    %p95 = scmp.ne.s32.totalorder %s84, %s85
    %p96 = scmp.eq.s32.totalorder %s15, 0
    %p97 = por %p95, %p96
    %p98 = scmp.ne.s32.totalorder %s84, %s85
    %p99 = scmp.eq.s32.totalorder %s16, 3
    %p100 = por %p98, %p99
    %p102 = scmp.ne.s32.totalorder %s85, %s101
    %p103 = scmp.eq.s32.totalorder %s16, 0
    %p104 = por %p102, %p103
    %s105 = ssub.s32 %s17, %s29
    %s106 = ssub.s32 %s18, %s25
    %s107 = sor.u32 %s105, %s106
    %p108 = scmp.eq.s32.totalorder %s107, 0
    %s110 = sadd.s32 %s109, 1
    %s111 = scalar_select %p108, %s109, %s110
    %p114 = pneg %p108
    %p115 = scmp.eq.s32.totalorder %s10, 3
    %p116 = por %p114, %p115
    %p117 = scmp.ne.s32.totalorder %s109, %s112
    %p118 = scmp.eq.s32.totalorder %s10, 0
    %p119 = por %p117, %p118
    %p120 = scmp.ne.s32.totalorder %s109, %s112
    %p121 = scmp.eq.s32.totalorder %s15, 3
    %p122 = por %p120, %p121
    %p123 = scmp.ne.s32.totalorder %s112, %s113
    %p124 = scmp.eq.s32.totalorder %s15, 0
    %p125 = por %p123, %p124
    %p126 = scmp.ne.s32.totalorder %s112, %s113
    %p127 = scmp.eq.s32.totalorder %s16, 3
    %p128 = por %p126, %p127
    %p130 = scmp.ne.s32.totalorder %s113, %s129
    %p131 = scmp.eq.s32.totalorder %s16, 0
    %p132 = por %p130, %p131
    %p133 = scmp.le.s32.totalorder 1, %s10
    %p134 = scmp.lt.s32.totalorder %s10, 5
    %p135 = pnand %p133, %p134
    %p136 = pneg %p135
    // Predicated region
    $region9: #{_lambda_.4} parent=5 // pred_check
      _
    $region10: #{_lambda_.4} parent=5 // pred_check_branch
      %138 = sbr.rel (%p135) target = $region12
    $region11: #{_lambda_.4} parent=5 // pred_region
      %s139 = ssub.s32 %s10, 1
      // Predicated region
      $region13: #{_lambda_.4} parent=11 // pred_check
        %p140 = pneg %p69
      $region14: #{_lambda_.4} parent=11 // pred_check_branch
        %142 = sbr.rel (%p140) target = $region16
      $region15: #{_lambda_.4} parent=11 // pred_region
        _
      $region16: #{_lambda_.4} parent=11 // pred_fallthru
        _
    $region12: #{_lambda_.4} parent=5 // pred_fallthru
      _
    %p143 = scmp.lt.s32.totalorder %s10, 4
    // Predicated region
    $region17: #{_lambda_.4} parent=5 // pred_check
      %p144 = pneg %p143
    $region18: #{_lambda_.4} parent=5 // pred_check_branch
      %146 = sbr.rel (%p144) target = $region20
    $region19: #{_lambda_.4} parent=5 // pred_region
      // Predicated region
      $region21: #{_lambda_.4} parent=19 // pred_check
        %p147 = pneg %p42
      $region22: #{_lambda_.4} parent=19 // pred_check_branch
        %149 = sbr.rel (%p147) target = $region24
      $region23: #{_lambda_.4} parent=19 // pred_region
        %p150 = scmp.lt.s32.totalorder %s17, 1
        %s151 = scalar_select %p150, %s17, 1
        %s152 = smul.addr %s151, 54
        %s153 = smul.addr %s152, 8
        %s154 = scalar_lea.vmem %s0, %s153
      $region24: #{_lambda_.4} parent=19 // pred_fallthru
        _
    $region20: #{_lambda_.4} parent=5 // pred_fallthru
      _
    %p155 = scmp.le.s32.totalorder 1, %s10
    %p156 = scmp.lt.s32.totalorder %s10, 5
    %p157 = pnand %p155, %p156
    %p158 = pneg %p157
    // Predicated region
    $region25: #{_lambda_.4} parent=5 // pred_check
      _
    $region26: #{_lambda_.4} parent=5 // pred_check_branch
      %160 = sbr.rel (%p157) target = $region28
    $region27: #{_lambda_.4} parent=5 // pred_region
      %s161 = ssub.s32 %s10, 1
      %p162 = scmp.lt.s32.totalorder %s19, 1
      %s163 = scalar_select %p162, %s19, 1
      %s164 = smul.addr %s163, 54
      %s165 = smul.addr %s164, 8
      %s166 = scalar_lea.vmem %s0, %s165
      %p167 = pneg %p48
      %p168 = pneg %p45
      %p169 = pneg %p69
      %p170 = pneg %p66
      %p171 = pneg %p97
      %p172 = pneg %p94
      %s173 = smul.u32 8, %s20
      %p174 = scmp.lt.s32.totalorder %s19, 1
      %s175 = scalar_select %p174, %s19, 1
      %p176 = scmp.lt.s32.totalorder %s173, 15
      %s177 = scalar_select %p176, %s173, 15
      %s178 = smul.addr %s177, 2
      %s179 = smul.addr %s175, 32
      %s180 = sadd.s32 %s178, %s179
      %s181 = smul.addr %s180, 8
      %s182 = scalar_lea.vmem %s2, %s181
      %p183 = pneg %p125
      %p184 = pneg %p122
      %p185 = scmp.lt.s32.totalorder %s19, 1
      %s186 = scalar_select %p185, %s19, 1
      %p187 = scmp.lt.s32.totalorder %s20, 1
      %s188 = scalar_select %p187, %s20, 1
      %s189 = smul.addr %s186, 2
      %s190 = sadd.s32 %s188, %s189
      %s191 = smul.addr %s190, 2
      %s192 = scalar_lea.vmem %s3, %s191
      %p193 = scmp.lt.s32.totalorder %s19, 1
      %s194 = scalar_select %p193, %s19, 1
      %s195 = smul.addr %s194, 54
      %s196 = smul.addr %s195, 8
      %s197 = scalar_lea.vmem %s0, %s196
      %s198 = smul.u32 8, %s20
      %p199 = scmp.lt.s32.totalorder %s19, 1
      %s200 = scalar_select %p199, %s19, 1
      %p201 = scmp.lt.s32.totalorder %s198, 15
      %s202 = scalar_select %p201, %s198, 15
      %s203 = smul.addr %s202, 2
      %s204 = smul.addr %s200, 32
      %s205 = sadd.s32 %s203, %s204
      %s206 = smul.addr %s205, 8
      %s207 = scalar_lea.vmem %s2, %s206
      %s208 = smul.u32 8, %s20
      %p209 = scmp.lt.s32.totalorder %s19, 1
      %s210 = scalar_select %p209, %s19, 1
      %p211 = scmp.lt.s32.totalorder %s20, 1
      %s212 = scalar_select %p211, %s20, 1
      %s213 = smul.addr %s210, 2
      %s214 = sadd.s32 %s212, %s213
      %s215 = smul.addr %s214, 2
      %s216 = scalar_lea.vmem %s3, %s215
      %s218 = smul.u32 %s20, 8
      %s219 = smul.u32 %s218, 24
      %s220 = scalar_lea.vmem %s197, %s219
      %v221 = vld [vmem:[%s220] sm:$0xff]
      %v222 = vld [vmem:[%s220 + $0x8] sm:$0xff]
      %v223 = vld [vmem:[%s220 + $0x18] sm:$0xff]
      %v224 = vld [vmem:[%s220 + $0x20] sm:$0xff]
      %v225 = vld [vmem:[%s220 + $0x30] sm:$0xff]
      %v226 = vld [vmem:[%s220 + $0x38] sm:$0xff]
      %v227 = vld [vmem:[%s220 + $0x48] sm:$0xff]
      %v228 = vld [vmem:[%s220 + $0x50] sm:$0xff]
      %v229 = vld [vmem:[%s220 + $0x60] sm:$0xff]
      %v230 = vld [vmem:[%s220 + $0x68] sm:$0xff]
      %v231 = vld [vmem:[%s220 + $0x78] sm:$0xff]
      %v232 = vld [vmem:[%s220 + $0x80] sm:$0xff]
      %v233 = vld [vmem:[%s220 + $0x90] sm:$0xff]
      %v234 = vld [vmem:[%s220 + $0x98] sm:$0xff]
      %v235 = vld [vmem:[%s220 + $0xa8] sm:$0xff]
      %v236 = vld [vmem:[%s220 + $0xb0] sm:$0xff]
      %v237 = vpack.c.bf16 %v222, %v221
      %v238 = vpack.c.bf16 %v224, %v223
      %v239 = vpack.c.bf16 %v226, %v225
      %v240 = vpack.c.bf16 %v228, %v227
      %v241 = vpack.c.bf16 %v230, %v229
      %v242 = vpack.c.bf16 %v232, %v231
      %v243 = vpack.c.bf16 %v234, %v233
      %v244 = vpack.c.bf16 %v236, %v235
      %v245 = vld [vmem:[%s1] sm:$0xf]
      %v246 = vld [vmem:[%s1 + $0x4] sm:$0xf]
      %v247 = vld [vmem:[%s1 + $0x8] sm:$0xf]
      %v248 = vld [vmem:[%s1 + $0xc] sm:$0xf]
      %v249 = vld [vmem:[%s1 + $0x10] sm:$0xf]
      %v250 = vld [vmem:[%s1 + $0x14] sm:$0xf]
      %v251 = vld [vmem:[%s1 + $0x18] sm:$0xf]
      %v252 = vld [vmem:[%s1 + $0x1c] sm:$0xf]
      %v253 = vld [vmem:[%s1 + $0x20] sm:$0xf]
      %v254 = vld [vmem:[%s1 + $0x24] sm:$0xf]
      %v255 = vld [vmem:[%s1 + $0x28] sm:$0xf]
      %v256 = vld [vmem:[%s1 + $0x2c] sm:$0xf]
      %v257 = vld [vmem:[%s1 + $0x30] sm:$0xf]
      %v258 = vld [vmem:[%s1 + $0x34] sm:$0xf]
      %v259 = vld [vmem:[%s1 + $0x38] sm:$0xf]
      %v260 = vld [vmem:[%s1 + $0x3c] sm:$0xf]
      %v261 = vld [vmem:[%s220 + $0x1] sm:$0xff]
      %v262 = vld [vmem:[%s220 + $0x9] sm:$0xff]
      %v263 = vld [vmem:[%s220 + $0x19] sm:$0xff]
      %v264 = vld [vmem:[%s220 + $0x21] sm:$0xff]
      %v265 = vld [vmem:[%s220 + $0x31] sm:$0xff]
      %v266 = vld [vmem:[%s220 + $0x39] sm:$0xff]
      %v267 = vld [vmem:[%s220 + $0x49] sm:$0xff]
      %v268 = vld [vmem:[%s220 + $0x51] sm:$0xff]
      %v269 = vld [vmem:[%s220 + $0x61] sm:$0xff]
      %v270 = vld [vmem:[%s220 + $0x69] sm:$0xff]
      %v271 = vld [vmem:[%s220 + $0x79] sm:$0xff]
      %v272 = vld [vmem:[%s220 + $0x81] sm:$0xff]
      %v273 = vld [vmem:[%s220 + $0x91] sm:$0xff]
      %v274 = vld [vmem:[%s220 + $0x99] sm:$0xff]
      %v275 = vld [vmem:[%s220 + $0xa9] sm:$0xff]
      %v276 = vld [vmem:[%s220 + $0xb1] sm:$0xff]
      %v277 = vpack.c.bf16 %v262, %v261
      %v278 = vpack.c.bf16 %v264, %v263
      %v279 = vpack.c.bf16 %v266, %v265
      %v280 = vpack.c.bf16 %v268, %v267
      %v281 = vpack.c.bf16 %v270, %v269
      %v282 = vpack.c.bf16 %v272, %v271
      %v283 = vpack.c.bf16 %v274, %v273
      %v284 = vpack.c.bf16 %v276, %v275
      %s285 = scalar_lea.vmem %s1, 64
      %v286 = vld [vmem:[%s285] sm:$0xf]
      %v287 = vld [vmem:[%s285 + $0x4] sm:$0xf]
      %v288 = vld [vmem:[%s285 + $0x8] sm:$0xf]
      %v289 = vld [vmem:[%s285 + $0xc] sm:$0xf]
      %v290 = vld [vmem:[%s285 + $0x10] sm:$0xf]
      %v291 = vld [vmem:[%s285 + $0x14] sm:$0xf]
      %v292 = vld [vmem:[%s285 + $0x18] sm:$0xf]
      %v293 = vld [vmem:[%s285 + $0x1c] sm:$0xf]
      %v294 = vld [vmem:[%s285 + $0x20] sm:$0xf]
      %v295 = vld [vmem:[%s285 + $0x24] sm:$0xf]
      %v296 = vld [vmem:[%s285 + $0x28] sm:$0xf]
      %v297 = vld [vmem:[%s285 + $0x2c] sm:$0xf]
      %v298 = vld [vmem:[%s285 + $0x30] sm:$0xf]
      %v299 = vld [vmem:[%s285 + $0x34] sm:$0xf]
      %v300 = vld [vmem:[%s285 + $0x38] sm:$0xf]
      %v301 = vld [vmem:[%s285 + $0x3c] sm:$0xf]
      %v318 = vunpack.c.l.b16 %v286
      %v319 = vunpack.c.l.b16 %v287
      %v320 = vunpack.c.l.b16 %v288
      %v321 = vunpack.c.l.b16 %v289
      %v322 = vunpack.c.l.b16 %v290
      %v323 = vunpack.c.l.b16 %v291
      %v324 = vunpack.c.l.b16 %v292
      %v325 = vunpack.c.l.b16 %v293
      %v326 = vunpack.c.l.b16 %v294
      %v327 = vunpack.c.l.b16 %v295
      %v328 = vunpack.c.l.b16 %v296
      %v329 = vunpack.c.l.b16 %v297
      %v330 = vunpack.c.l.b16 %v298
      %v331 = vunpack.c.l.b16 %v299
      %v332 = vunpack.c.l.b16 %v300
      %v333 = vunpack.c.l.b16 %v301
      %v334 = vpack.c.b16 %v319, %v318
      %v335 = vpack.c.b16 %v321, %v320
      %v336 = vpack.c.b16 %v323, %v322
      %v337 = vpack.c.b16 %v325, %v324
      %v338 = vpack.c.b16 %v327, %v326
      %v339 = vpack.c.b16 %v329, %v328
      %v340 = vpack.c.b16 %v331, %v330
      %v341 = vpack.c.b16 %v333, %v332
      %350 = vmatprep.subr.bf16.mxu0 0
      %351 = vmatpush1.bf16.msra.mxu0 %v334
      %352 = vmatprep.subr.bf16.mxu0 0
      %353 = vmatpush1.bf16.msra.mxu0 %v335
      %354 = vmatprep.subr.bf16.mxu0 0
      %355 = vmatpush1.bf16.msra.mxu0 %v336
      %356 = vmatprep.subr.bf16.mxu0 0
      %357 = vmatpush1.bf16.msra.mxu0 %v337
      %358 = vmatprep.subr.bf16.mxu0 0
      %359 = vmatpush1.bf16.msra.mxu0 %v338
      %360 = vmatprep.subr.bf16.mxu0 0
      %361 = vmatpush1.bf16.msra.mxu0 %v339
      %362 = vmatprep.subr.bf16.mxu0 0
      %363 = vmatpush1.bf16.msra.mxu0 %v340
      %364 = vmatprep.subr.bf16.mxu0 0
      %365 = vmatpush1.bf16.msra.mxu0 %v341
      %366 = vmatprep.subr.bf16.mxu0 0
      %367 = vmatpush1.bf16.msra.mxu0 0
      %368 = vmatprep.subr.bf16.mxu0 0
      %369 = vmatpush1.bf16.msra.mxu0 0
      %370 = vmatprep.subr.bf16.mxu0 0
      %371 = vmatpush1.bf16.msra.mxu0 0
      %372 = vmatprep.subr.bf16.mxu0 0
      %373 = vmatpush1.bf16.msra.mxu0 0
      %374 = vmatprep.subr.bf16.mxu0 0
      %375 = vmatpush1.bf16.msra.mxu0 0
      %376 = vmatprep.subr.bf16.mxu0 0
      %377 = vmatpush1.bf16.msra.mxu0 0
      %378 = vmatprep.subr.bf16.mxu0 0
      %379 = vmatpush1.bf16.msra.mxu0 0
      %380 = vmatprep.subr.bf16.mxu0 0
      %381 = vmatpush1.bf16.msra.mxu0 0
      %382 = vmatprep.mubr.bf16.mxu0 0
      %383 = vmatmul.mubr.bf16.gmra.mrb[0].mxu0 %v277
      %v384 = vpop.f32.mrb[0].mxu0
      %v385 = vadd.f32 0.0, %v384
      %v386 = vpop.f32.mrb[0].mxu0
      %v387 = vpop.f32.mrb[0].mxu0
      %v388 = vadd.f32 0.0, %v387
      %v389 = vpop.f32.mrb[0].mxu0
      %390 = vmatprep.mubr.bf16.mxu0 0
      %391 = vmatmul.mubr.bf16.gmra.mrb[0].mxu0 %v278
      %v392 = vpop.f32.mrb[0].mxu0
      %v393 = vadd.f32 0.0, %v392
      %v394 = vpop.f32.mrb[0].mxu0
      %v395 = vpop.f32.mrb[0].mxu0
      %v396 = vadd.f32 0.0, %v395
      %v397 = vpop.f32.mrb[0].mxu0
      %398 = vmatprep.mubr.bf16.mxu0 0
      %399 = vmatmul.mubr.bf16.gmra.mrb[0].mxu0 %v279
      %v400 = vpop.f32.mrb[0].mxu0
      %v401 = vadd.f32 0.0, %v400
      %v402 = vpop.f32.mrb[0].mxu0
      %v403 = vpop.f32.mrb[0].mxu0
      %v404 = vadd.f32 0.0, %v403
      %v405 = vpop.f32.mrb[0].mxu0
      %406 = vmatprep.mubr.bf16.mxu0 0
      %407 = vmatmul.mubr.bf16.gmra.mrb[0].mxu0 %v280
      %v408 = vpop.f32.mrb[0].mxu0
      %v409 = vadd.f32 0.0, %v408
      %v410 = vpop.f32.mrb[0].mxu0
      %v411 = vpop.f32.mrb[0].mxu0
      %v412 = vadd.f32 0.0, %v411
      %v413 = vpop.f32.mrb[0].mxu0
      %414 = vmatprep.mubr.bf16.mxu0 0
      %415 = vmatmul.mubr.bf16.gmra.mrb[0].mxu0 %v281
      %v416 = vpop.f32.mrb[0].mxu0
      %v417 = vadd.f32 0.0, %v416
      %v418 = vpop.f32.mrb[0].mxu0
      %v419 = vpop.f32.mrb[0].mxu0
      %v420 = vadd.f32 0.0, %v419
      %v421 = vpop.f32.mrb[0].mxu0
      %422 = vmatprep.mubr.bf16.mxu0 0
      %423 = vmatmul.mubr.bf16.gmra.mrb[0].mxu0 %v282
      %v424 = vpop.f32.mrb[0].mxu0
      %v425 = vadd.f32 0.0, %v424
      %v426 = vpop.f32.mrb[0].mxu0
      %v427 = vpop.f32.mrb[0].mxu0
      %v428 = vadd.f32 0.0, %v427
      %v429 = vpop.f32.mrb[0].mxu0
      %430 = vmatprep.mubr.bf16.mxu0 0
      %431 = vmatmul.mubr.bf16.gmra.mrb[0].mxu0 %v283
      %v432 = vpop.f32.mrb[0].mxu0
      %v433 = vadd.f32 0.0, %v432
      %v434 = vpop.f32.mrb[0].mxu0
      %v435 = vpop.f32.mrb[0].mxu0
      %v436 = vadd.f32 0.0, %v435
      %v437 = vpop.f32.mrb[0].mxu0
      %438 = vmatprep.mubr.bf16.mxu0 0
      %439 = vmatmul.mubr.bf16.gmra.mrb[0].mxu0 %v284
      %v440 = vpop.f32.mrb[0].mxu0
      %v441 = vadd.f32 0.0, %v440
      %v442 = vpop.f32.mrb[0].mxu0
      %v443 = vpop.f32.mrb[0].mxu0
      %v444 = vadd.f32 0.0, %v443
      %v445 = vpop.f32.mrb[0].mxu0
      %446 = vdwg.mxu0
      %v463 = vunpack.c.l.b16 %v245
      %v464 = vunpack.c.l.b16 %v246
      %v465 = vunpack.c.l.b16 %v247
      %v466 = vunpack.c.l.b16 %v248
      %v467 = vunpack.c.l.b16 %v249
      %v468 = vunpack.c.l.b16 %v250
      %v469 = vunpack.c.l.b16 %v251
      %v470 = vunpack.c.l.b16 %v252
      %v471 = vunpack.c.l.b16 %v253
      %v472 = vunpack.c.l.b16 %v254
      %v473 = vunpack.c.l.b16 %v255
      %v474 = vunpack.c.l.b16 %v256
      %v475 = vunpack.c.l.b16 %v257
      %v476 = vunpack.c.l.b16 %v258
      %v477 = vunpack.c.l.b16 %v259
      %v478 = vunpack.c.l.b16 %v260
      %v479 = vpack.c.b16 %v464, %v463
      %v480 = vpack.c.b16 %v466, %v465
      %v481 = vpack.c.b16 %v468, %v467
      %v482 = vpack.c.b16 %v470, %v469
      %v483 = vpack.c.b16 %v472, %v471
      %v484 = vpack.c.b16 %v474, %v473
      %v485 = vpack.c.b16 %v476, %v475
      %v486 = vpack.c.b16 %v478, %v477
      %495 = vmatprep.subr.bf16.mxu0 0
      %496 = vmatpush1.bf16.msra.mxu0 %v479
      %497 = vmatprep.subr.bf16.mxu0 0
      %498 = vmatpush1.bf16.msra.mxu0 %v480
      %499 = vmatprep.subr.bf16.mxu0 0
      %500 = vmatpush1.bf16.msra.mxu0 %v481
      %501 = vmatprep.subr.bf16.mxu0 0
      %502 = vmatpush1.bf16.msra.mxu0 %v482
      %503 = vmatprep.subr.bf16.mxu0 0
      %504 = vmatpush1.bf16.msra.mxu0 %v483
      %505 = vmatprep.subr.bf16.mxu0 0
      %506 = vmatpush1.bf16.msra.mxu0 %v484
      %507 = vmatprep.subr.bf16.mxu0 0
      %508 = vmatpush1.bf16.msra.mxu0 %v485
      %509 = vmatprep.subr.bf16.mxu0 0
      %510 = vmatpush1.bf16.msra.mxu0 %v486
      %511 = vmatprep.subr.bf16.mxu0 0
      %512 = vmatpush1.bf16.msra.mxu0 0
      %513 = vmatprep.subr.bf16.mxu0 0
      %514 = vmatpush1.bf16.msra.mxu0 0
      %515 = vmatprep.subr.bf16.mxu0 0
      %516 = vmatpush1.bf16.msra.mxu0 0
      %517 = vmatprep.subr.bf16.mxu0 0
      %518 = vmatpush1.bf16.msra.mxu0 0
      %519 = vmatprep.subr.bf16.mxu0 0
      %520 = vmatpush1.bf16.msra.mxu0 0
      %521 = vmatprep.subr.bf16.mxu0 0
      %522 = vmatpush1.bf16.msra.mxu0 0
      %523 = vmatprep.subr.bf16.mxu0 0
      %524 = vmatpush1.bf16.msra.mxu0 0
      %525 = vmatprep.subr.bf16.mxu0 0
      %526 = vmatpush1.bf16.msra.mxu0 0
      %527 = vmatprep.mubr.bf16.mxu0 0
      %528 = vmatmul.mubr.bf16.gmra.mrb[0].mxu0 %v237
      %v529 = vpop.f32.mrb[0].mxu0
      %v530 = vadd.f32 %v385, %v529
      %v531 = vpop.f32.mrb[0].mxu0
      %v532 = vpop.f32.mrb[0].mxu0
      %v533 = vadd.f32 %v388, %v532
      %v534 = vpop.f32.mrb[0].mxu0
      %535 = vmatprep.mubr.bf16.mxu0 0
      %536 = vmatmul.mubr.bf16.gmra.mrb[0].mxu0 %v238
      %v537 = vpop.f32.mrb[0].mxu0
      %v538 = vadd.f32 %v393, %v537
      %v539 = vpop.f32.mrb[0].mxu0
      %v540 = vpop.f32.mrb[0].mxu0
      %v541 = vadd.f32 %v396, %v540
      %v542 = vpop.f32.mrb[0].mxu0
      %543 = vmatprep.mubr.bf16.mxu0 0
      %544 = vmatmul.mubr.bf16.gmra.mrb[0].mxu0 %v239
      %v545 = vpop.f32.mrb[0].mxu0
      %v546 = vadd.f32 %v401, %v545
      %v547 = vpop.f32.mrb[0].mxu0
      %v548 = vpop.f32.mrb[0].mxu0
      %v549 = vadd.f32 %v404, %v548
      %v550 = vpop.f32.mrb[0].mxu0
      %551 = vmatprep.mubr.bf16.mxu0 0
      %552 = vmatmul.mubr.bf16.gmra.mrb[0].mxu0 %v240
      %v553 = vpop.f32.mrb[0].mxu0
      %v554 = vadd.f32 %v409, %v553
      %v555 = vpop.f32.mrb[0].mxu0
      %v556 = vpop.f32.mrb[0].mxu0
      %v557 = vadd.f32 %v412, %v556
      %v558 = vpop.f32.mrb[0].mxu0
      %559 = vmatprep.mubr.bf16.mxu0 0
      %560 = vmatmul.mubr.bf16.gmra.mrb[0].mxu0 %v241
      %v561 = vpop.f32.mrb[0].mxu0
      %v562 = vadd.f32 %v417, %v561
      %v563 = vpop.f32.mrb[0].mxu0
      %v564 = vpop.f32.mrb[0].mxu0
      %v565 = vadd.f32 %v420, %v564
      %v566 = vpop.f32.mrb[0].mxu0
      %567 = vmatprep.mubr.bf16.mxu0 0
      %568 = vmatmul.mubr.bf16.gmra.mrb[0].mxu0 %v242
      %v569 = vpop.f32.mrb[0].mxu0
      %v570 = vadd.f32 %v425, %v569
      %v571 = vpop.f32.mrb[0].mxu0
      %v572 = vpop.f32.mrb[0].mxu0
      %v573 = vadd.f32 %v428, %v572
      %v574 = vpop.f32.mrb[0].mxu0
      %575 = vmatprep.mubr.bf16.mxu0 0
      %576 = vmatmul.mubr.bf16.gmra.mrb[0].mxu0 %v243
      %v577 = vpop.f32.mrb[0].mxu0
      %v578 = vadd.f32 %v433, %v577
      %v579 = vpop.f32.mrb[0].mxu0
      %v580 = vpop.f32.mrb[0].mxu0
      %v581 = vadd.f32 %v436, %v580
      %v582 = vpop.f32.mrb[0].mxu0
      %583 = vmatprep.mubr.bf16.mxu0 0
      %584 = vmatmul.mubr.bf16.gmra.mrb[0].mxu0 %v244
      %v585 = vpop.f32.mrb[0].mxu0
      %v586 = vadd.f32 %v441, %v585
      %v587 = vpop.f32.mrb[0].mxu0
      %v588 = vpop.f32.mrb[0].mxu0
      %v589 = vadd.f32 %v444, %v588
      %v590 = vpop.f32.mrb[0].mxu0
      %591 = vdwg.mxu0
      %v592 = vld [vmem:[%s220 + $0x2] sm:$0xff]
      %v593 = vld [vmem:[%s220 + $0xa] sm:$0xff]
      %v594 = vld [vmem:[%s220 + $0x1a] sm:$0xff]
      %v595 = vld [vmem:[%s220 + $0x22] sm:$0xff]
      %v596 = vld [vmem:[%s220 + $0x32] sm:$0xff]
      %v597 = vld [vmem:[%s220 + $0x3a] sm:$0xff]
      %v598 = vld [vmem:[%s220 + $0x4a] sm:$0xff]
      %v599 = vld [vmem:[%s220 + $0x52] sm:$0xff]
      %v600 = vld [vmem:[%s220 + $0x62] sm:$0xff]
      %v601 = vld [vmem:[%s220 + $0x6a] sm:$0xff]
      %v602 = vld [vmem:[%s220 + $0x7a] sm:$0xff]
      %v603 = vld [vmem:[%s220 + $0x82] sm:$0xff]
      %v604 = vld [vmem:[%s220 + $0x92] sm:$0xff]
      %v605 = vld [vmem:[%s220 + $0x9a] sm:$0xff]
      %v606 = vld [vmem:[%s220 + $0xaa] sm:$0xff]
      %v607 = vld [vmem:[%s220 + $0xb2] sm:$0xff]
      %v608 = vpack.c.bf16 %v593, %v592
      %v609 = vpack.c.bf16 %v595, %v594
      %v610 = vpack.c.bf16 %v597, %v596
      %v611 = vpack.c.bf16 %v599, %v598
      %v612 = vpack.c.bf16 %v601, %v600
      %v613 = vpack.c.bf16 %v603, %v602
      %v614 = vpack.c.bf16 %v605, %v604
      %v615 = vpack.c.bf16 %v607, %v606
      %s616 = scalar_lea.vmem %s1, 128
      %v617 = vld [vmem:[%s616] sm:$0xf]
      %v618 = vld [vmem:[%s616 + $0x4] sm:$0xf]
      %v619 = vld [vmem:[%s616 + $0x8] sm:$0xf]
      %v620 = vld [vmem:[%s616 + $0xc] sm:$0xf]
      %v621 = vld [vmem:[%s616 + $0x10] sm:$0xf]
      %v622 = vld [vmem:[%s616 + $0x14] sm:$0xf]
      %v623 = vld [vmem:[%s616 + $0x18] sm:$0xf]
      %v624 = vld [vmem:[%s616 + $0x1c] sm:$0xf]
      %v625 = vld [vmem:[%s616 + $0x20] sm:$0xf]
      %v626 = vld [vmem:[%s616 + $0x24] sm:$0xf]
      %v627 = vld [vmem:[%s616 + $0x28] sm:$0xf]
      %v628 = vld [vmem:[%s616 + $0x2c] sm:$0xf]
      %v629 = vld [vmem:[%s616 + $0x30] sm:$0xf]
      %v630 = vld [vmem:[%s616 + $0x34] sm:$0xf]
      %v631 = vld [vmem:[%s616 + $0x38] sm:$0xf]
      %v632 = vld [vmem:[%s616 + $0x3c] sm:$0xf]
      %v649 = vunpack.c.l.b16 %v617
      %v650 = vunpack.c.l.b16 %v618
      %v651 = vunpack.c.l.b16 %v619
      %v652 = vunpack.c.l.b16 %v620
      %v653 = vunpack.c.l.b16 %v621
      %v654 = vunpack.c.l.b16 %v622
      %v655 = vunpack.c.l.b16 %v623
      %v656 = vunpack.c.l.b16 %v624
      %v657 = vunpack.c.l.b16 %v625
      %v658 = vunpack.c.l.b16 %v626
      %v659 = vunpack.c.l.b16 %v627
      %v660 = vunpack.c.l.b16 %v628
      %v661 = vunpack.c.l.b16 %v629
      %v662 = vunpack.c.l.b16 %v630
      %v663 = vunpack.c.l.b16 %v631
      %v664 = vunpack.c.l.b16 %v632
      %v665 = vpack.c.b16 %v650, %v649
      %v666 = vpack.c.b16 %v652, %v651
      %v667 = vpack.c.b16 %v654, %v653
      %v668 = vpack.c.b16 %v656, %v655
      %v669 = vpack.c.b16 %v658, %v657
      %v670 = vpack.c.b16 %v660, %v659
      %v671 = vpack.c.b16 %v662, %v661
      %v672 = vpack.c.b16 %v664, %v663
      %681 = vmatprep.subr.bf16.mxu0 0
      %682 = vmatpush1.bf16.msra.mxu0 %v665
      %683 = vmatprep.subr.bf16.mxu0 0
      %684 = vmatpush1.bf16.msra.mxu0 %v666
      %685 = vmatprep.subr.bf16.mxu0 0
      %686 = vmatpush1.bf16.msra.mxu0 %v667
      %687 = vmatprep.subr.bf16.mxu0 0
      %688 = vmatpush1.bf16.msra.mxu0 %v668
      %689 = vmatprep.subr.bf16.mxu0 0
      %690 = vmatpush1.bf16.msra.mxu0 %v669
      %691 = vmatprep.subr.bf16.mxu0 0
      %692 = vmatpush1.bf16.msra.mxu0 %v670
      %693 = vmatprep.subr.bf16.mxu0 0
      %694 = vmatpush1.bf16.msra.mxu0 %v671
      %695 = vmatprep.subr.bf16.mxu0 0
      %696 = vmatpush1.bf16.msra.mxu0 %v672
      %697 = vmatprep.subr.bf16.mxu0 0
      %698 = vmatpush1.bf16.msra.mxu0 0
      %699 = vmatprep.subr.bf16.mxu0 0
      %700 = vmatpush1.bf16.msra.mxu0 0
      %701 = vmatprep.subr.bf16.mxu0 0
      %702 = vmatpush1.bf16.msra.mxu0 0
      %703 = vmatprep.subr.bf16.mxu0 0
      %704 = vmatpush1.bf16.msra.mxu0 0
      %705 = vmatprep.subr.bf16.mxu0 0
      %706 = vmatpush1.bf16.msra.mxu0 0
      %707 = vmatprep.subr.bf16.mxu0 0
      %708 = vmatpush1.bf16.msra.mxu0 0
      %709 = vmatprep.subr.bf16.mxu0 0
      %710 = vmatpush1.bf16.msra.mxu0 0
      %711 = vmatprep.subr.bf16.mxu0 0
      %712 = vmatpush1.bf16.msra.mxu0 0
      %713 = vmatprep.mubr.bf16.mxu0 0
      %714 = vmatmul.mubr.bf16.gmra.mrb[0].mxu0 %v608
      %v715 = vpop.f32.mrb[0].mxu0
      %v716 = vadd.f32 0.0, %v715
      %v717 = vpop.f32.mrb[0].mxu0
      %v718 = vpop.f32.mrb[0].mxu0
      %v719 = vadd.f32 0.0, %v718
      %v720 = vpop.f32.mrb[0].mxu0
      %721 = vmatprep.mubr.bf16.mxu0 0
      %722 = vmatmul.mubr.bf16.gmra.mrb[0].mxu0 %v609
      %v723 = vpop.f32.mrb[0].mxu0
      %v724 = vadd.f32 0.0, %v723
      %v725 = vpop.f32.mrb[0].mxu0
      %v726 = vpop.f32.mrb[0].mxu0
      %v727 = vadd.f32 0.0, %v726
      %v728 = vpop.f32.mrb[0].mxu0
      %729 = vmatprep.mubr.bf16.mxu0 0
      %730 = vmatmul.mubr.bf16.gmra.mrb[0].mxu0 %v610
      %v731 = vpop.f32.mrb[0].mxu0
      %v732 = vadd.f32 0.0, %v731
      %v733 = vpop.f32.mrb[0].mxu0
      %v734 = vpop.f32.mrb[0].mxu0
      %v735 = vadd.f32 0.0, %v734
      %v736 = vpop.f32.mrb[0].mxu0
      %737 = vmatprep.mubr.bf16.mxu0 0
      %738 = vmatmul.mubr.bf16.gmra.mrb[0].mxu0 %v611
      %v739 = vpop.f32.mrb[0].mxu0
      %v740 = vadd.f32 0.0, %v739
      %v741 = vpop.f32.mrb[0].mxu0
      %v742 = vpop.f32.mrb[0].mxu0
      %v743 = vadd.f32 0.0, %v742
      %v744 = vpop.f32.mrb[0].mxu0
      %745 = vmatprep.mubr.bf16.mxu0 0
      %746 = vmatmul.mubr.bf16.gmra.mrb[0].mxu0 %v612
      %v747 = vpop.f32.mrb[0].mxu0
      %v748 = vadd.f32 0.0, %v747
      %v749 = vpop.f32.mrb[0].mxu0
      %v750 = vpop.f32.mrb[0].mxu0
      %v751 = vadd.f32 0.0, %v750
      %v752 = vpop.f32.mrb[0].mxu0
      %753 = vmatprep.mubr.bf16.mxu0 0
      %754 = vmatmul.mubr.bf16.gmra.mrb[0].mxu0 %v613
      %v755 = vpop.f32.mrb[0].mxu0
      %v756 = vadd.f32 0.0, %v755
      %v757 = vpop.f32.mrb[0].mxu0
      %v758 = vpop.f32.mrb[0].mxu0
      %v759 = vadd.f32 0.0, %v758
      %v760 = vpop.f32.mrb[0].mxu0
      %761 = vmatprep.mubr.bf16.mxu0 0
      %762 = vmatmul.mubr.bf16.gmra.mrb[0].mxu0 %v614
      %v763 = vpop.f32.mrb[0].mxu0
      %v764 = vadd.f32 0.0, %v763
      %v765 = vpop.f32.mrb[0].mxu0
      %v766 = vpop.f32.mrb[0].mxu0
      %v767 = vadd.f32 0.0, %v766
      %v768 = vpop.f32.mrb[0].mxu0
      %769 = vmatprep.mubr.bf16.mxu0 0
      %770 = vmatmul.mubr.bf16.gmra.mrb[0].mxu0 %v615
      %v771 = vpop.f32.mrb[0].mxu0
      %v772 = vadd.f32 0.0, %v771
      %v773 = vpop.f32.mrb[0].mxu0
      %v774 = vpop.f32.mrb[0].mxu0
      %v775 = vadd.f32 0.0, %v774
      %v776 = vpop.f32.mrb[0].mxu0
      %777 = vdwg.mxu0
      %v778 = vadd.f32 %v530, %v716
      %v779 = vadd.f32 %v533, %v719
      %v780 = vadd.f32 %v538, %v724
      %v781 = vadd.f32 %v541, %v727
      %v782 = vadd.f32 %v546, %v732
      %v783 = vadd.f32 %v549, %v735
      %v784 = vadd.f32 %v554, %v740
      %v785 = vadd.f32 %v557, %v743
      %v786 = vadd.f32 %v562, %v748
      %v787 = vadd.f32 %v565, %v751
      %v788 = vadd.f32 %v570, %v756
      %v789 = vadd.f32 %v573, %v759
      %v790 = vadd.f32 %v578, %v764
      %v791 = vadd.f32 %v581, %v767
      %v792 = vadd.f32 %v586, %v772
      %v793 = vadd.f32 %v589, %v775
      %s794 = sadd.s32 %s218, 1
      %s795 = smul.u32 %s794, 24
      %s796 = scalar_lea.vmem %s197, %s795
      %v797 = vld [vmem:[%s796] sm:$0xff]
      %v798 = vld [vmem:[%s796 + $0x8] sm:$0xff]
      %v799 = vld [vmem:[%s796 + $0x18] sm:$0xff]
      %v800 = vld [vmem:[%s796 + $0x20] sm:$0xff]
      %v801 = vld [vmem:[%s796 + $0x30] sm:$0xff]
      %v802 = vld [vmem:[%s796 + $0x38] sm:$0xff]
      %v803 = vld [vmem:[%s796 + $0x48] sm:$0xff]
      %v804 = vld [vmem:[%s796 + $0x50] sm:$0xff]
      %v805 = vld [vmem:[%s796 + $0x60] sm:$0xff]
      %v806 = vld [vmem:[%s796 + $0x68] sm:$0xff]
      %v807 = vld [vmem:[%s796 + $0x78] sm:$0xff]
      %v808 = vld [vmem:[%s796 + $0x80] sm:$0xff]
      %v809 = vld [vmem:[%s796 + $0x90] sm:$0xff]
      %v810 = vld [vmem:[%s796 + $0x98] sm:$0xff]
      %v811 = vld [vmem:[%s796 + $0xa8] sm:$0xff]
      %v812 = vld [vmem:[%s796 + $0xb0] sm:$0xff]
      %v813 = vpack.c.bf16 %v798, %v797
      %v814 = vpack.c.bf16 %v800, %v799
      %v815 = vpack.c.bf16 %v802, %v801
      %v816 = vpack.c.bf16 %v804, %v803
      %v817 = vpack.c.bf16 %v806, %v805
      %v818 = vpack.c.bf16 %v808, %v807
      %v819 = vpack.c.bf16 %v810, %v809
      %v820 = vpack.c.bf16 %v812, %v811
      %s821 = scalar_lea.vmem %s1, 192
      %v822 = vld [vmem:[%s821] sm:$0xf]
      %v823 = vld [vmem:[%s821 + $0x4] sm:$0xf]
      %v824 = vld [vmem:[%s821 + $0x8] sm:$0xf]
      %v825 = vld [vmem:[%s821 + $0xc] sm:$0xf]
      %v826 = vld [vmem:[%s821 + $0x10] sm:$0xf]
      %v827 = vld [vmem:[%s821 + $0x14] sm:$0xf]
      %v828 = vld [vmem:[%s821 + $0x18] sm:$0xf]
      %v829 = vld [vmem:[%s821 + $0x1c] sm:$0xf]
      %v830 = vld [vmem:[%s821 + $0x20] sm:$0xf]
      %v831 = vld [vmem:[%s821 + $0x24] sm:$0xf]
      %v832 = vld [vmem:[%s821 + $0x28] sm:$0xf]
      %v833 = vld [vmem:[%s821 + $0x2c] sm:$0xf]
      %v834 = vld [vmem:[%s821 + $0x30] sm:$0xf]
      %v835 = vld [vmem:[%s821 + $0x34] sm:$0xf]
      %v836 = vld [vmem:[%s821 + $0x38] sm:$0xf]
      %v837 = vld [vmem:[%s821 + $0x3c] sm:$0xf]
      %v854 = vunpack.c.l.b16 %v822
      %v855 = vunpack.c.l.b16 %v823
      %v856 = vunpack.c.l.b16 %v824
      %v857 = vunpack.c.l.b16 %v825
      %v858 = vunpack.c.l.b16 %v826
      %v859 = vunpack.c.l.b16 %v827
      %v860 = vunpack.c.l.b16 %v828
      %v861 = vunpack.c.l.b16 %v829
      %v862 = vunpack.c.l.b16 %v830
      %v863 = vunpack.c.l.b16 %v831
      %v864 = vunpack.c.l.b16 %v832
      %v865 = vunpack.c.l.b16 %v833
      %v866 = vunpack.c.l.b16 %v834
      %v867 = vunpack.c.l.b16 %v835
      %v868 = vunpack.c.l.b16 %v836
      %v869 = vunpack.c.l.b16 %v837
      %v870 = vpack.c.b16 %v855, %v854
      %v871 = vpack.c.b16 %v857, %v856
      %v872 = vpack.c.b16 %v859, %v858
      %v873 = vpack.c.b16 %v861, %v860
      %v874 = vpack.c.b16 %v863, %v862
      %v875 = vpack.c.b16 %v865, %v864
      %v876 = vpack.c.b16 %v867, %v866
      %v877 = vpack.c.b16 %v869, %v868
      %886 = vmatprep.subr.bf16.mxu0 0
      %887 = vmatpush1.bf16.msra.mxu0 %v870
      %888 = vmatprep.subr.bf16.mxu0 0
      %889 = vmatpush1.bf16.msra.mxu0 %v871
      %890 = vmatprep.subr.bf16.mxu0 0
      %891 = vmatpush1.bf16.msra.mxu0 %v872
      %892 = vmatprep.subr.bf16.mxu0 0
      %893 = vmatpush1.bf16.msra.mxu0 %v873
      %894 = vmatprep.subr.bf16.mxu0 0
      %895 = vmatpush1.bf16.msra.mxu0 %v874
      %896 = vmatprep.subr.bf16.mxu0 0
      %897 = vmatpush1.bf16.msra.mxu0 %v875
      %898 = vmatprep.subr.bf16.mxu0 0
      %899 = vmatpush1.bf16.msra.mxu0 %v876
      %900 = vmatprep.subr.bf16.mxu0 0
      %901 = vmatpush1.bf16.msra.mxu0 %v877
      %902 = vmatprep.subr.bf16.mxu0 0
      %903 = vmatpush1.bf16.msra.mxu0 0
      %904 = vmatprep.subr.bf16.mxu0 0
      %905 = vmatpush1.bf16.msra.mxu0 0
      %906 = vmatprep.subr.bf16.mxu0 0
      %907 = vmatpush1.bf16.msra.mxu0 0
      %908 = vmatprep.subr.bf16.mxu0 0
      %909 = vmatpush1.bf16.msra.mxu0 0
      %910 = vmatprep.subr.bf16.mxu0 0
      %911 = vmatpush1.bf16.msra.mxu0 0
      %912 = vmatprep.subr.bf16.mxu0 0
      %913 = vmatpush1.bf16.msra.mxu0 0
      %914 = vmatprep.subr.bf16.mxu0 0
      %915 = vmatpush1.bf16.msra.mxu0 0
      %916 = vmatprep.subr.bf16.mxu0 0
      %917 = vmatpush1.bf16.msra.mxu0 0
      %918 = vmatprep.mubr.bf16.mxu0 0
      %919 = vmatmul.mubr.bf16.gmra.mrb[0].mxu0 %v813
      %v920 = vpop.f32.mrb[0].mxu0
      %v921 = vadd.f32 0.0, %v920
      %v922 = vpop.f32.mrb[0].mxu0
      %v923 = vpop.f32.mrb[0].mxu0
      %v924 = vadd.f32 0.0, %v923
      %v925 = vpop.f32.mrb[0].mxu0
      %926 = vmatprep.mubr.bf16.mxu0 0
      %927 = vmatmul.mubr.bf16.gmra.mrb[0].mxu0 %v814
      %v928 = vpop.f32.mrb[0].mxu0
      %v929 = vadd.f32 0.0, %v928
      %v930 = vpop.f32.mrb[0].mxu0
      %v931 = vpop.f32.mrb[0].mxu0
      %v932 = vadd.f32 0.0, %v931
      %v933 = vpop.f32.mrb[0].mxu0
      %934 = vmatprep.mubr.bf16.mxu0 0
      %935 = vmatmul.mubr.bf16.gmra.mrb[0].mxu0 %v815
      %v936 = vpop.f32.mrb[0].mxu0
      %v937 = vadd.f32 0.0, %v936
      %v938 = vpop.f32.mrb[0].mxu0
      %v939 = vpop.f32.mrb[0].mxu0
      %v940 = vadd.f32 0.0, %v939
      %v941 = vpop.f32.mrb[0].mxu0
      %942 = vmatprep.mubr.bf16.mxu0 0
      %943 = vmatmul.mubr.bf16.gmra.mrb[0].mxu0 %v816
      %v944 = vpop.f32.mrb[0].mxu0
      %v945 = vadd.f32 0.0, %v944
      %v946 = vpop.f32.mrb[0].mxu0
      %v947 = vpop.f32.mrb[0].mxu0
      %v948 = vadd.f32 0.0, %v947
      %v949 = vpop.f32.mrb[0].mxu0
      %950 = vmatprep.mubr.bf16.mxu0 0
      %951 = vmatmul.mubr.bf16.gmra.mrb[0].mxu0 %v817
      %v952 = vpop.f32.mrb[0].mxu0
      %v953 = vadd.f32 0.0, %v952
      %v954 = vpop.f32.mrb[0].mxu0
      %v955 = vpop.f32.mrb[0].mxu0
      %v956 = vadd.f32 0.0, %v955
      %v957 = vpop.f32.mrb[0].mxu0
      %958 = vmatprep.mubr.bf16.mxu0 0
      %959 = vmatmul.mubr.bf16.gmra.mrb[0].mxu0 %v818
      %v960 = vpop.f32.mrb[0].mxu0
      %v961 = vadd.f32 0.0, %v960
      %v962 = vpop.f32.mrb[0].mxu0
      %v963 = vpop.f32.mrb[0].mxu0
      %v964 = vadd.f32 0.0, %v963
      %v965 = vpop.f32.mrb[0].mxu0
      %966 = vmatprep.mubr.bf16.mxu0 0
      %967 = vmatmul.mubr.bf16.gmra.mrb[0].mxu0 %v819
      %v968 = vpop.f32.mrb[0].mxu0
      %v969 = vadd.f32 0.0, %v968
      %v970 = vpop.f32.mrb[0].mxu0
      %v971 = vpop.f32.mrb[0].mxu0
      %v972 = vadd.f32 0.0, %v971
      %v973 = vpop.f32.mrb[0].mxu0
      %974 = vmatprep.mubr.bf16.mxu0 0
      %975 = vmatmul.mubr.bf16.gmra.mrb[0].mxu0 %v820
      %v976 = vpop.f32.mrb[0].mxu0
      %v977 = vadd.f32 0.0, %v976
      %v978 = vpop.f32.mrb[0].mxu0
      %v979 = vpop.f32.mrb[0].mxu0
      %v980 = vadd.f32 0.0, %v979
      %v981 = vpop.f32.mrb[0].mxu0
      %982 = vdwg.mxu0
      %v983 = vadd.f32 %v778, %v921
      %v984 = vadd.f32 %v779, %v924
      %v985 = vadd.f32 %v780, %v929
      %v986 = vadd.f32 %v781, %v932
      %v987 = vadd.f32 %v782, %v937
      %v988 = vadd.f32 %v783, %v940
      %v989 = vadd.f32 %v784, %v945
      %v990 = vadd.f32 %v785, %v948
      %v991 = vadd.f32 %v786, %v953
      %v992 = vadd.f32 %v787, %v956
      %v993 = vadd.f32 %v788, %v961
      %v994 = vadd.f32 %v789, %v964
      %v995 = vadd.f32 %v790, %v969
      %v996 = vadd.f32 %v791, %v972
      %v997 = vadd.f32 %v792, %v977
      %v998 = vadd.f32 %v793, %v980
      %v999 = vld [vmem:[%s796 + $0x1] sm:$0xff]
      %v1000 = vld [vmem:[%s796 + $0x9] sm:$0xff]
      %v1001 = vld [vmem:[%s796 + $0x19] sm:$0xff]
      %v1002 = vld [vmem:[%s796 + $0x21] sm:$0xff]
      %v1003 = vld [vmem:[%s796 + $0x31] sm:$0xff]
      %v1004 = vld [vmem:[%s796 + $0x39] sm:$0xff]
      %v1005 = vld [vmem:[%s796 + $0x49] sm:$0xff]
      %v1006 = vld [vmem:[%s796 + $0x51] sm:$0xff]
      %v1007 = vld [vmem:[%s796 + $0x61] sm:$0xff]
      %v1008 = vld [vmem:[%s796 + $0x69] sm:$0xff]
      %v1009 = vld [vmem:[%s796 + $0x79] sm:$0xff]
      %v1010 = vld [vmem:[%s796 + $0x81] sm:$0xff]
      %v1011 = vld [vmem:[%s796 + $0x91] sm:$0xff]
      %v1012 = vld [vmem:[%s796 + $0x99] sm:$0xff]
      %v1013 = vld [vmem:[%s796 + $0xa9] sm:$0xff]
      %v1014 = vld [vmem:[%s796 + $0xb1] sm:$0xff]
      %v1015 = vpack.c.bf16 %v1000, %v999
      %v1016 = vpack.c.bf16 %v1002, %v1001
      %v1017 = vpack.c.bf16 %v1004, %v1003
      %v1018 = vpack.c.bf16 %v1006, %v1005
      %v1019 = vpack.c.bf16 %v1008, %v1007
      %v1020 = vpack.c.bf16 %v1010, %v1009
      %v1021 = vpack.c.bf16 %v1012, %v1011
      %v1022 = vpack.c.bf16 %v1014, %v1013
      %s1023 = scalar_lea.vmem %s1, 256
      %v1024 = vld [vmem:[%s1023] sm:$0xf]
      %v1025 = vld [vmem:[%s1023 + $0x4] sm:$0xf]
      %v1026 = vld [vmem:[%s1023 + $0x8] sm:$0xf]
      %v1027 = vld [vmem:[%s1023 + $0xc] sm:$0xf]
      %v1028 = vld [vmem:[%s1023 + $0x10] sm:$0xf]
      %v1029 = vld [vmem:[%s1023 + $0x14] sm:$0xf]
      %v1030 = vld [vmem:[%s1023 + $0x18] sm:$0xf]
      %v1031 = vld [vmem:[%s1023 + $0x1c] sm:$0xf]
      %v1032 = vld [vmem:[%s1023 + $0x20] sm:$0xf]
      %v1033 = vld [vmem:[%s1023 + $0x24] sm:$0xf]
      %v1034 = vld [vmem:[%s1023 + $0x28] sm:$0xf]
      %v1035 = vld [vmem:[%s1023 + $0x2c] sm:$0xf]
      %v1036 = vld [vmem:[%s1023 + $0x30] sm:$0xf]
      %v1037 = vld [vmem:[%s1023 + $0x34] sm:$0xf]
      %v1038 = vld [vmem:[%s1023 + $0x38] sm:$0xf]
      %v1039 = vld [vmem:[%s1023 + $0x3c] sm:$0xf]
      %v1056 = vunpack.c.l.b16 %v1024
      %v1057 = vunpack.c.l.b16 %v1025
      %v1058 = vunpack.c.l.b16 %v1026
      %v1059 = vunpack.c.l.b16 %v1027
      %v1060 = vunpack.c.l.b16 %v1028
      %v1061 = vunpack.c.l.b16 %v1029
      %v1062 = vunpack.c.l.b16 %v1030
      %v1063 = vunpack.c.l.b16 %v1031
      %v1064 = vunpack.c.l.b16 %v1032
      %v1065 = vunpack.c.l.b16 %v1033
      %v1066 = vunpack.c.l.b16 %v1034
      %v1067 = vunpack.c.l.b16 %v1035
      %v1068 = vunpack.c.l.b16 %v1036
      %v1069 = vunpack.c.l.b16 %v1037
      %v1070 = vunpack.c.l.b16 %v1038
      %v1071 = vunpack.c.l.b16 %v1039
      %v1072 = vpack.c.b16 %v1057, %v1056
      %v1073 = vpack.c.b16 %v1059, %v1058
      %v1074 = vpack.c.b16 %v1061, %v1060
      %v1075 = vpack.c.b16 %v1063, %v1062
      %v1076 = vpack.c.b16 %v1065, %v1064
      %v1077 = vpack.c.b16 %v1067, %v1066
      %v1078 = vpack.c.b16 %v1069, %v1068
      %v1079 = vpack.c.b16 %v1071, %v1070
      %1088 = vmatprep.subr.bf16.mxu0 0
      %1089 = vmatpush1.bf16.msra.mxu0 %v1072
      %1090 = vmatprep.subr.bf16.mxu0 0
      %1091 = vmatpush1.bf16.msra.mxu0 %v1073
      %1092 = vmatprep.subr.bf16.mxu0 0
      %1093 = vmatpush1.bf16.msra.mxu0 %v1074
      %1094 = vmatprep.subr.bf16.mxu0 0
      %1095 = vmatpush1.bf16.msra.mxu0 %v1075
      %1096 = vmatprep.subr.bf16.mxu0 0
      %1097 = vmatpush1.bf16.msra.mxu0 %v1076
      %1098 = vmatprep.subr.bf16.mxu0 0
      %1099 = vmatpush1.bf16.msra.mxu0 %v1077
      %1100 = vmatprep.subr.bf16.mxu0 0
      %1101 = vmatpush1.bf16.msra.mxu0 %v1078
      %1102 = vmatprep.subr.bf16.mxu0 0
      %1103 = vmatpush1.bf16.msra.mxu0 %v1079
      %1104 = vmatprep.subr.bf16.mxu0 0
      %1105 = vmatpush1.bf16.msra.mxu0 0
      %1106 = vmatprep.subr.bf16.mxu0 0
      %1107 = vmatpush1.bf16.msra.mxu0 0
      %1108 = vmatprep.subr.bf16.mxu0 0
      %1109 = vmatpush1.bf16.msra.mxu0 0
      %1110 = vmatprep.subr.bf16.mxu0 0
      %1111 = vmatpush1.bf16.msra.mxu0 0
      %1112 = vmatprep.subr.bf16.mxu0 0
      %1113 = vmatpush1.bf16.msra.mxu0 0
      %1114 = vmatprep.subr.bf16.mxu0 0
      %1115 = vmatpush1.bf16.msra.mxu0 0
      %1116 = vmatprep.subr.bf16.mxu0 0
      %1117 = vmatpush1.bf16.msra.mxu0 0
      %1118 = vmatprep.subr.bf16.mxu0 0
      %1119 = vmatpush1.bf16.msra.mxu0 0
      %1120 = vmatprep.mubr.bf16.mxu0 0
      %1121 = vmatmul.mubr.bf16.gmra.mrb[0].mxu0 %v1015
      %v1122 = vpop.f32.mrb[0].mxu0
      %v1123 = vadd.f32 0.0, %v1122
      %v1124 = vpop.f32.mrb[0].mxu0
      %v1125 = vpop.f32.mrb[0].mxu0
      %v1126 = vadd.f32 0.0, %v1125
      %v1127 = vpop.f32.mrb[0].mxu0
      %1128 = vmatprep.mubr.bf16.mxu0 0
      %1129 = vmatmul.mubr.bf16.gmra.mrb[0].mxu0 %v1016
      %v1130 = vpop.f32.mrb[0].mxu0
      %v1131 = vadd.f32 0.0, %v1130
      %v1132 = vpop.f32.mrb[0].mxu0
      %v1133 = vpop.f32.mrb[0].mxu0
      %v1134 = vadd.f32 0.0, %v1133
      %v1135 = vpop.f32.mrb[0].mxu0
      %1136 = vmatprep.mubr.bf16.mxu0 0
      %1137 = vmatmul.mubr.bf16.gmra.mrb[0].mxu0 %v1017
      %v1138 = vpop.f32.mrb[0].mxu0
      %v1139 = vadd.f32 0.0, %v1138
      %v1140 = vpop.f32.mrb[0].mxu0
      %v1141 = vpop.f32.mrb[0].mxu0
      %v1142 = vadd.f32 0.0, %v1141
      %v1143 = vpop.f32.mrb[0].mxu0
      %1144 = vmatprep.mubr.bf16.mxu0 0
      %1145 = vmatmul.mubr.bf16.gmra.mrb[0].mxu0 %v1018
      %v1146 = vpop.f32.mrb[0].mxu0
      %v1147 = vadd.f32 0.0, %v1146
      %v1148 = vpop.f32.mrb[0].mxu0
      %v1149 = vpop.f32.mrb[0].mxu0
      %v1150 = vadd.f32 0.0, %v1149
      %v1151 = vpop.f32.mrb[0].mxu0
      %1152 = vmatprep.mubr.bf16.mxu0 0
      %1153 = vmatmul.mubr.bf16.gmra.mrb[0].mxu0 %v1019
      %v1154 = vpop.f32.mrb[0].mxu0
      %v1155 = vadd.f32 0.0, %v1154
      %v1156 = vpop.f32.mrb[0].mxu0
      %v1157 = vpop.f32.mrb[0].mxu0
      %v1158 = vadd.f32 0.0, %v1157
      %v1159 = vpop.f32.mrb[0].mxu0
      %1160 = vmatprep.mubr.bf16.mxu0 0
      %1161 = vmatmul.mubr.bf16.gmra.mrb[0].mxu0 %v1020
      %v1162 = vpop.f32.mrb[0].mxu0
      %v1163 = vadd.f32 0.0, %v1162
      %v1164 = vpop.f32.mrb[0].mxu0
      %v1165 = vpop.f32.mrb[0].mxu0
      %v1166 = vadd.f32 0.0, %v1165
      %v1167 = vpop.f32.mrb[0].mxu0
      %1168 = vmatprep.mubr.bf16.mxu0 0
      %1169 = vmatmul.mubr.bf16.gmra.mrb[0].mxu0 %v1021
      %v1170 = vpop.f32.mrb[0].mxu0
      %v1171 = vadd.f32 0.0, %v1170
      %v1172 = vpop.f32.mrb[0].mxu0
      %v1173 = vpop.f32.mrb[0].mxu0
      %v1174 = vadd.f32 0.0, %v1173
      %v1175 = vpop.f32.mrb[0].mxu0
      %1176 = vmatprep.mubr.bf16.mxu0 0
      %1177 = vmatmul.mubr.bf16.gmra.mrb[0].mxu0 %v1022
      %v1178 = vpop.f32.mrb[0].mxu0
      %v1179 = vadd.f32 0.0, %v1178
      %v1180 = vpop.f32.mrb[0].mxu0
      %v1181 = vpop.f32.mrb[0].mxu0
      %v1182 = vadd.f32 0.0, %v1181
      %v1183 = vpop.f32.mrb[0].mxu0
      %1184 = vdwg.mxu0
      %v1185 = vadd.f32 %v983, %v1123
      %v1186 = vadd.f32 %v984, %v1126
      %v1187 = vadd.f32 %v985, %v1131
      %v1188 = vadd.f32 %v986, %v1134
      %v1189 = vadd.f32 %v987, %v1139
      %v1190 = vadd.f32 %v988, %v1142
      %v1191 = vadd.f32 %v989, %v1147
      %v1192 = vadd.f32 %v990, %v1150
      %v1193 = vadd.f32 %v991, %v1155
      %v1194 = vadd.f32 %v992, %v1158
      %v1195 = vadd.f32 %v993, %v1163
      %v1196 = vadd.f32 %v994, %v1166
      %v1197 = vadd.f32 %v995, %v1171
      %v1198 = vadd.f32 %v996, %v1174
      %v1199 = vadd.f32 %v997, %v1179
      %v1200 = vadd.f32 %v998, %v1182
      %v1201 = vld [vmem:[%s796 + $0x2] sm:$0xff]
      %v1202 = vld [vmem:[%s796 + $0xa] sm:$0xff]
      %v1203 = vld [vmem:[%s796 + $0x1a] sm:$0xff]
      %v1204 = vld [vmem:[%s796 + $0x22] sm:$0xff]
      %v1205 = vld [vmem:[%s796 + $0x32] sm:$0xff]
      %v1206 = vld [vmem:[%s796 + $0x3a] sm:$0xff]
      %v1207 = vld [vmem:[%s796 + $0x4a] sm:$0xff]
      %v1208 = vld [vmem:[%s796 + $0x52] sm:$0xff]
      %v1209 = vld [vmem:[%s796 + $0x62] sm:$0xff]
      %v1210 = vld [vmem:[%s796 + $0x6a] sm:$0xff]
      %v1211 = vld [vmem:[%s796 + $0x7a] sm:$0xff]
      %v1212 = vld [vmem:[%s796 + $0x82] sm:$0xff]
      %v1213 = vld [vmem:[%s796 + $0x92] sm:$0xff]
      %v1214 = vld [vmem:[%s796 + $0x9a] sm:$0xff]
      %v1215 = vld [vmem:[%s796 + $0xaa] sm:$0xff]
      %v1216 = vld [vmem:[%s796 + $0xb2] sm:$0xff]
      %v1217 = vpack.c.bf16 %v1202, %v1201
      %v1218 = vpack.c.bf16 %v1204, %v1203
      %v1219 = vpack.c.bf16 %v1206, %v1205
      %v1220 = vpack.c.bf16 %v1208, %v1207
      %v1221 = vpack.c.bf16 %v1210, %v1209
      %v1222 = vpack.c.bf16 %v1212, %v1211
      %v1223 = vpack.c.bf16 %v1214, %v1213
      %v1224 = vpack.c.bf16 %v1216, %v1215
      %s1225 = scalar_lea.vmem %s1, 320
      %v1226 = vld [vmem:[%s1225] sm:$0xf]
      %v1227 = vld [vmem:[%s1225 + $0x4] sm:$0xf]
      %v1228 = vld [vmem:[%s1225 + $0x8] sm:$0xf]
      %v1229 = vld [vmem:[%s1225 + $0xc] sm:$0xf]
      %v1230 = vld [vmem:[%s1225 + $0x10] sm:$0xf]
      %v1231 = vld [vmem:[%s1225 + $0x14] sm:$0xf]
      %v1232 = vld [vmem:[%s1225 + $0x18] sm:$0xf]
      %v1233 = vld [vmem:[%s1225 + $0x1c] sm:$0xf]
      %v1234 = vld [vmem:[%s1225 + $0x20] sm:$0xf]
      %v1235 = vld [vmem:[%s1225 + $0x24] sm:$0xf]
      %v1236 = vld [vmem:[%s1225 + $0x28] sm:$0xf]
      %v1237 = vld [vmem:[%s1225 + $0x2c] sm:$0xf]
      %v1238 = vld [vmem:[%s1225 + $0x30] sm:$0xf]
      %v1239 = vld [vmem:[%s1225 + $0x34] sm:$0xf]
      %v1240 = vld [vmem:[%s1225 + $0x38] sm:$0xf]
      %v1241 = vld [vmem:[%s1225 + $0x3c] sm:$0xf]
      %v1258 = vunpack.c.l.b16 %v1226
      %v1259 = vunpack.c.l.b16 %v1227
      %v1260 = vunpack.c.l.b16 %v1228
      %v1261 = vunpack.c.l.b16 %v1229
      %v1262 = vunpack.c.l.b16 %v1230
      %v1263 = vunpack.c.l.b16 %v1231
      %v1264 = vunpack.c.l.b16 %v1232
      %v1265 = vunpack.c.l.b16 %v1233
      %v1266 = vunpack.c.l.b16 %v1234
      %v1267 = vunpack.c.l.b16 %v1235
      %v1268 = vunpack.c.l.b16 %v1236
      %v1269 = vunpack.c.l.b16 %v1237
      %v1270 = vunpack.c.l.b16 %v1238
      %v1271 = vunpack.c.l.b16 %v1239
      %v1272 = vunpack.c.l.b16 %v1240
      %v1273 = vunpack.c.l.b16 %v1241
      %v1274 = vpack.c.b16 %v1259, %v1258
      %v1275 = vpack.c.b16 %v1261, %v1260
      %v1276 = vpack.c.b16 %v1263, %v1262
      %v1277 = vpack.c.b16 %v1265, %v1264
      %v1278 = vpack.c.b16 %v1267, %v1266
      %v1279 = vpack.c.b16 %v1269, %v1268
      %v1280 = vpack.c.b16 %v1271, %v1270
      %v1281 = vpack.c.b16 %v1273, %v1272
      %1290 = vmatprep.subr.bf16.mxu0 0
      %1291 = vmatpush1.bf16.msra.mxu0 %v1274
      %1292 = vmatprep.subr.bf16.mxu0 0
      %1293 = vmatpush1.bf16.msra.mxu0 %v1275
      %1294 = vmatprep.subr.bf16.mxu0 0
      %1295 = vmatpush1.bf16.msra.mxu0 %v1276
      %1296 = vmatprep.subr.bf16.mxu0 0
      %1297 = vmatpush1.bf16.msra.mxu0 %v1277
      %1298 = vmatprep.subr.bf16.mxu0 0
      %1299 = vmatpush1.bf16.msra.mxu0 %v1278
      %1300 = vmatprep.subr.bf16.mxu0 0
      %1301 = vmatpush1.bf16.msra.mxu0 %v1279
      %1302 = vmatprep.subr.bf16.mxu0 0
      %1303 = vmatpush1.bf16.msra.mxu0 %v1280
      %1304 = vmatprep.subr.bf16.mxu0 0
      %1305 = vmatpush1.bf16.msra.mxu0 %v1281
      %1306 = vmatprep.subr.bf16.mxu0 0
      %1307 = vmatpush1.bf16.msra.mxu0 0
      %1308 = vmatprep.subr.bf16.mxu0 0
      %1309 = vmatpush1.bf16.msra.mxu0 0
      %1310 = vmatprep.subr.bf16.mxu0 0
      %1311 = vmatpush1.bf16.msra.mxu0 0
      %1312 = vmatprep.subr.bf16.mxu0 0
      %1313 = vmatpush1.bf16.msra.mxu0 0
      %1314 = vmatprep.subr.bf16.mxu0 0
      %1315 = vmatpush1.bf16.msra.mxu0 0
      %1316 = vmatprep.subr.bf16.mxu0 0
      %1317 = vmatpush1.bf16.msra.mxu0 0
      %1318 = vmatprep.subr.bf16.mxu0 0
      %1319 = vmatpush1.bf16.msra.mxu0 0
      %1320 = vmatprep.subr.bf16.mxu0 0
      %1321 = vmatpush1.bf16.msra.mxu0 0
      %1322 = vmatprep.mubr.bf16.mxu0 0
      %1323 = vmatmul.mubr.bf16.gmra.mrb[0].mxu0 %v1217
      %v1324 = vpop.f32.mrb[0].mxu0
      %v1325 = vadd.f32 0.0, %v1324
      %v1326 = vpop.f32.mrb[0].mxu0
      %v1327 = vpop.f32.mrb[0].mxu0
      %v1328 = vadd.f32 0.0, %v1327
      %v1329 = vpop.f32.mrb[0].mxu0
      %1330 = vmatprep.mubr.bf16.mxu0 0
      %1331 = vmatmul.mubr.bf16.gmra.mrb[0].mxu0 %v1218
      %v1332 = vpop.f32.mrb[0].mxu0
      %v1333 = vadd.f32 0.0, %v1332
      %v1334 = vpop.f32.mrb[0].mxu0
      %v1335 = vpop.f32.mrb[0].mxu0
      %v1336 = vadd.f32 0.0, %v1335
      %v1337 = vpop.f32.mrb[0].mxu0
      %1338 = vmatprep.mubr.bf16.mxu0 0
      %1339 = vmatmul.mubr.bf16.gmra.mrb[0].mxu0 %v1219
      %v1340 = vpop.f32.mrb[0].mxu0
      %v1341 = vadd.f32 0.0, %v1340
      %v1342 = vpop.f32.mrb[0].mxu0
      %v1343 = vpop.f32.mrb[0].mxu0
      %v1344 = vadd.f32 0.0, %v1343
      %v1345 = vpop.f32.mrb[0].mxu0
      %1346 = vmatprep.mubr.bf16.mxu0 0
      %1347 = vmatmul.mubr.bf16.gmra.mrb[0].mxu0 %v1220
      %v1348 = vpop.f32.mrb[0].mxu0
      %v1349 = vadd.f32 0.0, %v1348
      %v1350 = vpop.f32.mrb[0].mxu0
      %v1351 = vpop.f32.mrb[0].mxu0
      %v1352 = vadd.f32 0.0, %v1351
      %v1353 = vpop.f32.mrb[0].mxu0
      %1354 = vmatprep.mubr.bf16.mxu0 0
      %1355 = vmatmul.mubr.bf16.gmra.mrb[0].mxu0 %v1221
      %v1356 = vpop.f32.mrb[0].mxu0
      %v1357 = vadd.f32 0.0, %v1356
      %v1358 = vpop.f32.mrb[0].mxu0
      %v1359 = vpop.f32.mrb[0].mxu0
      %v1360 = vadd.f32 0.0, %v1359
      %v1361 = vpop.f32.mrb[0].mxu0
      %1362 = vmatprep.mubr.bf16.mxu0 0
      %1363 = vmatmul.mubr.bf16.gmra.mrb[0].mxu0 %v1222
      %v1364 = vpop.f32.mrb[0].mxu0
      %v1365 = vadd.f32 0.0, %v1364
      %v1366 = vpop.f32.mrb[0].mxu0
      %v1367 = vpop.f32.mrb[0].mxu0
      %v1368 = vadd.f32 0.0, %v1367
      %v1369 = vpop.f32.mrb[0].mxu0
      %1370 = vmatprep.mubr.bf16.mxu0 0
      %1371 = vmatmul.mubr.bf16.gmra.mrb[0].mxu0 %v1223
      %v1372 = vpop.f32.mrb[0].mxu0
      %v1373 = vadd.f32 0.0, %v1372
      %v1374 = vpop.f32.mrb[0].mxu0
      %v1375 = vpop.f32.mrb[0].mxu0
      %v1376 = vadd.f32 0.0, %v1375
      %v1377 = vpop.f32.mrb[0].mxu0
      %1378 = vmatprep.mubr.bf16.mxu0 0
      %1379 = vmatmul.mubr.bf16.gmra.mrb[0].mxu0 %v1224
      %v1380 = vpop.f32.mrb[0].mxu0
      %v1381 = vadd.f32 0.0, %v1380
      %v1382 = vpop.f32.mrb[0].mxu0
      %v1383 = vpop.f32.mrb[0].mxu0
      %v1384 = vadd.f32 0.0, %v1383
      %v1385 = vpop.f32.mrb[0].mxu0
      %1386 = vdwg.mxu0
      %v1387 = vadd.f32 %v1185, %v1325
      %v1388 = vadd.f32 %v1186, %v1328
      %v1389 = vadd.f32 %v1187, %v1333
      %v1390 = vadd.f32 %v1188, %v1336
      %v1391 = vadd.f32 %v1189, %v1341
      %v1392 = vadd.f32 %v1190, %v1344
      %v1393 = vadd.f32 %v1191, %v1349
      %v1394 = vadd.f32 %v1192, %v1352
      %v1395 = vadd.f32 %v1193, %v1357
      %v1396 = vadd.f32 %v1194, %v1360
      %v1397 = vadd.f32 %v1195, %v1365
      %v1398 = vadd.f32 %v1196, %v1368
      %v1399 = vadd.f32 %v1197, %v1373
      %v1400 = vadd.f32 %v1198, %v1376
      %v1401 = vadd.f32 %v1199, %v1381
      %v1402 = vadd.f32 %v1200, %v1384
      %s1403 = sadd.s32 %s218, 2
      %s1404 = smul.u32 %s1403, 24
      %s1405 = scalar_lea.vmem %s197, %s1404
      %v1406 = vld [vmem:[%s1405] sm:$0xff]
      %v1407 = vld [vmem:[%s1405 + $0x8] sm:$0xff]
      %v1408 = vld [vmem:[%s1405 + $0x18] sm:$0xff]
      %v1409 = vld [vmem:[%s1405 + $0x20] sm:$0xff]
      %v1410 = vld [vmem:[%s1405 + $0x30] sm:$0xff]
      %v1411 = vld [vmem:[%s1405 + $0x38] sm:$0xff]
      %v1412 = vld [vmem:[%s1405 + $0x48] sm:$0xff]
      %v1413 = vld [vmem:[%s1405 + $0x50] sm:$0xff]
      %v1414 = vld [vmem:[%s1405 + $0x60] sm:$0xff]
      %v1415 = vld [vmem:[%s1405 + $0x68] sm:$0xff]
      %v1416 = vld [vmem:[%s1405 + $0x78] sm:$0xff]
      %v1417 = vld [vmem:[%s1405 + $0x80] sm:$0xff]
      %v1418 = vld [vmem:[%s1405 + $0x90] sm:$0xff]
      %v1419 = vld [vmem:[%s1405 + $0x98] sm:$0xff]
      %v1420 = vld [vmem:[%s1405 + $0xa8] sm:$0xff]
      %v1421 = vld [vmem:[%s1405 + $0xb0] sm:$0xff]
      %v1422 = vpack.c.bf16 %v1407, %v1406
      %v1423 = vpack.c.bf16 %v1409, %v1408
      %v1424 = vpack.c.bf16 %v1411, %v1410
      %v1425 = vpack.c.bf16 %v1413, %v1412
      %v1426 = vpack.c.bf16 %v1415, %v1414
      %v1427 = vpack.c.bf16 %v1417, %v1416
      %v1428 = vpack.c.bf16 %v1419, %v1418
      %v1429 = vpack.c.bf16 %v1421, %v1420
      %s1430 = scalar_lea.vmem %s1, 384
      %v1431 = vld [vmem:[%s1430] sm:$0xf]
      %v1432 = vld [vmem:[%s1430 + $0x4] sm:$0xf]
      %v1433 = vld [vmem:[%s1430 + $0x8] sm:$0xf]
      %v1434 = vld [vmem:[%s1430 + $0xc] sm:$0xf]
      %v1435 = vld [vmem:[%s1430 + $0x10] sm:$0xf]
      %v1436 = vld [vmem:[%s1430 + $0x14] sm:$0xf]
      %v1437 = vld [vmem:[%s1430 + $0x18] sm:$0xf]
      %v1438 = vld [vmem:[%s1430 + $0x1c] sm:$0xf]
      %v1439 = vld [vmem:[%s1430 + $0x20] sm:$0xf]
      %v1440 = vld [vmem:[%s1430 + $0x24] sm:$0xf]
      %v1441 = vld [vmem:[%s1430 + $0x28] sm:$0xf]
      %v1442 = vld [vmem:[%s1430 + $0x2c] sm:$0xf]
      %v1443 = vld [vmem:[%s1430 + $0x30] sm:$0xf]
      %v1444 = vld [vmem:[%s1430 + $0x34] sm:$0xf]
      %v1445 = vld [vmem:[%s1430 + $0x38] sm:$0xf]
      %v1446 = vld [vmem:[%s1430 + $0x3c] sm:$0xf]
      %v1463 = vunpack.c.l.b16 %v1431
      %v1464 = vunpack.c.l.b16 %v1432
      %v1465 = vunpack.c.l.b16 %v1433
      %v1466 = vunpack.c.l.b16 %v1434
      %v1467 = vunpack.c.l.b16 %v1435
      %v1468 = vunpack.c.l.b16 %v1436
      %v1469 = vunpack.c.l.b16 %v1437
      %v1470 = vunpack.c.l.b16 %v1438
      %v1471 = vunpack.c.l.b16 %v1439
      %v1472 = vunpack.c.l.b16 %v1440
      %v1473 = vunpack.c.l.b16 %v1441
      %v1474 = vunpack.c.l.b16 %v1442
      %v1475 = vunpack.c.l.b16 %v1443
      %v1476 = vunpack.c.l.b16 %v1444
      %v1477 = vunpack.c.l.b16 %v1445
      %v1478 = vunpack.c.l.b16 %v1446
      %v1479 = vpack.c.b16 %v1464, %v1463
      %v1480 = vpack.c.b16 %v1466, %v1465
      %v1481 = vpack.c.b16 %v1468, %v1467
      %v1482 = vpack.c.b16 %v1470, %v1469
      %v1483 = vpack.c.b16 %v1472, %v1471
      %v1484 = vpack.c.b16 %v1474, %v1473
      %v1485 = vpack.c.b16 %v1476, %v1475
      %v1486 = vpack.c.b16 %v1478, %v1477
      %1495 = vmatprep.subr.bf16.mxu0 0
      %1496 = vmatpush1.bf16.msra.mxu0 %v1479
      %1497 = vmatprep.subr.bf16.mxu0 0
      %1498 = vmatpush1.bf16.msra.mxu0 %v1480
      %1499 = vmatprep.subr.bf16.mxu0 0
      %1500 = vmatpush1.bf16.msra.mxu0 %v1481
      %1501 = vmatprep.subr.bf16.mxu0 0
      %1502 = vmatpush1.bf16.msra.mxu0 %v1482
      %1503 = vmatprep.subr.bf16.mxu0 0
      %1504 = vmatpush1.bf16.msra.mxu0 %v1483
      %1505 = vmatprep.subr.bf16.mxu0 0
      %1506 = vmatpush1.bf16.msra.mxu0 %v1484
      %1507 = vmatprep.subr.bf16.mxu0 0
      %1508 = vmatpush1.bf16.msra.mxu0 %v1485
      %1509 = vmatprep.subr.bf16.mxu0 0
      %1510 = vmatpush1.bf16.msra.mxu0 %v1486
      %1511 = vmatprep.subr.bf16.mxu0 0
      %1512 = vmatpush1.bf16.msra.mxu0 0
      %1513 = vmatprep.subr.bf16.mxu0 0
      %1514 = vmatpush1.bf16.msra.mxu0 0
      %1515 = vmatprep.subr.bf16.mxu0 0
      %1516 = vmatpush1.bf16.msra.mxu0 0
      %1517 = vmatprep.subr.bf16.mxu0 0
      %1518 = vmatpush1.bf16.msra.mxu0 0
      %1519 = vmatprep.subr.bf16.mxu0 0
      %1520 = vmatpush1.bf16.msra.mxu0 0
      %1521 = vmatprep.subr.bf16.mxu0 0
      %1522 = vmatpush1.bf16.msra.mxu0 0
      %1523 = vmatprep.subr.bf16.mxu0 0
      %1524 = vmatpush1.bf16.msra.mxu0 0
      %1525 = vmatprep.subr.bf16.mxu0 0
      %1526 = vmatpush1.bf16.msra.mxu0 0
      %1527 = vmatprep.mubr.bf16.mxu0 0
      %1528 = vmatmul.mubr.bf16.gmra.mrb[0].mxu0 %v1422
      %v1529 = vpop.f32.mrb[0].mxu0
      %v1530 = vadd.f32 0.0, %v1529
      %v1531 = vpop.f32.mrb[0].mxu0
      %v1532 = vpop.f32.mrb[0].mxu0
      %v1533 = vadd.f32 0.0, %v1532
      %v1534 = vpop.f32.mrb[0].mxu0
      %1535 = vmatprep.mubr.bf16.mxu0 0
      %1536 = vmatmul.mubr.bf16.gmra.mrb[0].mxu0 %v1423
      %v1537 = vpop.f32.mrb[0].mxu0
      %v1538 = vadd.f32 0.0, %v1537
      %v1539 = vpop.f32.mrb[0].mxu0
      %v1540 = vpop.f32.mrb[0].mxu0
      %v1541 = vadd.f32 0.0, %v1540
      %v1542 = vpop.f32.mrb[0].mxu0
      %1543 = vmatprep.mubr.bf16.mxu0 0
      %1544 = vmatmul.mubr.bf16.gmra.mrb[0].mxu0 %v1424
      %v1545 = vpop.f32.mrb[0].mxu0
      %v1546 = vadd.f32 0.0, %v1545
      %v1547 = vpop.f32.mrb[0].mxu0
      %v1548 = vpop.f32.mrb[0].mxu0
      %v1549 = vadd.f32 0.0, %v1548
      %v1550 = vpop.f32.mrb[0].mxu0
      %1551 = vmatprep.mubr.bf16.mxu0 0
      %1552 = vmatmul.mubr.bf16.gmra.mrb[0].mxu0 %v1425
      %v1553 = vpop.f32.mrb[0].mxu0
      %v1554 = vadd.f32 0.0, %v1553
      %v1555 = vpop.f32.mrb[0].mxu0
      %v1556 = vpop.f32.mrb[0].mxu0
      %v1557 = vadd.f32 0.0, %v1556
      %v1558 = vpop.f32.mrb[0].mxu0
      %1559 = vmatprep.mubr.bf16.mxu0 0
      %1560 = vmatmul.mubr.bf16.gmra.mrb[0].mxu0 %v1426
      %v1561 = vpop.f32.mrb[0].mxu0
      %v1562 = vadd.f32 0.0, %v1561
      %v1563 = vpop.f32.mrb[0].mxu0
      %v1564 = vpop.f32.mrb[0].mxu0
      %v1565 = vadd.f32 0.0, %v1564
      %v1566 = vpop.f32.mrb[0].mxu0
      %1567 = vmatprep.mubr.bf16.mxu0 0
      %1568 = vmatmul.mubr.bf16.gmra.mrb[0].mxu0 %v1427
      %v1569 = vpop.f32.mrb[0].mxu0
      %v1570 = vadd.f32 0.0, %v1569
      %v1571 = vpop.f32.mrb[0].mxu0
      %v1572 = vpop.f32.mrb[0].mxu0
      %v1573 = vadd.f32 0.0, %v1572
      %v1574 = vpop.f32.mrb[0].mxu0
      %1575 = vmatprep.mubr.bf16.mxu0 0
      %1576 = vmatmul.mubr.bf16.gmra.mrb[0].mxu0 %v1428
      %v1577 = vpop.f32.mrb[0].mxu0
      %v1578 = vadd.f32 0.0, %v1577
      %v1579 = vpop.f32.mrb[0].mxu0
      %v1580 = vpop.f32.mrb[0].mxu0
      %v1581 = vadd.f32 0.0, %v1580
      %v1582 = vpop.f32.mrb[0].mxu0
      %1583 = vmatprep.mubr.bf16.mxu0 0
      %1584 = vmatmul.mubr.bf16.gmra.mrb[0].mxu0 %v1429
      %v1585 = vpop.f32.mrb[0].mxu0
      %v1586 = vadd.f32 0.0, %v1585
      %v1587 = vpop.f32.mrb[0].mxu0
      %v1588 = vpop.f32.mrb[0].mxu0
      %v1589 = vadd.f32 0.0, %v1588
      %v1590 = vpop.f32.mrb[0].mxu0
      %1591 = vdwg.mxu0
      %v1592 = vadd.f32 %v1387, %v1530
      %v1593 = vadd.f32 %v1388, %v1533
      %v1594 = vadd.f32 %v1389, %v1538
      %v1595 = vadd.f32 %v1390, %v1541
      %v1596 = vadd.f32 %v1391, %v1546
      %v1597 = vadd.f32 %v1392, %v1549
      %v1598 = vadd.f32 %v1393, %v1554
      %v1599 = vadd.f32 %v1394, %v1557
      %v1600 = vadd.f32 %v1395, %v1562
      %v1601 = vadd.f32 %v1396, %v1565
      %v1602 = vadd.f32 %v1397, %v1570
      %v1603 = vadd.f32 %v1398, %v1573
      %v1604 = vadd.f32 %v1399, %v1578
      %v1605 = vadd.f32 %v1400, %v1581
      %v1606 = vadd.f32 %v1401, %v1586
      %v1607 = vadd.f32 %v1402, %v1589
      %v1608 = vld [vmem:[%s1405 + $0x1] sm:$0xff]
      %v1609 = vld [vmem:[%s1405 + $0x9] sm:$0xff]
      %v1610 = vld [vmem:[%s1405 + $0x19] sm:$0xff]
      %v1611 = vld [vmem:[%s1405 + $0x21] sm:$0xff]
      %v1612 = vld [vmem:[%s1405 + $0x31] sm:$0xff]
      %v1613 = vld [vmem:[%s1405 + $0x39] sm:$0xff]
      %v1614 = vld [vmem:[%s1405 + $0x49] sm:$0xff]
      %v1615 = vld [vmem:[%s1405 + $0x51] sm:$0xff]
      %v1616 = vld [vmem:[%s1405 + $0x61] sm:$0xff]
      %v1617 = vld [vmem:[%s1405 + $0x69] sm:$0xff]
      %v1618 = vld [vmem:[%s1405 + $0x79] sm:$0xff]
      %v1619 = vld [vmem:[%s1405 + $0x81] sm:$0xff]
      %v1620 = vld [vmem:[%s1405 + $0x91] sm:$0xff]
      %v1621 = vld [vmem:[%s1405 + $0x99] sm:$0xff]
      %v1622 = vld [vmem:[%s1405 + $0xa9] sm:$0xff]
      %v1623 = vld [vmem:[%s1405 + $0xb1] sm:$0xff]
      %v1624 = vpack.c.bf16 %v1609, %v1608
      %v1625 = vpack.c.bf16 %v1611, %v1610
      %v1626 = vpack.c.bf16 %v1613, %v1612
      %v1627 = vpack.c.bf16 %v1615, %v1614
      %v1628 = vpack.c.bf16 %v1617, %v1616
      %v1629 = vpack.c.bf16 %v1619, %v1618
      %v1630 = vpack.c.bf16 %v1621, %v1620
      %v1631 = vpack.c.bf16 %v1623, %v1622
      %s1632 = scalar_lea.vmem %s1, 448
      %v1633 = vld [vmem:[%s1632] sm:$0xf]
      %v1634 = vld [vmem:[%s1632 + $0x4] sm:$0xf]
      %v1635 = vld [vmem:[%s1632 + $0x8] sm:$0xf]
      %v1636 = vld [vmem:[%s1632 + $0xc] sm:$0xf]
      %v1637 = vld [vmem:[%s1632 + $0x10] sm:$0xf]
      %v1638 = vld [vmem:[%s1632 + $0x14] sm:$0xf]
      %v1639 = vld [vmem:[%s1632 + $0x18] sm:$0xf]
      %v1640 = vld [vmem:[%s1632 + $0x1c] sm:$0xf]
      %v1641 = vld [vmem:[%s1632 + $0x20] sm:$0xf]
      %v1642 = vld [vmem:[%s1632 + $0x24] sm:$0xf]
      %v1643 = vld [vmem:[%s1632 + $0x28] sm:$0xf]
      %v1644 = vld [vmem:[%s1632 + $0x2c] sm:$0xf]
      %v1645 = vld [vmem:[%s1632 + $0x30] sm:$0xf]
      %v1646 = vld [vmem:[%s1632 + $0x34] sm:$0xf]
      %v1647 = vld [vmem:[%s1632 + $0x38] sm:$0xf]
      %v1648 = vld [vmem:[%s1632 + $0x3c] sm:$0xf]
      %v1665 = vunpack.c.l.b16 %v1633
      %v1666 = vunpack.c.l.b16 %v1634
      %v1667 = vunpack.c.l.b16 %v1635
      %v1668 = vunpack.c.l.b16 %v1636
      %v1669 = vunpack.c.l.b16 %v1637
      %v1670 = vunpack.c.l.b16 %v1638
      %v1671 = vunpack.c.l.b16 %v1639
      %v1672 = vunpack.c.l.b16 %v1640
      %v1673 = vunpack.c.l.b16 %v1641
      %v1674 = vunpack.c.l.b16 %v1642
      %v1675 = vunpack.c.l.b16 %v1643
      %v1676 = vunpack.c.l.b16 %v1644
      %v1677 = vunpack.c.l.b16 %v1645
      %v1678 = vunpack.c.l.b16 %v1646
      %v1679 = vunpack.c.l.b16 %v1647
      %v1680 = vunpack.c.l.b16 %v1648
      %v1681 = vpack.c.b16 %v1666, %v1665
      %v1682 = vpack.c.b16 %v1668, %v1667
      %v1683 = vpack.c.b16 %v1670, %v1669
      %v1684 = vpack.c.b16 %v1672, %v1671
      %v1685 = vpack.c.b16 %v1674, %v1673
      %v1686 = vpack.c.b16 %v1676, %v1675
      %v1687 = vpack.c.b16 %v1678, %v1677
      %v1688 = vpack.c.b16 %v1680, %v1679
      %1697 = vmatprep.subr.bf16.mxu0 0
      %1698 = vmatpush1.bf16.msra.mxu0 %v1681
      %1699 = vmatprep.subr.bf16.mxu0 0
      %1700 = vmatpush1.bf16.msra.mxu0 %v1682
      %1701 = vmatprep.subr.bf16.mxu0 0
      %1702 = vmatpush1.bf16.msra.mxu0 %v1683
      %1703 = vmatprep.subr.bf16.mxu0 0
      %1704 = vmatpush1.bf16.msra.mxu0 %v1684
      %1705 = vmatprep.subr.bf16.mxu0 0
      %1706 = vmatpush1.bf16.msra.mxu0 %v1685
      %1707 = vmatprep.subr.bf16.mxu0 0
      %1708 = vmatpush1.bf16.msra.mxu0 %v1686
      %1709 = vmatprep.subr.bf16.mxu0 0
      %1710 = vmatpush1.bf16.msra.mxu0 %v1687
      %1711 = vmatprep.subr.bf16.mxu0 0
      %1712 = vmatpush1.bf16.msra.mxu0 %v1688
      %1713 = vmatprep.subr.bf16.mxu0 0
      %1714 = vmatpush1.bf16.msra.mxu0 0
      %1715 = vmatprep.subr.bf16.mxu0 0
      %1716 = vmatpush1.bf16.msra.mxu0 0
      %1717 = vmatprep.subr.bf16.mxu0 0
      %1718 = vmatpush1.bf16.msra.mxu0 0
      %1719 = vmatprep.subr.bf16.mxu0 0
      %1720 = vmatpush1.bf16.msra.mxu0 0
      %1721 = vmatprep.subr.bf16.mxu0 0
      %1722 = vmatpush1.bf16.msra.mxu0 0
      %1723 = vmatprep.subr.bf16.mxu0 0
      %1724 = vmatpush1.bf16.msra.mxu0 0
      %1725 = vmatprep.subr.bf16.mxu0 0
      %1726 = vmatpush1.bf16.msra.mxu0 0
      %1727 = vmatprep.subr.bf16.mxu0 0
      %1728 = vmatpush1.bf16.msra.mxu0 0
      %1729 = vmatprep.mubr.bf16.mxu0 0
      %1730 = vmatmul.mubr.bf16.gmra.mrb[0].mxu0 %v1624
      %v1731 = vpop.f32.mrb[0].mxu0
      %v1732 = vadd.f32 0.0, %v1731
      %v1733 = vpop.f32.mrb[0].mxu0
      %v1734 = vpop.f32.mrb[0].mxu0
      %v1735 = vadd.f32 0.0, %v1734
      %v1736 = vpop.f32.mrb[0].mxu0
      %1737 = vmatprep.mubr.bf16.mxu0 0
      %1738 = vmatmul.mubr.bf16.gmra.mrb[0].mxu0 %v1625
      %v1739 = vpop.f32.mrb[0].mxu0
      %v1740 = vadd.f32 0.0, %v1739
      %v1741 = vpop.f32.mrb[0].mxu0
      %v1742 = vpop.f32.mrb[0].mxu0
      %v1743 = vadd.f32 0.0, %v1742
      %v1744 = vpop.f32.mrb[0].mxu0
      %1745 = vmatprep.mubr.bf16.mxu0 0
      %1746 = vmatmul.mubr.bf16.gmra.mrb[0].mxu0 %v1626
      %v1747 = vpop.f32.mrb[0].mxu0
      %v1748 = vadd.f32 0.0, %v1747
      %v1749 = vpop.f32.mrb[0].mxu0
      %v1750 = vpop.f32.mrb[0].mxu0
      %v1751 = vadd.f32 0.0, %v1750
      %v1752 = vpop.f32.mrb[0].mxu0
      %1753 = vmatprep.mubr.bf16.mxu0 0
      %1754 = vmatmul.mubr.bf16.gmra.mrb[0].mxu0 %v1627
      %v1755 = vpop.f32.mrb[0].mxu0
      %v1756 = vadd.f32 0.0, %v1755
      %v1757 = vpop.f32.mrb[0].mxu0
      %v1758 = vpop.f32.mrb[0].mxu0
      %v1759 = vadd.f32 0.0, %v1758
      %v1760 = vpop.f32.mrb[0].mxu0
      %1761 = vmatprep.mubr.bf16.mxu0 0
      %1762 = vmatmul.mubr.bf16.gmra.mrb[0].mxu0 %v1628
      %v1763 = vpop.f32.mrb[0].mxu0
      %v1764 = vadd.f32 0.0, %v1763
      %v1765 = vpop.f32.mrb[0].mxu0
      %v1766 = vpop.f32.mrb[0].mxu0
      %v1767 = vadd.f32 0.0, %v1766
      %v1768 = vpop.f32.mrb[0].mxu0
      %1769 = vmatprep.mubr.bf16.mxu0 0
      %1770 = vmatmul.mubr.bf16.gmra.mrb[0].mxu0 %v1629
      %v1771 = vpop.f32.mrb[0].mxu0
      %v1772 = vadd.f32 0.0, %v1771
      %v1773 = vpop.f32.mrb[0].mxu0
      %v1774 = vpop.f32.mrb[0].mxu0
      %v1775 = vadd.f32 0.0, %v1774
      %v1776 = vpop.f32.mrb[0].mxu0
      %1777 = vmatprep.mubr.bf16.mxu0 0
      %1778 = vmatmul.mubr.bf16.gmra.mrb[0].mxu0 %v1630
      %v1779 = vpop.f32.mrb[0].mxu0
      %v1780 = vadd.f32 0.0, %v1779
      %v1781 = vpop.f32.mrb[0].mxu0
      %v1782 = vpop.f32.mrb[0].mxu0
      %v1783 = vadd.f32 0.0, %v1782
      %v1784 = vpop.f32.mrb[0].mxu0
      %1785 = vmatprep.mubr.bf16.mxu0 0
      %1786 = vmatmul.mubr.bf16.gmra.mrb[0].mxu0 %v1631
      %v1787 = vpop.f32.mrb[0].mxu0
      %v1788 = vadd.f32 0.0, %v1787
      %v1789 = vpop.f32.mrb[0].mxu0
      %v1790 = vpop.f32.mrb[0].mxu0
      %v1791 = vadd.f32 0.0, %v1790
      %v1792 = vpop.f32.mrb[0].mxu0
      %1793 = vdwg.mxu0
      %v1794 = vadd.f32 %v1592, %v1732
      %v1795 = vadd.f32 %v1593, %v1735
      %v1796 = vadd.f32 %v1594, %v1740
      %v1797 = vadd.f32 %v1595, %v1743
      %v1798 = vadd.f32 %v1596, %v1748
      %v1799 = vadd.f32 %v1597, %v1751
      %v1800 = vadd.f32 %v1598, %v1756
      %v1801 = vadd.f32 %v1599, %v1759
      %v1802 = vadd.f32 %v1600, %v1764
      %v1803 = vadd.f32 %v1601, %v1767
      %v1804 = vadd.f32 %v1602, %v1772
      %v1805 = vadd.f32 %v1603, %v1775
      %v1806 = vadd.f32 %v1604, %v1780
      %v1807 = vadd.f32 %v1605, %v1783
      %v1808 = vadd.f32 %v1606, %v1788
      %v1809 = vadd.f32 %v1607, %v1791
      %v1810 = vld [vmem:[%s1405 + $0x2] sm:$0xff]
      %v1811 = vld [vmem:[%s1405 + $0xa] sm:$0xff]
      %v1812 = vld [vmem:[%s1405 + $0x1a] sm:$0xff]
      %v1813 = vld [vmem:[%s1405 + $0x22] sm:$0xff]
      %v1814 = vld [vmem:[%s1405 + $0x32] sm:$0xff]
      %v1815 = vld [vmem:[%s1405 + $0x3a] sm:$0xff]
      %v1816 = vld [vmem:[%s1405 + $0x4a] sm:$0xff]
      %v1817 = vld [vmem:[%s1405 + $0x52] sm:$0xff]
      %v1818 = vld [vmem:[%s1405 + $0x62] sm:$0xff]
      %v1819 = vld [vmem:[%s1405 + $0x6a] sm:$0xff]
      %v1820 = vld [vmem:[%s1405 + $0x7a] sm:$0xff]
      %v1821 = vld [vmem:[%s1405 + $0x82] sm:$0xff]
      %v1822 = vld [vmem:[%s1405 + $0x92] sm:$0xff]
      %v1823 = vld [vmem:[%s1405 + $0x9a] sm:$0xff]
      %v1824 = vld [vmem:[%s1405 + $0xaa] sm:$0xff]
      %v1825 = vld [vmem:[%s1405 + $0xb2] sm:$0xff]
      %v1826 = vpack.c.bf16 %v1811, %v1810
      %v1827 = vpack.c.bf16 %v1813, %v1812
      %v1828 = vpack.c.bf16 %v1815, %v1814
      %v1829 = vpack.c.bf16 %v1817, %v1816
      %v1830 = vpack.c.bf16 %v1819, %v1818
      %v1831 = vpack.c.bf16 %v1821, %v1820
      %v1832 = vpack.c.bf16 %v1823, %v1822
      %v1833 = vpack.c.bf16 %v1825, %v1824
      %s1834 = scalar_lea.vmem %s1, 512
      %v1835 = vld [vmem:[%s1834] sm:$0xf]
      %v1836 = vld [vmem:[%s1834 + $0x4] sm:$0xf]
      %v1837 = vld [vmem:[%s1834 + $0x8] sm:$0xf]
      %v1838 = vld [vmem:[%s1834 + $0xc] sm:$0xf]
      %v1839 = vld [vmem:[%s1834 + $0x10] sm:$0xf]
      %v1840 = vld [vmem:[%s1834 + $0x14] sm:$0xf]
      %v1841 = vld [vmem:[%s1834 + $0x18] sm:$0xf]
      %v1842 = vld [vmem:[%s1834 + $0x1c] sm:$0xf]
      %v1843 = vld [vmem:[%s1834 + $0x20] sm:$0xf]
      %v1844 = vld [vmem:[%s1834 + $0x24] sm:$0xf]
      %v1845 = vld [vmem:[%s1834 + $0x28] sm:$0xf]
      %v1846 = vld [vmem:[%s1834 + $0x2c] sm:$0xf]
      %v1847 = vld [vmem:[%s1834 + $0x30] sm:$0xf]
      %v1848 = vld [vmem:[%s1834 + $0x34] sm:$0xf]
      %v1849 = vld [vmem:[%s1834 + $0x38] sm:$0xf]
      %v1850 = vld [vmem:[%s1834 + $0x3c] sm:$0xf]
      %v1867 = vunpack.c.l.b16 %v1835
      %v1868 = vunpack.c.l.b16 %v1836
      %v1869 = vunpack.c.l.b16 %v1837
      %v1870 = vunpack.c.l.b16 %v1838
      %v1871 = vunpack.c.l.b16 %v1839
      %v1872 = vunpack.c.l.b16 %v1840
      %v1873 = vunpack.c.l.b16 %v1841
      %v1874 = vunpack.c.l.b16 %v1842
      %v1875 = vunpack.c.l.b16 %v1843
      %v1876 = vunpack.c.l.b16 %v1844
      %v1877 = vunpack.c.l.b16 %v1845
      %v1878 = vunpack.c.l.b16 %v1846
      %v1879 = vunpack.c.l.b16 %v1847
      %v1880 = vunpack.c.l.b16 %v1848
      %v1881 = vunpack.c.l.b16 %v1849
      %v1882 = vunpack.c.l.b16 %v1850
      %v1883 = vpack.c.b16 %v1868, %v1867
      %v1884 = vpack.c.b16 %v1870, %v1869
      %v1885 = vpack.c.b16 %v1872, %v1871
      %v1886 = vpack.c.b16 %v1874, %v1873
      %v1887 = vpack.c.b16 %v1876, %v1875
      %v1888 = vpack.c.b16 %v1878, %v1877
      %v1889 = vpack.c.b16 %v1880, %v1879
      %v1890 = vpack.c.b16 %v1882, %v1881
      %1899 = vmatprep.subr.bf16.mxu0 0
      %1900 = vmatpush1.bf16.msra.mxu0 %v1883
      %1901 = vmatprep.subr.bf16.mxu0 0
      %1902 = vmatpush1.bf16.msra.mxu0 %v1884
      %1903 = vmatprep.subr.bf16.mxu0 0
      %1904 = vmatpush1.bf16.msra.mxu0 %v1885
      %1905 = vmatprep.subr.bf16.mxu0 0
      %1906 = vmatpush1.bf16.msra.mxu0 %v1886
      %1907 = vmatprep.subr.bf16.mxu0 0
      %1908 = vmatpush1.bf16.msra.mxu0 %v1887
      %1909 = vmatprep.subr.bf16.mxu0 0
      %1910 = vmatpush1.bf16.msra.mxu0 %v1888
      %1911 = vmatprep.subr.bf16.mxu0 0
      %1912 = vmatpush1.bf16.msra.mxu0 %v1889
      %1913 = vmatprep.subr.bf16.mxu0 0
      %1914 = vmatpush1.bf16.msra.mxu0 %v1890
      %1915 = vmatprep.subr.bf16.mxu0 0
      %1916 = vmatpush1.bf16.msra.mxu0 0
      %1917 = vmatprep.subr.bf16.mxu0 0
      %1918 = vmatpush1.bf16.msra.mxu0 0
      %1919 = vmatprep.subr.bf16.mxu0 0
      %1920 = vmatpush1.bf16.msra.mxu0 0
      %1921 = vmatprep.subr.bf16.mxu0 0
      %1922 = vmatpush1.bf16.msra.mxu0 0
      %1923 = vmatprep.subr.bf16.mxu0 0
      %1924 = vmatpush1.bf16.msra.mxu0 0
      %1925 = vmatprep.subr.bf16.mxu0 0
      %1926 = vmatpush1.bf16.msra.mxu0 0
      %1927 = vmatprep.subr.bf16.mxu0 0
      %1928 = vmatpush1.bf16.msra.mxu0 0
      %1929 = vmatprep.subr.bf16.mxu0 0
      %1930 = vmatpush1.bf16.msra.mxu0 0
      %1931 = vmatprep.mubr.bf16.mxu0 0
      %1932 = vmatmul.mubr.bf16.gmra.mrb[0].mxu0 %v1826
      %v1933 = vpop.f32.mrb[0].mxu0
      %v1934 = vadd.f32 0.0, %v1933
      %v1935 = vpop.f32.mrb[0].mxu0
      %v1936 = vpop.f32.mrb[0].mxu0
      %v1937 = vadd.f32 0.0, %v1936
      %v1938 = vpop.f32.mrb[0].mxu0
      %1939 = vmatprep.mubr.bf16.mxu0 0
      %1940 = vmatmul.mubr.bf16.gmra.mrb[0].mxu0 %v1827
      %v1941 = vpop.f32.mrb[0].mxu0
      %v1942 = vadd.f32 0.0, %v1941
      %v1943 = vpop.f32.mrb[0].mxu0
      %v1944 = vpop.f32.mrb[0].mxu0
      %v1945 = vadd.f32 0.0, %v1944
      %v1946 = vpop.f32.mrb[0].mxu0
      %1947 = vmatprep.mubr.bf16.mxu0 0
      %1948 = vmatmul.mubr.bf16.gmra.mrb[0].mxu0 %v1828
      %v1949 = vpop.f32.mrb[0].mxu0
      %v1950 = vadd.f32 0.0, %v1949
      %v1951 = vpop.f32.mrb[0].mxu0
      %v1952 = vpop.f32.mrb[0].mxu0
      %v1953 = vadd.f32 0.0, %v1952
      %v1954 = vpop.f32.mrb[0].mxu0
      %1955 = vmatprep.mubr.bf16.mxu0 0
      %1956 = vmatmul.mubr.bf16.gmra.mrb[0].mxu0 %v1829
      %v1957 = vpop.f32.mrb[0].mxu0
      %v1958 = vadd.f32 0.0, %v1957
      %v1959 = vpop.f32.mrb[0].mxu0
      %v1960 = vpop.f32.mrb[0].mxu0
      %v1961 = vadd.f32 0.0, %v1960
      %v1962 = vpop.f32.mrb[0].mxu0
      %1963 = vmatprep.mubr.bf16.mxu0 0
      %1964 = vmatmul.mubr.bf16.gmra.mrb[0].mxu0 %v1830
      %v1965 = vpop.f32.mrb[0].mxu0
      %v1966 = vadd.f32 0.0, %v1965
      %v1967 = vpop.f32.mrb[0].mxu0
      %v1968 = vpop.f32.mrb[0].mxu0
      %v1969 = vadd.f32 0.0, %v1968
      %v1970 = vpop.f32.mrb[0].mxu0
      %1971 = vmatprep.mubr.bf16.mxu0 0
      %1972 = vmatmul.mubr.bf16.gmra.mrb[0].mxu0 %v1831
      %v1973 = vpop.f32.mrb[0].mxu0
      %v1974 = vadd.f32 0.0, %v1973
      %v1975 = vpop.f32.mrb[0].mxu0
      %v1976 = vpop.f32.mrb[0].mxu0
      %v1977 = vadd.f32 0.0, %v1976
      %v1978 = vpop.f32.mrb[0].mxu0
      %1979 = vmatprep.mubr.bf16.mxu0 0
      %1980 = vmatmul.mubr.bf16.gmra.mrb[0].mxu0 %v1832
      %v1981 = vpop.f32.mrb[0].mxu0
      %v1982 = vadd.f32 0.0, %v1981
      %v1983 = vpop.f32.mrb[0].mxu0
      %v1984 = vpop.f32.mrb[0].mxu0
      %v1985 = vadd.f32 0.0, %v1984
      %v1986 = vpop.f32.mrb[0].mxu0
      %1987 = vmatprep.mubr.bf16.mxu0 0
      %1988 = vmatmul.mubr.bf16.gmra.mrb[0].mxu0 %v1833
      %v1989 = vpop.f32.mrb[0].mxu0
      %v1990 = vadd.f32 0.0, %v1989
      %v1991 = vpop.f32.mrb[0].mxu0
      %v1992 = vpop.f32.mrb[0].mxu0
      %v1993 = vadd.f32 0.0, %v1992
      %v1994 = vpop.f32.mrb[0].mxu0
      %1995 = vdwg.mxu0
      %v1996 = vadd.f32 %v1794, %v1934
      %v1997 = vadd.f32 %v1795, %v1937
      %v1998 = vadd.f32 %v1796, %v1942
      %v1999 = vadd.f32 %v1797, %v1945
      %v2000 = vadd.f32 %v1798, %v1950
      %v2001 = vadd.f32 %v1799, %v1953
      %v2002 = vadd.f32 %v1800, %v1958
      %v2003 = vadd.f32 %v1801, %v1961
      %v2004 = vadd.f32 %v1802, %v1966
      %v2005 = vadd.f32 %v1803, %v1969
      %v2006 = vadd.f32 %v1804, %v1974
      %v2007 = vadd.f32 %v1805, %v1977
      %v2008 = vadd.f32 %v1806, %v1982
      %v2009 = vadd.f32 %v1807, %v1985
      %v2010 = vadd.f32 %v1808, %v1990
      %v2011 = vadd.f32 %v1809, %v1993
      %2012 = vst [vmem:[%s207] sm:$0xff] %v1996
      %2013 = vst [vmem:[%s207 + $0x8] sm:$0xff] %v1997
      %2014 = vst [vmem:[%s207 + $0x10] sm:$0xff] %v1998
      %2015 = vst [vmem:[%s207 + $0x18] sm:$0xff] %v1999
      %2016 = vst [vmem:[%s207 + $0x20] sm:$0xff] %v2000
      %2017 = vst [vmem:[%s207 + $0x28] sm:$0xff] %v2001
      %2018 = vst [vmem:[%s207 + $0x30] sm:$0xff] %v2002
      %2019 = vst [vmem:[%s207 + $0x38] sm:$0xff] %v2003
      %2020 = vst [vmem:[%s207 + $0x40] sm:$0xff] %v2004
      %2021 = vst [vmem:[%s207 + $0x48] sm:$0xff] %v2005
      %2022 = vst [vmem:[%s207 + $0x50] sm:$0xff] %v2006
      %2023 = vst [vmem:[%s207 + $0x58] sm:$0xff] %v2007
      %2024 = vst [vmem:[%s207 + $0x60] sm:$0xff] %v2008
      %2025 = vst [vmem:[%s207 + $0x68] sm:$0xff] %v2009
      %2026 = vst [vmem:[%s207 + $0x70] sm:$0xff] %v2010
      %2027 = vst [vmem:[%s207 + $0x78] sm:$0xff] %v2011
      %v2028 = vadd.f32 %v1996, %v1997
      %v2029 = vadd.f32 %v2028, %v1998
      %v2030 = vadd.f32 %v2029, %v1999
      %v2031 = vadd.f32 %v2030, %v2000
      %v2032 = vadd.f32 %v2031, %v2001
      %v2033 = vadd.f32 %v2032, %v2002
      %v2034 = vadd.f32 %v2033, %v2003
      %v2035 = vadd.f32 %v2034, %v2004
      %v2036 = vadd.f32 %v2035, %v2005
      %v2037 = vadd.f32 %v2036, %v2006
      %v2038 = vadd.f32 %v2037, %v2007
      %v2039 = vadd.f32 %v2038, %v2008
      %v2040 = vadd.f32 %v2039, %v2009
      %v2041 = vadd.f32 %v2040, %v2010
      %v2042 = vadd.f32 %v2041, %v2011
      %v2043 = vrot.slane %v2042, 4
      %v2044 = vadd.f32 %v2042, %v2043
      %v2045 = vrot.slane %v2044, 2
      %v2046 = vadd.f32 %v2044, %v2045
      %v2047 = vrot.slane %v2046, 1
      %v2048 = vadd.f32 %v2046, %v2047
      %v2049 = vmul.f32 %v1996, %v1996
      %v2050 = vmul.f32 %v1997, %v1997
      %v2051 = vmul.f32 %v1998, %v1998
      %v2052 = vmul.f32 %v1999, %v1999
      %v2053 = vmul.f32 %v2000, %v2000
      %v2054 = vmul.f32 %v2001, %v2001
      %v2055 = vmul.f32 %v2002, %v2002
      %v2056 = vmul.f32 %v2003, %v2003
      %v2057 = vmul.f32 %v2004, %v2004
      %v2058 = vmul.f32 %v2005, %v2005
      %v2059 = vmul.f32 %v2006, %v2006
      %v2060 = vmul.f32 %v2007, %v2007
      %v2061 = vmul.f32 %v2008, %v2008
      %v2062 = vmul.f32 %v2009, %v2009
      %v2063 = vmul.f32 %v2010, %v2010
      %v2064 = vmul.f32 %v2011, %v2011
      %v2065 = vadd.f32 %v2049, %v2050
      %v2066 = vadd.f32 %v2065, %v2051
      %v2067 = vadd.f32 %v2066, %v2052
      %v2068 = vadd.f32 %v2067, %v2053
      %v2069 = vadd.f32 %v2068, %v2054
      %v2070 = vadd.f32 %v2069, %v2055
      %v2071 = vadd.f32 %v2070, %v2056
      %v2072 = vadd.f32 %v2071, %v2057
      %v2073 = vadd.f32 %v2072, %v2058
      %v2074 = vadd.f32 %v2073, %v2059
      %v2075 = vadd.f32 %v2074, %v2060
      %v2076 = vadd.f32 %v2075, %v2061
      %v2077 = vadd.f32 %v2076, %v2062
      %v2078 = vadd.f32 %v2077, %v2063
      %v2079 = vadd.f32 %v2078, %v2064
      %v2080 = vrot.slane %v2079, 4
      %v2081 = vadd.f32 %v2079, %v2080
      %v2082 = vrot.slane %v2081, 2
      %v2083 = vadd.f32 %v2081, %v2082
      %v2084 = vrot.slane %v2083, 1
      %v2085 = vadd.f32 %v2083, %v2084
      %vm2086 = vcmask 1040384
      %v2087 = vsel %vm2086, %v2048, %v2085
      %2088 = vst [vmem:[%s216] sm:$0x3] %v2087
      %s2089 = smul.u32 8, %s20
      %p2090 = scmp.lt.s32.totalorder %s19, 1
      %s2091 = scalar_select %p2090, %s19, 1
      %p2092 = scmp.lt.s32.totalorder %s2089, 15
      %s2093 = scalar_select %p2092, %s2089, 15
      %s2094 = smul.addr %s2093, 2
      %s2095 = smul.addr %s2091, 32
      %s2096 = sadd.s32 %s2094, %s2095
      %s2097 = smul.addr %s2096, 8
      %s2098 = scalar_lea.vmem %s2, %s2097
      %p2099 = scmp.lt.s32.totalorder %s19, 1
      %s2100 = scalar_select %p2099, %s19, 1
      %p2101 = scmp.lt.s32.totalorder %s20, 1
      %s2102 = scalar_select %p2101, %s20, 1
      %s2103 = smul.addr %s2100, 2
      %s2104 = sadd.s32 %s2102, %s2103
      %s2105 = smul.addr %s2104, 2
      %s2106 = scalar_lea.vmem %s3, %s2105
      // Predicated region
      $region29: #{_lambda_.4} parent=27 // pred_check
        %p2107 = pneg %p94
      $region30: #{_lambda_.4} parent=27 // pred_check_branch
        %2109 = sbr.rel (%p2107) target = $region32
      $region31: #{_lambda_.4} parent=27 // pred_region
        %s2110 = smul.u32 8, %s20
      $region32: #{_lambda_.4} parent=27 // pred_fallthru
        _
      // Predicated region
      $region33: #{_lambda_.4} parent=27 // pred_check
        %p2111 = pneg %p122
      $region34: #{_lambda_.4} parent=27 // pred_check_branch
        %2113 = sbr.rel (%p2111) target = $region36
      $region35: #{_lambda_.4} parent=27 // pred_region
        _
      $region36: #{_lambda_.4} parent=27 // pred_fallthru
        _
    $region28: #{_lambda_.4} parent=5 // pred_fallthru
      _
    %p2114 = scmp.le.s32.totalorder 2, %s10
    // Predicated region
    $region37: #{_lambda_.4} parent=5 // pred_check
      %p2115 = pneg %p2114
    $region38: #{_lambda_.4} parent=5 // pred_check_branch
      %2117 = sbr.rel (%p2115) target = $region40
    $region39: #{_lambda_.4} parent=5 // pred_region
      %s2118 = ssub.s32 %s10, 2
      // Predicated region
      $region41: #{_lambda_.4} parent=39 // pred_check
        %p2119 = pneg %p100
      $region42: #{_lambda_.4} parent=39 // pred_check_branch
        %2121 = sbr.rel (%p2119) target = $region44
      $region43: #{_lambda_.4} parent=39 // pred_region
        %s2122 = smul.u32 8, %s22
        %p2123 = scmp.lt.s32.totalorder %s21, 1
        %s2124 = scalar_select %p2123, %s21, 1
        %p2125 = scmp.lt.s32.totalorder %s2122, 15
        %s2126 = scalar_select %p2125, %s2122, 15
        %s2127 = smul.addr %s2126, 2
        %s2128 = smul.addr %s2124, 32
        %s2129 = sadd.s32 %s2127, %s2128
        %s2130 = smul.addr %s2129, 8
        %s2131 = scalar_lea.vmem %s2, %s2130
      $region44: #{_lambda_.4} parent=39 // pred_fallthru
        _
      // Predicated region
      $region45: #{_lambda_.4} parent=39 // pred_check
        %p2132 = pneg %p128
      $region46: #{_lambda_.4} parent=39 // pred_check_branch
        %2134 = sbr.rel (%p2132) target = $region48
      $region47: #{_lambda_.4} parent=39 // pred_region
        %p2135 = scmp.lt.s32.totalorder %s21, 1
        %s2136 = scalar_select %p2135, %s21, 1
        %p2137 = scmp.lt.s32.totalorder %s22, 1
        %s2138 = scalar_select %p2137, %s22, 1
        %s2139 = smul.addr %s2136, 2
        %s2140 = sadd.s32 %s2138, %s2139
        %s2141 = smul.addr %s2140, 2
        %s2142 = scalar_lea.vmem %s3, %s2141
      $region48: #{_lambda_.4} parent=39 // pred_fallthru
        _
    $region40: #{_lambda_.4} parent=5 // pred_fallthru
      _
  $region6: #{_lambda_.4} parent=0 // loop_footer
    %s14 = sadd.s32 1, %s10
  $region7: #{_lambda_.4} parent=0 // loop_footer_branch
    %9 = sbr.rel target = $region3
  $region8: #{_lambda_.4} parent=0 // loop_exit
    _

</llo_original>
